<compile_context>
chip_gen: v7x
topology: tpu7x:2x2x1
jax: 0.10.0
libtpu: 0.0.40
codegen_flags: <defaults>
</compile_context>

<pallas_src>
import functools

import jax
import jax.numpy as jnp
import numpy as np
from jax.experimental import pallas as pl
from jax.experimental.pallas import tpu as pltpu


# --------------------------------------------------------------------------
# Fused kernel: conv1 + ReLU + conv2 + ReLU + flatten + fc1 + ReLU + fc2
# --------------------------------------------------------------------------
def _fused_kernel(x_ref, w1_ref, b1_ref, w2_ref, b2_ref, wf1_hbm, bf1_ref,
                  wf2_ref, bf2_ref, o_ref, wf1_vmem, flat_s, dma_sems,
                  *, H, W, n_chunks):
    K, NOUT1 = wf1_vmem.shape            # (4096, 128)
    KC = K // n_chunks                   # rows per weight chunk

    # Kick off all fc1-weight chunk DMAs first so they overlap the conv work.
    copies = [
        pltpu.make_async_copy(wf1_hbm.at[pl.ds(g * KC, KC), :],
                              wf1_vmem.at[pl.ds(g * KC, KC), :],
                              dma_sems.at[g])
        for g in range(n_chunks)
    ]
    for cp in copies:
        cp.start()

    NT = x_ref.shape[1]                  # B * H * W   (lane extent)
    HW = H * W                           # 128 (fc1 requires 32 * H * W == 4096)
    B = NT // HW
    C2 = w2_ref.shape[0]                 # conv2 out channels (32)

    # h-edge validity masks from an in-kernel iota (HW is a power of two).
    lane = jax.lax.broadcasted_iota(jnp.int32, (1, NT), 1)
    r = jnp.bitwise_and(lane, HW - 1)               # h*W + w within each image
    mt = (r >= W).astype(jnp.float32)               # h-1 neighbour is valid
    mb = (r < (H - 1) * W).astype(jnp.float32)      # h+1 neighbour is valid

    # conv1: 1 -> 16 channels, (3,1) kernel = 3 lane rolls by W on the VPU.
    x = x_ref[...]                                   # (1, NT)
    xm = pltpu.roll(x, W, 1) * mt                    # x[h-1]
    xp = pltpu.roll(x, NT - W, 1) * mb               # x[h+1]
    w1 = w1_ref[...]                                 # (16, 3)  [out_ch, kh]
    y1 = w1[:, 0:1] * xm + w1[:, 1:2] * x + w1[:, 2:3] * xp + b1_ref[...]
    y1 = jnp.maximum(y1, 0.0)                        # (16, NT)

    # conv2: 16 -> 32 channels as one K=48 MXU matmul (rows of yc = kh*16 + c).
    y1m = pltpu.roll(y1, W, 1) * mt
    y1p = pltpu.roll(y1, NT - W, 1) * mb
    yc = jnp.concatenate([y1m, y1, y1p], axis=0)     # (48, NT)
    y2 = jnp.dot(w2_ref[...], yc,
                 preferred_element_type=jnp.float32) + b2_ref[...]
    y2 = jnp.maximum(y2, 0.0)                        # (32, NT), stays in vregs

    # Flatten into torch's NCHW .view(B, -1) order (feature = c*HW + h*W + w),
    # slicing the live y2 value directly into flat_s (no y2 scratch/reload).
    for b in range(B):
        for c in range(C2):
            flat_s[b:b + 1, c * HW:(c + 1) * HW] = \
                y2[c:c + 1, b * HW:(b + 1) * HW]

    # fc1 as a K-chunked dot: wait on chunk g, multiply it while the later
    # chunks are still streaming in; accumulate in f32 on the MXU.
    w_dtype = wf1_vmem.dtype
    acc = jnp.zeros((B, NOUT1), jnp.float32)
    for g in range(n_chunks):
        copies[g].wait()
        lhs = flat_s[:, g * KC:(g + 1) * KC].astype(w_dtype)   # (B, KC)
        rhs = wf1_vmem[pl.ds(g * KC, KC), :]                   # (KC, 128)
        acc = acc + jnp.dot(lhs, rhs, preferred_element_type=jnp.float32)

    h = jnp.maximum(acc + bf1_ref[...], 0.0)                   # (B, 128)
    o_ref[...] = (jnp.dot(h, wf2_ref[...], preferred_element_type=jnp.float32)
                  + bf2_ref[...])


# --------------------------------------------------------------------------
# One-time weight layout prep (hoisted out of the per-call forward)
# --------------------------------------------------------------------------
def prepare_params(params, fc1_dtype=jnp.bfloat16):
    w1, b1, w2, b2, wf1, bf1, wf2, bf2 = params
    w1p = w1[:, 0, :, 0].astype(jnp.float32)                       # (16, 3)
    b1p = b1.reshape(-1, 1).astype(jnp.float32)                    # (16, 1)
    # (32, 16, 3, 1) -> (32, 48), column index = kh*16 + in_ch (matches yc).
    w2p = jnp.transpose(w2[:, :, :, 0], (0, 2, 1))
    w2p = w2p.reshape(w2.shape[0], -1).astype(jnp.float32)         # (32, 48)
    b2p = b2.reshape(-1, 1).astype(jnp.float32)                    # (32, 1)
    # torch flatten order (c, h, w) == lane order c*H*W + h*W + w, so fc1
    # only needs a transpose.  bf16 storage halves the dominant weight DMA.
    wf1p = wf1.T.astype(fc1_dtype)                                 # (4096, 128)
    bf1p = bf1.reshape(1, -1).astype(jnp.float32)                  # (1, 128)
    wf2p = wf2.T.astype(jnp.float32)                               # (128, nc)
    bf2p = bf2.reshape(1, -1).astype(jnp.float32)                  # (1, nc)
    return (w1p, b1p, w2p, b2p, wf1p, bf1p, wf2p, bf2p)


# --------------------------------------------------------------------------
# Forward wrapper (single pallas_call, no grid: whole problem is ~1-2 MiB)
# --------------------------------------------------------------------------
@jax.jit
def simple_cnn_forward(x_nchw, prepped):
    w1p, b1p, w2p, b2p, wf1p, bf1p, wf2p, bf2p = prepped
    B, C, H, W = x_nchw.shape
    assert C == 1
    HW = H * W
    NT = B * HW
    C2 = w2p.shape[0]
    K, _ = wf1p.shape
    assert C2 * HW == K, "fc1 expects 32*H*W == 4096 input features"
    assert (HW & (HW - 1)) == 0, "H*W must be a power of two (128 here)"
    num_classes = wf2p.shape[1]
    n_chunks = 4
    assert K % n_chunks == 0 and (K // n_chunks) % 128 == 0

    # NCHW (single channel) -> one lane row: lane n = b*H*W + h*W + w.
    x_lanes = x_nchw[:, 0, :, :].reshape(1, NT).astype(jnp.float32)

    vmem = pltpu.MemorySpace.VMEM
    return pl.pallas_call(
        functools.partial(_fused_kernel, H=H, W=W, n_chunks=n_chunks),
        out_shape=jax.ShapeDtypeStruct((B, num_classes), jnp.float32),
        in_specs=[
            pl.BlockSpec(memory_space=vmem),      # x            (1, NT)
            pl.BlockSpec(memory_space=vmem),      # conv1 weight (16, 3)
            pl.BlockSpec(memory_space=vmem),      # conv1 bias   (16, 1)
            pl.BlockSpec(memory_space=vmem),      # conv2 weight (32, 48)
            pl.BlockSpec(memory_space=vmem),      # conv2 bias   (32, 1)
            pl.BlockSpec(memory_space=pl.ANY),    # fc1 weight: HBM, manual DMA
            pl.BlockSpec(memory_space=vmem),      # fc1 bias     (1, 128)
            pl.BlockSpec(memory_space=vmem),      # fc2 weight   (128, nc)
            pl.BlockSpec(memory_space=vmem),      # fc2 bias     (1, nc)
        ],
        out_specs=pl.BlockSpec(memory_space=vmem),
        scratch_shapes=[
            pltpu.VMEM(wf1p.shape, wf1p.dtype),     # fc1 weight landing buffer
            pltpu.VMEM((B, K), jnp.float32),        # flattened activations
            pltpu.SemaphoreType.DMA((n_chunks,)),   # one sem per weight chunk
        ],
    )(x_lanes, w1p, b1p, w2p, b2p, wf1p, bf1p, wf2p, bf2p)


# --------------------------------------------------------------------------
# Pure-JAX f32 reference (independent check of the Pallas implementation)
# --------------------------------------------------------------------------
def _reference(x, params):
    w1, b1, w2, b2, wf1, bf1, wf2, bf2 = params
    dn = ("NCHW", "OIHW", "NCHW")
    y = jax.lax.conv_general_dilated(x, w1, (1, 1), [(1, 1), (0, 0)],
                                     dimension_numbers=dn)
    y = jnp.maximum(y + b1[None, :, None, None], 0.0)
    y = jax.lax.conv_general_dilated(y, w2, (1, 1), [(1, 1), (0, 0)],
                                     dimension_numbers=dn)
    y = jnp.maximum(y + b2[None, :, None, None], 0.0)
    flat = y.reshape(y.shape[0], -1)
    h = jnp.maximum(flat @ wf1.T + bf1, 0.0)
    return h @ wf2.T + bf2


if __name__ == "__main__":
    num_classes = 2
    B, H, W = 2, 16, 8   # 32 * H * W == 4096, as required by fc1

    key = jax.random.PRNGKey(0)
    ks = jax.random.split(key, 9)
    w1 = 0.2 * jax.random.normal(ks[0], (16, 1, 3, 1), jnp.float32)
    b1 = 0.1 * jax.random.normal(ks[1], (16,), jnp.float32)
    w2 = 0.1 * jax.random.normal(ks[2], (32, 16, 3, 1), jnp.float32)
    b2 = 0.1 * jax.random.normal(ks[3], (32,), jnp.float32)
    wf1 = 0.02 * jax.random.normal(ks[4], (128, 4096), jnp.float32)
    bf1 = 0.1 * jax.random.normal(ks[5], (128,), jnp.float32)
    wf2 = 0.1 * jax.random.normal(ks[6], (num_classes, 128), jnp.float32)
    bf2 = 0.1 * jax.random.normal(ks[7], (num_classes,), jnp.float32)
    params = (w1, b1, w2, b2, wf1, bf1, wf2, bf2)

    x = jax.random.normal(ks[8], (B, 1, H, W), jnp.float32)
    ref = np.asarray(_reference(x, params))

    # 1) Strict f32 path: validates conv/flatten/fc layout logic exactly.
    out_f32 = jax.block_until_ready(
        simple_cnn_forward(x, prepare_params(params, jnp.float32)))
    np.testing.assert_allclose(np.asarray(out_f32), ref, rtol=1e-4, atol=1e-4)

    # 2) bf16-fc1 perf path (halves the dominant weight DMA): bf16 rounding of
    #    the K=4096 fc1 weights/activations needs a looser tolerance vs f32.
    out_bf16 = jax.block_until_ready(
        simple_cnn_forward(x, prepare_params(params, jnp.bfloat16)))
    np.testing.assert_allclose(np.asarray(out_bf16), ref, rtol=2e-2, atol=2e-2)

    print("KERNEL_OK")
</pallas_src>

<mosaic_0001>
module attributes {stable_mosaic.version = 11 : i64} {
  func.func @_fused_kernel(%arg0: memref<1x256xf32, #tpu.memory_space<vmem>>, %arg1: memref<16x3xf32, #tpu.memory_space<vmem>>, %arg2: memref<16x1xf32, #tpu.memory_space<vmem>>, %arg3: memref<32x48xf32, #tpu.memory_space<vmem>>, %arg4: memref<32x1xf32, #tpu.memory_space<vmem>>, %arg5: memref<4096x128xf32, #tpu.memory_space<any>>, %arg6: memref<1x128xf32, #tpu.memory_space<vmem>>, %arg7: memref<128x2xf32, #tpu.memory_space<vmem>>, %arg8: memref<1x2xf32, #tpu.memory_space<vmem>>, %arg9: memref<2x2xf32, #tpu.memory_space<vmem>>, %arg10: memref<4096x128xf32, #tpu.memory_space<vmem>>, %arg11: memref<2x4096xf32, #tpu.memory_space<vmem>>, %arg12: memref<4x!tpu.dma_semaphore, #tpu.memory_space<semaphore_mem>>) attributes {dimension_semantics = [], scalar_prefetch = 0 : i64, scratch_operands = 3 : i64, tpu.core_type = #tpu.core_type<tc>} {
    %c0_i32 = arith.constant 0 : i32
    %c0_i32_0 = arith.constant 0 : i32
    %c0_i32_1 = arith.constant 0 : i32
    %0 = tpu.memref_slice %arg5[%c0_i32_0, %c0_i32_1] : memref<4096x128xf32, #tpu.memory_space<any>> -> memref<1024x128xf32, #tpu.memory_space<any>>
    %c0_i32_2 = arith.constant 0 : i32
    %c0_i32_3 = arith.constant 0 : i32
    %1 = tpu.memref_slice %arg10[%c0_i32_2, %c0_i32_3] : memref<4096x128xf32, #tpu.memory_space<vmem>> -> memref<1024x128xf32, #tpu.memory_space<vmem>>
    %2 = tpu.memref_slice %arg12[%c0_i32] : memref<4x!tpu.dma_semaphore, #tpu.memory_space<semaphore_mem>> -> memref<1x!tpu.dma_semaphore, #tpu.memory_space<semaphore_mem>>
    %3 = tpu.memref_squeeze %2 : memref<1x!tpu.dma_semaphore, #tpu.memory_space<semaphore_mem>> -> memref<!tpu.dma_semaphore, #tpu.memory_space<semaphore_mem>>
    tpu.enqueue_dma source(%0 : memref<1024x128xf32, #tpu.memory_space<any>>) target(%1 : memref<1024x128xf32, #tpu.memory_space<vmem>>) target_semaphore(%3 : memref<!tpu.dma_semaphore, #tpu.memory_space<semaphore_mem>>)
    %c1_i32 = arith.constant 1 : i32
    %c1024_i32 = arith.constant 1024 : i32
    %c0_i32_4 = arith.constant 0 : i32
    %4 = tpu.memref_slice %arg5[%c1024_i32, %c0_i32_4] : memref<4096x128xf32, #tpu.memory_space<any>> -> memref<1024x128xf32, #tpu.memory_space<any>>
    %c1024_i32_5 = arith.constant 1024 : i32
    %c0_i32_6 = arith.constant 0 : i32
    %5 = tpu.memref_slice %arg10[%c1024_i32_5, %c0_i32_6] : memref<4096x128xf32, #tpu.memory_space<vmem>> -> memref<1024x128xf32, #tpu.memory_space<vmem>>
    %6 = tpu.memref_slice %arg12[%c1_i32] : memref<4x!tpu.dma_semaphore, #tpu.memory_space<semaphore_mem>> -> memref<1x!tpu.dma_semaphore, #tpu.memory_space<semaphore_mem>>
    %7 = tpu.memref_squeeze %6 : memref<1x!tpu.dma_semaphore, #tpu.memory_space<semaphore_mem>> -> memref<!tpu.dma_semaphore, #tpu.memory_space<semaphore_mem>>
    tpu.enqueue_dma source(%4 : memref<1024x128xf32, #tpu.memory_space<any>>) target(%5 : memref<1024x128xf32, #tpu.memory_space<vmem>>) target_semaphore(%7 : memref<!tpu.dma_semaphore, #tpu.memory_space<semaphore_mem>>)
    %c2_i32 = arith.constant 2 : i32
    %c2048_i32 = arith.constant 2048 : i32
    %c0_i32_7 = arith.constant 0 : i32
    %8 = tpu.memref_slice %arg5[%c2048_i32, %c0_i32_7] : memref<4096x128xf32, #tpu.memory_space<any>> -> memref<1024x128xf32, #tpu.memory_space<any>>
    %c2048_i32_8 = arith.constant 2048 : i32
    %c0_i32_9 = arith.constant 0 : i32
    %9 = tpu.memref_slice %arg10[%c2048_i32_8, %c0_i32_9] : memref<4096x128xf32, #tpu.memory_space<vmem>> -> memref<1024x128xf32, #tpu.memory_space<vmem>>
    %10 = tpu.memref_slice %arg12[%c2_i32] : memref<4x!tpu.dma_semaphore, #tpu.memory_space<semaphore_mem>> -> memref<1x!tpu.dma_semaphore, #tpu.memory_space<semaphore_mem>>
    %11 = tpu.memref_squeeze %10 : memref<1x!tpu.dma_semaphore, #tpu.memory_space<semaphore_mem>> -> memref<!tpu.dma_semaphore, #tpu.memory_space<semaphore_mem>>
    tpu.enqueue_dma source(%8 : memref<1024x128xf32, #tpu.memory_space<any>>) target(%9 : memref<1024x128xf32, #tpu.memory_space<vmem>>) target_semaphore(%11 : memref<!tpu.dma_semaphore, #tpu.memory_space<semaphore_mem>>)
    %c3_i32 = arith.constant 3 : i32
    %c3072_i32 = arith.constant 3072 : i32
    %c0_i32_10 = arith.constant 0 : i32
    %12 = tpu.memref_slice %arg5[%c3072_i32, %c0_i32_10] : memref<4096x128xf32, #tpu.memory_space<any>> -> memref<1024x128xf32, #tpu.memory_space<any>>
    %c3072_i32_11 = arith.constant 3072 : i32
    %c0_i32_12 = arith.constant 0 : i32
    %13 = tpu.memref_slice %arg10[%c3072_i32_11, %c0_i32_12] : memref<4096x128xf32, #tpu.memory_space<vmem>> -> memref<1024x128xf32, #tpu.memory_space<vmem>>
    %14 = tpu.memref_slice %arg12[%c3_i32] : memref<4x!tpu.dma_semaphore, #tpu.memory_space<semaphore_mem>> -> memref<1x!tpu.dma_semaphore, #tpu.memory_space<semaphore_mem>>
    %15 = tpu.memref_squeeze %14 : memref<1x!tpu.dma_semaphore, #tpu.memory_space<semaphore_mem>> -> memref<!tpu.dma_semaphore, #tpu.memory_space<semaphore_mem>>
    tpu.enqueue_dma source(%12 : memref<1024x128xf32, #tpu.memory_space<any>>) target(%13 : memref<1024x128xf32, #tpu.memory_space<vmem>>) target_semaphore(%15 : memref<!tpu.dma_semaphore, #tpu.memory_space<semaphore_mem>>)
    %16 = tpu.iota {dimensions = array<i32: 1>} : vector<1x256xi32>
    %c127_i32 = arith.constant 127 : i32
    %17 = vector.broadcast %c127_i32 : i32 to vector<1x256xi32>
    %18 = arith.andi %16, %17 : vector<1x256xi32>
    %c8_i32 = arith.constant 8 : i32
    %19 = vector.broadcast %c8_i32 : i32 to vector<1x256xi32>
    %20 = arith.cmpi sge, %18, %19 : vector<1x256xi32>
    %21 = arith.extui %20 : vector<1x256xi1> to vector<1x256xi32>
    %22 = arith.sitofp %21 : vector<1x256xi32> to vector<1x256xf32>
    %c120_i32 = arith.constant 120 : i32
    %23 = vector.broadcast %c120_i32 : i32 to vector<1x256xi32>
    %24 = arith.cmpi slt, %18, %23 : vector<1x256xi32>
    %25 = arith.extui %24 : vector<1x256xi1> to vector<1x256xi32>
    %26 = arith.sitofp %25 : vector<1x256xi32> to vector<1x256xf32>
    %c0 = arith.constant 0 : index
    %c0_13 = arith.constant 0 : index
    %27 = vector.load %arg0[%c0, %c0_13] : memref<1x256xf32, #tpu.memory_space<vmem>>, vector<1x256xf32>
    %c8_i32_14 = arith.constant 8 : i32
    %28 = tpu.dynamic_rotate %27 by %c8_i32_14 dim 1 : vector<1x256xf32>, i32 -> vector<1x256xf32>
    %29 = arith.mulf %28, %22 : vector<1x256xf32>
    %c248_i32 = arith.constant 248 : i32
    %30 = tpu.dynamic_rotate %27 by %c248_i32 dim 1 : vector<1x256xf32>, i32 -> vector<1x256xf32>
    %31 = arith.mulf %30, %26 : vector<1x256xf32>
    %c0_15 = arith.constant 0 : index
    %c0_16 = arith.constant 0 : index
    %32 = vector.load %arg1[%c0_15, %c0_16] : memref<16x3xf32, #tpu.memory_space<vmem>>, vector<16x3xf32>
    %33 = vector.extract_strided_slice %32 {offsets = [0, 0], sizes = [16, 1], strides = [1, 1]} : vector<16x3xf32> to vector<16x1xf32>
    %34 = vector.broadcast %33 : vector<16x1xf32> to vector<16x256xf32>
    %35 = vector.broadcast %29 : vector<1x256xf32> to vector<16x256xf32>
    %36 = arith.mulf %34, %35 : vector<16x256xf32>
    %37 = vector.extract_strided_slice %32 {offsets = [0, 1], sizes = [16, 1], strides = [1, 1]} : vector<16x3xf32> to vector<16x1xf32>
    %38 = vector.broadcast %37 : vector<16x1xf32> to vector<16x256xf32>
    %39 = vector.broadcast %27 : vector<1x256xf32> to vector<16x256xf32>
    %40 = arith.mulf %38, %39 : vector<16x256xf32>
    %41 = arith.addf %36, %40 : vector<16x256xf32>
    %42 = vector.extract_strided_slice %32 {offsets = [0, 2], sizes = [16, 1], strides = [1, 1]} : vector<16x3xf32> to vector<16x1xf32>
    %43 = vector.broadcast %42 : vector<16x1xf32> to vector<16x256xf32>
    %44 = vector.broadcast %31 : vector<1x256xf32> to vector<16x256xf32>
    %45 = arith.mulf %43, %44 : vector<16x256xf32>
    %46 = arith.addf %41, %45 : vector<16x256xf32>
    %c0_17 = arith.constant 0 : index
    %c0_18 = arith.constant 0 : index
    %47 = vector.load %arg2[%c0_17, %c0_18] : memref<16x1xf32, #tpu.memory_space<vmem>>, vector<16x1xf32>
    %48 = vector.broadcast %47 : vector<16x1xf32> to vector<16x256xf32>
    %49 = arith.addf %46, %48 : vector<16x256xf32>
    %cst = arith.constant 0.000000e+00 : f32
    %50 = vector.broadcast %cst : f32 to vector<16x256xf32>
    %51 = arith.maximumf %49, %50 : vector<16x256xf32>
    %c8_i32_19 = arith.constant 8 : i32
    %52 = tpu.dynamic_rotate %51 by %c8_i32_19 dim 1 : vector<16x256xf32>, i32 -> vector<16x256xf32>
    %53 = vector.broadcast %22 : vector<1x256xf32> to vector<16x256xf32>
    %54 = arith.mulf %52, %53 : vector<16x256xf32>
    %c248_i32_20 = arith.constant 248 : i32
    %55 = tpu.dynamic_rotate %51 by %c248_i32_20 dim 1 : vector<16x256xf32>, i32 -> vector<16x256xf32>
    %56 = vector.broadcast %26 : vector<1x256xf32> to vector<16x256xf32>
    %57 = arith.mulf %55, %56 : vector<16x256xf32>
    %58 = tpu.concatenate %54, %51, %57 in 0 : vector<16x256xf32>, vector<16x256xf32>, vector<16x256xf32> -> vector<48x256xf32>
    %c0_21 = arith.constant 0 : index
    %c0_22 = arith.constant 0 : index
    %59 = vector.load %arg3[%c0_21, %c0_22] : memref<32x48xf32, #tpu.memory_space<vmem>>, vector<32x48xf32>
    %cst_23 = arith.constant dense<0.000000e+00> : vector<32x256xf32>
    %60 = tpu.matmul %59, %58, %cst_23 {dimension_numbers = #tpu.dot_dimension_numbers<[1], [0], [0], [1], [0, 0, 1, 1], [], []>} : vector<32x48xf32>, vector<48x256xf32>, vector<32x256xf32> -> vector<32x256xf32>
    %c0_24 = arith.constant 0 : index
    %c0_25 = arith.constant 0 : index
    %61 = vector.load %arg4[%c0_24, %c0_25] : memref<32x1xf32, #tpu.memory_space<vmem>>, vector<32x1xf32>
    %62 = vector.broadcast %61 : vector<32x1xf32> to vector<32x256xf32>
    %63 = arith.addf %60, %62 : vector<32x256xf32>
    %cst_26 = arith.constant 0.000000e+00 : f32
    %64 = vector.broadcast %cst_26 : f32 to vector<32x256xf32>
    %65 = arith.maximumf %63, %64 : vector<32x256xf32>
    %66 = vector.extract_strided_slice %65 {offsets = [0, 0], sizes = [1, 128], strides = [1, 1]} : vector<32x256xf32> to vector<1x128xf32>
    %c0_27 = arith.constant 0 : index
    %c0_28 = arith.constant 0 : index
    %67 = vector.load %arg11[%c0_27, %c0_28] : memref<2x4096xf32, #tpu.memory_space<vmem>>, vector<1x128xf32>
    tpu.vector_store %arg11[%c0_27, %c0_28], %66 {strides = array<i32>} : memref<2x4096xf32, #tpu.memory_space<vmem>>, vector<1x128xf32>,
    %68 = vector.extract_strided_slice %65 {offsets = [1, 0], sizes = [1, 128], strides = [1, 1]} : vector<32x256xf32> to vector<1x128xf32>
    %c0_29 = arith.constant 0 : index
    %c128 = arith.constant 128 : index
    %69 = vector.load %arg11[%c0_29, %c128] : memref<2x4096xf32, #tpu.memory_space<vmem>>, vector<1x128xf32>
    tpu.vector_store %arg11[%c0_29, %c128], %68 {strides = array<i32>} : memref<2x4096xf32, #tpu.memory_space<vmem>>, vector<1x128xf32>,
    %70 = vector.extract_strided_slice %65 {offsets = [2, 0], sizes = [1, 128], strides = [1, 1]} : vector<32x256xf32> to vector<1x128xf32>
    %c0_30 = arith.constant 0 : index
    %c256 = arith.constant 256 : index
    %71 = vector.load %arg11[%c0_30, %c256] : memref<2x4096xf32, #tpu.memory_space<vmem>>, vector<1x128xf32>
    tpu.vector_store %arg11[%c0_30, %c256], %70 {strides = array<i32>} : memref<2x4096xf32, #tpu.memory_space<vmem>>, vector<1x128xf32>,
    %72 = vector.extract_strided_slice %65 {offsets = [3, 0], sizes = [1, 128], strides = [1, 1]} : vector<32x256xf32> to vector<1x128xf32>
    %c0_31 = arith.constant 0 : index
    %c384 = arith.constant 384 : index
    %73 = vector.load %arg11[%c0_31, %c384] : memref<2x4096xf32, #tpu.memory_space<vmem>>, vector<1x128xf32>
    tpu.vector_store %arg11[%c0_31, %c384], %72 {strides = array<i32>} : memref<2x4096xf32, #tpu.memory_space<vmem>>, vector<1x128xf32>,
    %74 = vector.extract_strided_slice %65 {offsets = [4, 0], sizes = [1, 128], strides = [1, 1]} : vector<32x256xf32> to vector<1x128xf32>
    %c0_32 = arith.constant 0 : index
    %c512 = arith.constant 512 : index
    %75 = vector.load %arg11[%c0_32, %c512] : memref<2x4096xf32, #tpu.memory_space<vmem>>, vector<1x128xf32>
    tpu.vector_store %arg11[%c0_32, %c512], %74 {strides = array<i32>} : memref<2x4096xf32, #tpu.memory_space<vmem>>, vector<1x128xf32>,
    %76 = vector.extract_strided_slice %65 {offsets = [5, 0], sizes = [1, 128], strides = [1, 1]} : vector<32x256xf32> to vector<1x128xf32>
    %c0_33 = arith.constant 0 : index
    %c640 = arith.constant 640 : index
    %77 = vector.load %arg11[%c0_33, %c640] : memref<2x4096xf32, #tpu.memory_space<vmem>>, vector<1x128xf32>
    tpu.vector_store %arg11[%c0_33, %c640], %76 {strides = array<i32>} : memref<2x4096xf32, #tpu.memory_space<vmem>>, vector<1x128xf32>,
    %78 = vector.extract_strided_slice %65 {offsets = [6, 0], sizes = [1, 128], strides = [1, 1]} : vector<32x256xf32> to vector<1x128xf32>
    %c0_34 = arith.constant 0 : index
    %c768 = arith.constant 768 : index
    %79 = vector.load %arg11[%c0_34, %c768] : memref<2x4096xf32, #tpu.memory_space<vmem>>, vector<1x128xf32>
    tpu.vector_store %arg11[%c0_34, %c768], %78 {strides = array<i32>} : memref<2x4096xf32, #tpu.memory_space<vmem>>, vector<1x128xf32>,
    %80 = vector.extract_strided_slice %65 {offsets = [7, 0], sizes = [1, 128], strides = [1, 1]} : vector<32x256xf32> to vector<1x128xf32>
    %c0_35 = arith.constant 0 : index
    %c896 = arith.constant 896 : index
    %81 = vector.load %arg11[%c0_35, %c896] : memref<2x4096xf32, #tpu.memory_space<vmem>>, vector<1x128xf32>
    tpu.vector_store %arg11[%c0_35, %c896], %80 {strides = array<i32>} : memref<2x4096xf32, #tpu.memory_space<vmem>>, vector<1x128xf32>,
    %82 = vector.extract_strided_slice %65 {offsets = [8, 0], sizes = [1, 128], strides = [1, 1]} : vector<32x256xf32> to vector<1x128xf32>
    %c0_36 = arith.constant 0 : index
    %c1024 = arith.constant 1024 : index
    %83 = vector.load %arg11[%c0_36, %c1024] : memref<2x4096xf32, #tpu.memory_space<vmem>>, vector<1x128xf32>
    tpu.vector_store %arg11[%c0_36, %c1024], %82 {strides = array<i32>} : memref<2x4096xf32, #tpu.memory_space<vmem>>, vector<1x128xf32>,
    %84 = vector.extract_strided_slice %65 {offsets = [9, 0], sizes = [1, 128], strides = [1, 1]} : vector<32x256xf32> to vector<1x128xf32>
    %c0_37 = arith.constant 0 : index
    %c1152 = arith.constant 1152 : index
    %85 = vector.load %arg11[%c0_37, %c1152] : memref<2x4096xf32, #tpu.memory_space<vmem>>, vector<1x128xf32>
    tpu.vector_store %arg11[%c0_37, %c1152], %84 {strides = array<i32>} : memref<2x4096xf32, #tpu.memory_space<vmem>>, vector<1x128xf32>,
    %86 = vector.extract_strided_slice %65 {offsets = [10, 0], sizes = [1, 128], strides = [1, 1]} : vector<32x256xf32> to vector<1x128xf32>
    %c0_38 = arith.constant 0 : index
    %c1280 = arith.constant 1280 : index
    %87 = vector.load %arg11[%c0_38, %c1280] : memref<2x4096xf32, #tpu.memory_space<vmem>>, vector<1x128xf32>
    tpu.vector_store %arg11[%c0_38, %c1280], %86 {strides = array<i32>} : memref<2x4096xf32, #tpu.memory_space<vmem>>, vector<1x128xf32>,
    %88 = vector.extract_strided_slice %65 {offsets = [11, 0], sizes = [1, 128], strides = [1, 1]} : vector<32x256xf32> to vector<1x128xf32>
    %c0_39 = arith.constant 0 : index
    %c1408 = arith.constant 1408 : index
    %89 = vector.load %arg11[%c0_39, %c1408] : memref<2x4096xf32, #tpu.memory_space<vmem>>, vector<1x128xf32>
    tpu.vector_store %arg11[%c0_39, %c1408], %88 {strides = array<i32>} : memref<2x4096xf32, #tpu.memory_space<vmem>>, vector<1x128xf32>,
    %90 = vector.extract_strided_slice %65 {offsets = [12, 0], sizes = [1, 128], strides = [1, 1]} : vector<32x256xf32> to vector<1x128xf32>
    %c0_40 = arith.constant 0 : index
    %c1536 = arith.constant 1536 : index
    %91 = vector.load %arg11[%c0_40, %c1536] : memref<2x4096xf32, #tpu.memory_space<vmem>>, vector<1x128xf32>
    tpu.vector_store %arg11[%c0_40, %c1536], %90 {strides = array<i32>} : memref<2x4096xf32, #tpu.memory_space<vmem>>, vector<1x128xf32>,
    %92 = vector.extract_strided_slice %65 {offsets = [13, 0], sizes = [1, 128], strides = [1, 1]} : vector<32x256xf32> to vector<1x128xf32>
    %c0_41 = arith.constant 0 : index
    %c1664 = arith.constant 1664 : index
    %93 = vector.load %arg11[%c0_41, %c1664] : memref<2x4096xf32, #tpu.memory_space<vmem>>, vector<1x128xf32>
    tpu.vector_store %arg11[%c0_41, %c1664], %92 {strides = array<i32>} : memref<2x4096xf32, #tpu.memory_space<vmem>>, vector<1x128xf32>,
    %94 = vector.extract_strided_slice %65 {offsets = [14, 0], sizes = [1, 128], strides = [1, 1]} : vector<32x256xf32> to vector<1x128xf32>
    %c0_42 = arith.constant 0 : index
    %c1792 = arith.constant 1792 : index
    %95 = vector.load %arg11[%c0_42, %c1792] : memref<2x4096xf32, #tpu.memory_space<vmem>>, vector<1x128xf32>
    tpu.vector_store %arg11[%c0_42, %c1792], %94 {strides = array<i32>} : memref<2x4096xf32, #tpu.memory_space<vmem>>, vector<1x128xf32>,
    %96 = vector.extract_strided_slice %65 {offsets = [15, 0], sizes = [1, 128], strides = [1, 1]} : vector<32x256xf32> to vector<1x128xf32>
    %c0_43 = arith.constant 0 : index
    %c1920 = arith.constant 1920 : index
    %97 = vector.load %arg11[%c0_43, %c1920] : memref<2x4096xf32, #tpu.memory_space<vmem>>, vector<1x128xf32>
    tpu.vector_store %arg11[%c0_43, %c1920], %96 {strides = array<i32>} : memref<2x4096xf32, #tpu.memory_space<vmem>>, vector<1x128xf32>,
    %98 = vector.extract_strided_slice %65 {offsets = [16, 0], sizes = [1, 128], strides = [1, 1]} : vector<32x256xf32> to vector<1x128xf32>
    %c0_44 = arith.constant 0 : index
    %c2048 = arith.constant 2048 : index
    %99 = vector.load %arg11[%c0_44, %c2048] : memref<2x4096xf32, #tpu.memory_space<vmem>>, vector<1x128xf32>
    tpu.vector_store %arg11[%c0_44, %c2048], %98 {strides = array<i32>} : memref<2x4096xf32, #tpu.memory_space<vmem>>, vector<1x128xf32>,
    %100 = vector.extract_strided_slice %65 {offsets = [17, 0], sizes = [1, 128], strides = [1, 1]} : vector<32x256xf32> to vector<1x128xf32>
    %c0_45 = arith.constant 0 : index
    %c2176 = arith.constant 2176 : index
    %101 = vector.load %arg11[%c0_45, %c2176] : memref<2x4096xf32, #tpu.memory_space<vmem>>, vector<1x128xf32>
    tpu.vector_store %arg11[%c0_45, %c2176], %100 {strides = array<i32>} : memref<2x4096xf32, #tpu.memory_space<vmem>>, vector<1x128xf32>,
    %102 = vector.extract_strided_slice %65 {offsets = [18, 0], sizes = [1, 128], strides = [1, 1]} : vector<32x256xf32> to vector<1x128xf32>
    %c0_46 = arith.constant 0 : index
    %c2304 = arith.constant 2304 : index
    %103 = vector.load %arg11[%c0_46, %c2304] : memref<2x4096xf32, #tpu.memory_space<vmem>>, vector<1x128xf32>
    tpu.vector_store %arg11[%c0_46, %c2304], %102 {strides = array<i32>} : memref<2x4096xf32, #tpu.memory_space<vmem>>, vector<1x128xf32>,
    %104 = vector.extract_strided_slice %65 {offsets = [19, 0], sizes = [1, 128], strides = [1, 1]} : vector<32x256xf32> to vector<1x128xf32>
    %c0_47 = arith.constant 0 : index
    %c2432 = arith.constant 2432 : index
    %105 = vector.load %arg11[%c0_47, %c2432] : memref<2x4096xf32, #tpu.memory_space<vmem>>, vector<1x128xf32>
    tpu.vector_store %arg11[%c0_47, %c2432], %104 {strides = array<i32>} : memref<2x4096xf32, #tpu.memory_space<vmem>>, vector<1x128xf32>,
    %106 = vector.extract_strided_slice %65 {offsets = [20, 0], sizes = [1, 128], strides = [1, 1]} : vector<32x256xf32> to vector<1x128xf32>
    %c0_48 = arith.constant 0 : index
    %c2560 = arith.constant 2560 : index
    %107 = vector.load %arg11[%c0_48, %c2560] : memref<2x4096xf32, #tpu.memory_space<vmem>>, vector<1x128xf32>
    tpu.vector_store %arg11[%c0_48, %c2560], %106 {strides = array<i32>} : memref<2x4096xf32, #tpu.memory_space<vmem>>, vector<1x128xf32>,
    %108 = vector.extract_strided_slice %65 {offsets = [21, 0], sizes = [1, 128], strides = [1, 1]} : vector<32x256xf32> to vector<1x128xf32>
    %c0_49 = arith.constant 0 : index
    %c2688 = arith.constant 2688 : index
    %109 = vector.load %arg11[%c0_49, %c2688] : memref<2x4096xf32, #tpu.memory_space<vmem>>, vector<1x128xf32>
    tpu.vector_store %arg11[%c0_49, %c2688], %108 {strides = array<i32>} : memref<2x4096xf32, #tpu.memory_space<vmem>>, vector<1x128xf32>,
    %110 = vector.extract_strided_slice %65 {offsets = [22, 0], sizes = [1, 128], strides = [1, 1]} : vector<32x256xf32> to vector<1x128xf32>
    %c0_50 = arith.constant 0 : index
    %c2816 = arith.constant 2816 : index
    %111 = vector.load %arg11[%c0_50, %c2816] : memref<2x4096xf32, #tpu.memory_space<vmem>>, vector<1x128xf32>
    tpu.vector_store %arg11[%c0_50, %c2816], %110 {strides = array<i32>} : memref<2x4096xf32, #tpu.memory_space<vmem>>, vector<1x128xf32>,
    %112 = vector.extract_strided_slice %65 {offsets = [23, 0], sizes = [1, 128], strides = [1, 1]} : vector<32x256xf32> to vector<1x128xf32>
    %c0_51 = arith.constant 0 : index
    %c2944 = arith.constant 2944 : index
    %113 = vector.load %arg11[%c0_51, %c2944] : memref<2x4096xf32, #tpu.memory_space<vmem>>, vector<1x128xf32>
    tpu.vector_store %arg11[%c0_51, %c2944], %112 {strides = array<i32>} : memref<2x4096xf32, #tpu.memory_space<vmem>>, vector<1x128xf32>,
    %114 = vector.extract_strided_slice %65 {offsets = [24, 0], sizes = [1, 128], strides = [1, 1]} : vector<32x256xf32> to vector<1x128xf32>
    %c0_52 = arith.constant 0 : index
    %c3072 = arith.constant 3072 : index
    %115 = vector.load %arg11[%c0_52, %c3072] : memref<2x4096xf32, #tpu.memory_space<vmem>>, vector<1x128xf32>
    tpu.vector_store %arg11[%c0_52, %c3072], %114 {strides = array<i32>} : memref<2x4096xf32, #tpu.memory_space<vmem>>, vector<1x128xf32>,
    %116 = vector.extract_strided_slice %65 {offsets = [25, 0], sizes = [1, 128], strides = [1, 1]} : vector<32x256xf32> to vector<1x128xf32>
    %c0_53 = arith.constant 0 : index
    %c3200 = arith.constant 3200 : index
    %117 = vector.load %arg11[%c0_53, %c3200] : memref<2x4096xf32, #tpu.memory_space<vmem>>, vector<1x128xf32>
    tpu.vector_store %arg11[%c0_53, %c3200], %116 {strides = array<i32>} : memref<2x4096xf32, #tpu.memory_space<vmem>>, vector<1x128xf32>,
    %118 = vector.extract_strided_slice %65 {offsets = [26, 0], sizes = [1, 128], strides = [1, 1]} : vector<32x256xf32> to vector<1x128xf32>
    %c0_54 = arith.constant 0 : index
    %c3328 = arith.constant 3328 : index
    %119 = vector.load %arg11[%c0_54, %c3328] : memref<2x4096xf32, #tpu.memory_space<vmem>>, vector<1x128xf32>
    tpu.vector_store %arg11[%c0_54, %c3328], %118 {strides = array<i32>} : memref<2x4096xf32, #tpu.memory_space<vmem>>, vector<1x128xf32>,
    %120 = vector.extract_strided_slice %65 {offsets = [27, 0], sizes = [1, 128], strides = [1, 1]} : vector<32x256xf32> to vector<1x128xf32>
    %c0_55 = arith.constant 0 : index
    %c3456 = arith.constant 3456 : index
    %121 = vector.load %arg11[%c0_55, %c3456] : memref<2x4096xf32, #tpu.memory_space<vmem>>, vector<1x128xf32>
    tpu.vector_store %arg11[%c0_55, %c3456], %120 {strides = array<i32>} : memref<2x4096xf32, #tpu.memory_space<vmem>>, vector<1x128xf32>,
    %122 = vector.extract_strided_slice %65 {offsets = [28, 0], sizes = [1, 128], strides = [1, 1]} : vector<32x256xf32> to vector<1x128xf32>
    %c0_56 = arith.constant 0 : index
    %c3584 = arith.constant 3584 : index
    %123 = vector.load %arg11[%c0_56, %c3584] : memref<2x4096xf32, #tpu.memory_space<vmem>>, vector<1x128xf32>
    tpu.vector_store %arg11[%c0_56, %c3584], %122 {strides = array<i32>} : memref<2x4096xf32, #tpu.memory_space<vmem>>, vector<1x128xf32>,
    %124 = vector.extract_strided_slice %65 {offsets = [29, 0], sizes = [1, 128], strides = [1, 1]} : vector<32x256xf32> to vector<1x128xf32>
    %c0_57 = arith.constant 0 : index
    %c3712 = arith.constant 3712 : index
    %125 = vector.load %arg11[%c0_57, %c3712] : memref<2x4096xf32, #tpu.memory_space<vmem>>, vector<1x128xf32>
    tpu.vector_store %arg11[%c0_57, %c3712], %124 {strides = array<i32>} : memref<2x4096xf32, #tpu.memory_space<vmem>>, vector<1x128xf32>,
    %126 = vector.extract_strided_slice %65 {offsets = [30, 0], sizes = [1, 128], strides = [1, 1]} : vector<32x256xf32> to vector<1x128xf32>
    %c0_58 = arith.constant 0 : index
    %c3840 = arith.constant 3840 : index
    %127 = vector.load %arg11[%c0_58, %c3840] : memref<2x4096xf32, #tpu.memory_space<vmem>>, vector<1x128xf32>
    tpu.vector_store %arg11[%c0_58, %c3840], %126 {strides = array<i32>} : memref<2x4096xf32, #tpu.memory_space<vmem>>, vector<1x128xf32>,
    %128 = vector.extract_strided_slice %65 {offsets = [31, 0], sizes = [1, 128], strides = [1, 1]} : vector<32x256xf32> to vector<1x128xf32>
    %c0_59 = arith.constant 0 : index
    %c3968 = arith.constant 3968 : index
    %129 = vector.load %arg11[%c0_59, %c3968] : memref<2x4096xf32, #tpu.memory_space<vmem>>, vector<1x128xf32>
    tpu.vector_store %arg11[%c0_59, %c3968], %128 {strides = array<i32>} : memref<2x4096xf32, #tpu.memory_space<vmem>>, vector<1x128xf32>,
    %130 = vector.extract_strided_slice %65 {offsets = [0, 128], sizes = [1, 128], strides = [1, 1]} : vector<32x256xf32> to vector<1x128xf32>
    %c1 = arith.constant 1 : index
    %c0_60 = arith.constant 0 : index
    %131 = vector.load %arg11[%c1, %c0_60] : memref<2x4096xf32, #tpu.memory_space<vmem>>, vector<1x128xf32>
    tpu.vector_store %arg11[%c1, %c0_60], %130 {strides = array<i32>} : memref<2x4096xf32, #tpu.memory_space<vmem>>, vector<1x128xf32>,
    %132 = vector.extract_strided_slice %65 {offsets = [1, 128], sizes = [1, 128], strides = [1, 1]} : vector<32x256xf32> to vector<1x128xf32>
    %c1_61 = arith.constant 1 : index
    %c128_62 = arith.constant 128 : index
    %133 = vector.load %arg11[%c1_61, %c128_62] : memref<2x4096xf32, #tpu.memory_space<vmem>>, vector<1x128xf32>
    tpu.vector_store %arg11[%c1_61, %c128_62], %132 {strides = array<i32>} : memref<2x4096xf32, #tpu.memory_space<vmem>>, vector<1x128xf32>,
    %134 = vector.extract_strided_slice %65 {offsets = [2, 128], sizes = [1, 128], strides = [1, 1]} : vector<32x256xf32> to vector<1x128xf32>
    %c1_63 = arith.constant 1 : index
    %c256_64 = arith.constant 256 : index
    %135 = vector.load %arg11[%c1_63, %c256_64] : memref<2x4096xf32, #tpu.memory_space<vmem>>, vector<1x128xf32>
    tpu.vector_store %arg11[%c1_63, %c256_64], %134 {strides = array<i32>} : memref<2x4096xf32, #tpu.memory_space<vmem>>, vector<1x128xf32>,
    %136 = vector.extract_strided_slice %65 {offsets = [3, 128], sizes = [1, 128], strides = [1, 1]} : vector<32x256xf32> to vector<1x128xf32>
    %c1_65 = arith.constant 1 : index
    %c384_66 = arith.constant 384 : index
    %137 = vector.load %arg11[%c1_65, %c384_66] : memref<2x4096xf32, #tpu.memory_space<vmem>>, vector<1x128xf32>
    tpu.vector_store %arg11[%c1_65, %c384_66], %136 {strides = array<i32>} : memref<2x4096xf32, #tpu.memory_space<vmem>>, vector<1x128xf32>,
    %138 = vector.extract_strided_slice %65 {offsets = [4, 128], sizes = [1, 128], strides = [1, 1]} : vector<32x256xf32> to vector<1x128xf32>
    %c1_67 = arith.constant 1 : index
    %c512_68 = arith.constant 512 : index
    %139 = vector.load %arg11[%c1_67, %c512_68] : memref<2x4096xf32, #tpu.memory_space<vmem>>, vector<1x128xf32>
    tpu.vector_store %arg11[%c1_67, %c512_68], %138 {strides = array<i32>} : memref<2x4096xf32, #tpu.memory_space<vmem>>, vector<1x128xf32>,
    %140 = vector.extract_strided_slice %65 {offsets = [5, 128], sizes = [1, 128], strides = [1, 1]} : vector<32x256xf32> to vector<1x128xf32>
    %c1_69 = arith.constant 1 : index
    %c640_70 = arith.constant 640 : index
    %141 = vector.load %arg11[%c1_69, %c640_70] : memref<2x4096xf32, #tpu.memory_space<vmem>>, vector<1x128xf32>
    tpu.vector_store %arg11[%c1_69, %c640_70], %140 {strides = array<i32>} : memref<2x4096xf32, #tpu.memory_space<vmem>>, vector<1x128xf32>,
    %142 = vector.extract_strided_slice %65 {offsets = [6, 128], sizes = [1, 128], strides = [1, 1]} : vector<32x256xf32> to vector<1x128xf32>
    %c1_71 = arith.constant 1 : index
    %c768_72 = arith.constant 768 : index
    %143 = vector.load %arg11[%c1_71, %c768_72] : memref<2x4096xf32, #tpu.memory_space<vmem>>, vector<1x128xf32>
    tpu.vector_store %arg11[%c1_71, %c768_72], %142 {strides = array<i32>} : memref<2x4096xf32, #tpu.memory_space<vmem>>, vector<1x128xf32>,
    %144 = vector.extract_strided_slice %65 {offsets = [7, 128], sizes = [1, 128], strides = [1, 1]} : vector<32x256xf32> to vector<1x128xf32>
    %c1_73 = arith.constant 1 : index
    %c896_74 = arith.constant 896 : index
    %145 = vector.load %arg11[%c1_73, %c896_74] : memref<2x4096xf32, #tpu.memory_space<vmem>>, vector<1x128xf32>
    tpu.vector_store %arg11[%c1_73, %c896_74], %144 {strides = array<i32>} : memref<2x4096xf32, #tpu.memory_space<vmem>>, vector<1x128xf32>,
    %146 = vector.extract_strided_slice %65 {offsets = [8, 128], sizes = [1, 128], strides = [1, 1]} : vector<32x256xf32> to vector<1x128xf32>
    %c1_75 = arith.constant 1 : index
    %c1024_76 = arith.constant 1024 : index
    %147 = vector.load %arg11[%c1_75, %c1024_76] : memref<2x4096xf32, #tpu.memory_space<vmem>>, vector<1x128xf32>
    tpu.vector_store %arg11[%c1_75, %c1024_76], %146 {strides = array<i32>} : memref<2x4096xf32, #tpu.memory_space<vmem>>, vector<1x128xf32>,
    %148 = vector.extract_strided_slice %65 {offsets = [9, 128], sizes = [1, 128], strides = [1, 1]} : vector<32x256xf32> to vector<1x128xf32>
    %c1_77 = arith.constant 1 : index
    %c1152_78 = arith.constant 1152 : index
    %149 = vector.load %arg11[%c1_77, %c1152_78] : memref<2x4096xf32, #tpu.memory_space<vmem>>, vector<1x128xf32>
    tpu.vector_store %arg11[%c1_77, %c1152_78], %148 {strides = array<i32>} : memref<2x4096xf32, #tpu.memory_space<vmem>>, vector<1x128xf32>,
    %150 = vector.extract_strided_slice %65 {offsets = [10, 128], sizes = [1, 128], strides = [1, 1]} : vector<32x256xf32> to vector<1x128xf32>
    %c1_79 = arith.constant 1 : index
    %c1280_80 = arith.constant 1280 : index
    %151 = vector.load %arg11[%c1_79, %c1280_80] : memref<2x4096xf32, #tpu.memory_space<vmem>>, vector<1x128xf32>
    tpu.vector_store %arg11[%c1_79, %c1280_80], %150 {strides = array<i32>} : memref<2x4096xf32, #tpu.memory_space<vmem>>, vector<1x128xf32>,
    %152 = vector.extract_strided_slice %65 {offsets = [11, 128], sizes = [1, 128], strides = [1, 1]} : vector<32x256xf32> to vector<1x128xf32>
    %c1_81 = arith.constant 1 : index
    %c1408_82 = arith.constant 1408 : index
    %153 = vector.load %arg11[%c1_81, %c1408_82] : memref<2x4096xf32, #tpu.memory_space<vmem>>, vector<1x128xf32>
    tpu.vector_store %arg11[%c1_81, %c1408_82], %152 {strides = array<i32>} : memref<2x4096xf32, #tpu.memory_space<vmem>>, vector<1x128xf32>,
    %154 = vector.extract_strided_slice %65 {offsets = [12, 128], sizes = [1, 128], strides = [1, 1]} : vector<32x256xf32> to vector<1x128xf32>
    %c1_83 = arith.constant 1 : index
    %c1536_84 = arith.constant 1536 : index
    %155 = vector.load %arg11[%c1_83, %c1536_84] : memref<2x4096xf32, #tpu.memory_space<vmem>>, vector<1x128xf32>
    tpu.vector_store %arg11[%c1_83, %c1536_84], %154 {strides = array<i32>} : memref<2x4096xf32, #tpu.memory_space<vmem>>, vector<1x128xf32>,
    %156 = vector.extract_strided_slice %65 {offsets = [13, 128], sizes = [1, 128], strides = [1, 1]} : vector<32x256xf32> to vector<1x128xf32>
    %c1_85 = arith.constant 1 : index
    %c1664_86 = arith.constant 1664 : index
    %157 = vector.load %arg11[%c1_85, %c1664_86] : memref<2x4096xf32, #tpu.memory_space<vmem>>, vector<1x128xf32>
    tpu.vector_store %arg11[%c1_85, %c1664_86], %156 {strides = array<i32>} : memref<2x4096xf32, #tpu.memory_space<vmem>>, vector<1x128xf32>,
    %158 = vector.extract_strided_slice %65 {offsets = [14, 128], sizes = [1, 128], strides = [1, 1]} : vector<32x256xf32> to vector<1x128xf32>
    %c1_87 = arith.constant 1 : index
    %c1792_88 = arith.constant 1792 : index
    %159 = vector.load %arg11[%c1_87, %c1792_88] : memref<2x4096xf32, #tpu.memory_space<vmem>>, vector<1x128xf32>
    tpu.vector_store %arg11[%c1_87, %c1792_88], %158 {strides = array<i32>} : memref<2x4096xf32, #tpu.memory_space<vmem>>, vector<1x128xf32>,
    %160 = vector.extract_strided_slice %65 {offsets = [15, 128], sizes = [1, 128], strides = [1, 1]} : vector<32x256xf32> to vector<1x128xf32>
    %c1_89 = arith.constant 1 : index
    %c1920_90 = arith.constant 1920 : index
    %161 = vector.load %arg11[%c1_89, %c1920_90] : memref<2x4096xf32, #tpu.memory_space<vmem>>, vector<1x128xf32>
    tpu.vector_store %arg11[%c1_89, %c1920_90], %160 {strides = array<i32>} : memref<2x4096xf32, #tpu.memory_space<vmem>>, vector<1x128xf32>,
    %162 = vector.extract_strided_slice %65 {offsets = [16, 128], sizes = [1, 128], strides = [1, 1]} : vector<32x256xf32> to vector<1x128xf32>
    %c1_91 = arith.constant 1 : index
    %c2048_92 = arith.constant 2048 : index
    %163 = vector.load %arg11[%c1_91, %c2048_92] : memref<2x4096xf32, #tpu.memory_space<vmem>>, vector<1x128xf32>
    tpu.vector_store %arg11[%c1_91, %c2048_92], %162 {strides = array<i32>} : memref<2x4096xf32, #tpu.memory_space<vmem>>, vector<1x128xf32>,
    %164 = vector.extract_strided_slice %65 {offsets = [17, 128], sizes = [1, 128], strides = [1, 1]} : vector<32x256xf32> to vector<1x128xf32>
    %c1_93 = arith.constant 1 : index
    %c2176_94 = arith.constant 2176 : index
    %165 = vector.load %arg11[%c1_93, %c2176_94] : memref<2x4096xf32, #tpu.memory_space<vmem>>, vector<1x128xf32>
    tpu.vector_store %arg11[%c1_93, %c2176_94], %164 {strides = array<i32>} : memref<2x4096xf32, #tpu.memory_space<vmem>>, vector<1x128xf32>,
    %166 = vector.extract_strided_slice %65 {offsets = [18, 128], sizes = [1, 128], strides = [1, 1]} : vector<32x256xf32> to vector<1x128xf32>
    %c1_95 = arith.constant 1 : index
    %c2304_96 = arith.constant 2304 : index
    %167 = vector.load %arg11[%c1_95, %c2304_96] : memref<2x4096xf32, #tpu.memory_space<vmem>>, vector<1x128xf32>
    tpu.vector_store %arg11[%c1_95, %c2304_96], %166 {strides = array<i32>} : memref<2x4096xf32, #tpu.memory_space<vmem>>, vector<1x128xf32>,
    %168 = vector.extract_strided_slice %65 {offsets = [19, 128], sizes = [1, 128], strides = [1, 1]} : vector<32x256xf32> to vector<1x128xf32>
    %c1_97 = arith.constant 1 : index
    %c2432_98 = arith.constant 2432 : index
    %169 = vector.load %arg11[%c1_97, %c2432_98] : memref<2x4096xf32, #tpu.memory_space<vmem>>, vector<1x128xf32>
    tpu.vector_store %arg11[%c1_97, %c2432_98], %168 {strides = array<i32>} : memref<2x4096xf32, #tpu.memory_space<vmem>>, vector<1x128xf32>,
    %170 = vector.extract_strided_slice %65 {offsets = [20, 128], sizes = [1, 128], strides = [1, 1]} : vector<32x256xf32> to vector<1x128xf32>
    %c1_99 = arith.constant 1 : index
    %c2560_100 = arith.constant 2560 : index
    %171 = vector.load %arg11[%c1_99, %c2560_100] : memref<2x4096xf32, #tpu.memory_space<vmem>>, vector<1x128xf32>
    tpu.vector_store %arg11[%c1_99, %c2560_100], %170 {strides = array<i32>} : memref<2x4096xf32, #tpu.memory_space<vmem>>, vector<1x128xf32>,
    %172 = vector.extract_strided_slice %65 {offsets = [21, 128], sizes = [1, 128], strides = [1, 1]} : vector<32x256xf32> to vector<1x128xf32>
    %c1_101 = arith.constant 1 : index
    %c2688_102 = arith.constant 2688 : index
    %173 = vector.load %arg11[%c1_101, %c2688_102] : memref<2x4096xf32, #tpu.memory_space<vmem>>, vector<1x128xf32>
    tpu.vector_store %arg11[%c1_101, %c2688_102], %172 {strides = array<i32>} : memref<2x4096xf32, #tpu.memory_space<vmem>>, vector<1x128xf32>,
    %174 = vector.extract_strided_slice %65 {offsets = [22, 128], sizes = [1, 128], strides = [1, 1]} : vector<32x256xf32> to vector<1x128xf32>
    %c1_103 = arith.constant 1 : index
    %c2816_104 = arith.constant 2816 : index
    %175 = vector.load %arg11[%c1_103, %c2816_104] : memref<2x4096xf32, #tpu.memory_space<vmem>>, vector<1x128xf32>
    tpu.vector_store %arg11[%c1_103, %c2816_104], %174 {strides = array<i32>} : memref<2x4096xf32, #tpu.memory_space<vmem>>, vector<1x128xf32>,
    %176 = vector.extract_strided_slice %65 {offsets = [23, 128], sizes = [1, 128], strides = [1, 1]} : vector<32x256xf32> to vector<1x128xf32>
    %c1_105 = arith.constant 1 : index
    %c2944_106 = arith.constant 2944 : index
    %177 = vector.load %arg11[%c1_105, %c2944_106] : memref<2x4096xf32, #tpu.memory_space<vmem>>, vector<1x128xf32>
    tpu.vector_store %arg11[%c1_105, %c2944_106], %176 {strides = array<i32>} : memref<2x4096xf32, #tpu.memory_space<vmem>>, vector<1x128xf32>,
    %178 = vector.extract_strided_slice %65 {offsets = [24, 128], sizes = [1, 128], strides = [1, 1]} : vector<32x256xf32> to vector<1x128xf32>
    %c1_107 = arith.constant 1 : index
    %c3072_108 = arith.constant 3072 : index
    %179 = vector.load %arg11[%c1_107, %c3072_108] : memref<2x4096xf32, #tpu.memory_space<vmem>>, vector<1x128xf32>
    tpu.vector_store %arg11[%c1_107, %c3072_108], %178 {strides = array<i32>} : memref<2x4096xf32, #tpu.memory_space<vmem>>, vector<1x128xf32>,
    %180 = vector.extract_strided_slice %65 {offsets = [25, 128], sizes = [1, 128], strides = [1, 1]} : vector<32x256xf32> to vector<1x128xf32>
    %c1_109 = arith.constant 1 : index
    %c3200_110 = arith.constant 3200 : index
    %181 = vector.load %arg11[%c1_109, %c3200_110] : memref<2x4096xf32, #tpu.memory_space<vmem>>, vector<1x128xf32>
    tpu.vector_store %arg11[%c1_109, %c3200_110], %180 {strides = array<i32>} : memref<2x4096xf32, #tpu.memory_space<vmem>>, vector<1x128xf32>,
    %182 = vector.extract_strided_slice %65 {offsets = [26, 128], sizes = [1, 128], strides = [1, 1]} : vector<32x256xf32> to vector<1x128xf32>
    %c1_111 = arith.constant 1 : index
    %c3328_112 = arith.constant 3328 : index
    %183 = vector.load %arg11[%c1_111, %c3328_112] : memref<2x4096xf32, #tpu.memory_space<vmem>>, vector<1x128xf32>
    tpu.vector_store %arg11[%c1_111, %c3328_112], %182 {strides = array<i32>} : memref<2x4096xf32, #tpu.memory_space<vmem>>, vector<1x128xf32>,
    %184 = vector.extract_strided_slice %65 {offsets = [27, 128], sizes = [1, 128], strides = [1, 1]} : vector<32x256xf32> to vector<1x128xf32>
    %c1_113 = arith.constant 1 : index
    %c3456_114 = arith.constant 3456 : index
    %185 = vector.load %arg11[%c1_113, %c3456_114] : memref<2x4096xf32, #tpu.memory_space<vmem>>, vector<1x128xf32>
    tpu.vector_store %arg11[%c1_113, %c3456_114], %184 {strides = array<i32>} : memref<2x4096xf32, #tpu.memory_space<vmem>>, vector<1x128xf32>,
    %186 = vector.extract_strided_slice %65 {offsets = [28, 128], sizes = [1, 128], strides = [1, 1]} : vector<32x256xf32> to vector<1x128xf32>
    %c1_115 = arith.constant 1 : index
    %c3584_116 = arith.constant 3584 : index
    %187 = vector.load %arg11[%c1_115, %c3584_116] : memref<2x4096xf32, #tpu.memory_space<vmem>>, vector<1x128xf32>
    tpu.vector_store %arg11[%c1_115, %c3584_116], %186 {strides = array<i32>} : memref<2x4096xf32, #tpu.memory_space<vmem>>, vector<1x128xf32>,
    %188 = vector.extract_strided_slice %65 {offsets = [29, 128], sizes = [1, 128], strides = [1, 1]} : vector<32x256xf32> to vector<1x128xf32>
    %c1_117 = arith.constant 1 : index
    %c3712_118 = arith.constant 3712 : index
    %189 = vector.load %arg11[%c1_117, %c3712_118] : memref<2x4096xf32, #tpu.memory_space<vmem>>, vector<1x128xf32>
    tpu.vector_store %arg11[%c1_117, %c3712_118], %188 {strides = array<i32>} : memref<2x4096xf32, #tpu.memory_space<vmem>>, vector<1x128xf32>,
    %190 = vector.extract_strided_slice %65 {offsets = [30, 128], sizes = [1, 128], strides = [1, 1]} : vector<32x256xf32> to vector<1x128xf32>
    %c1_119 = arith.constant 1 : index
    %c3840_120 = arith.constant 3840 : index
    %191 = vector.load %arg11[%c1_119, %c3840_120] : memref<2x4096xf32, #tpu.memory_space<vmem>>, vector<1x128xf32>
    tpu.vector_store %arg11[%c1_119, %c3840_120], %190 {strides = array<i32>} : memref<2x4096xf32, #tpu.memory_space<vmem>>, vector<1x128xf32>,
    %192 = vector.extract_strided_slice %65 {offsets = [31, 128], sizes = [1, 128], strides = [1, 1]} : vector<32x256xf32> to vector<1x128xf32>
    %c1_121 = arith.constant 1 : index
    %c3968_122 = arith.constant 3968 : index
    %193 = vector.load %arg11[%c1_121, %c3968_122] : memref<2x4096xf32, #tpu.memory_space<vmem>>, vector<1x128xf32>
    tpu.vector_store %arg11[%c1_121, %c3968_122], %192 {strides = array<i32>} : memref<2x4096xf32, #tpu.memory_space<vmem>>, vector<1x128xf32>,
    %cst_123 = arith.constant 0.000000e+00 : f32
    %194 = vector.broadcast %cst_123 : f32 to vector<2x128xf32>
    %c0_i32_124 = arith.constant 0 : i32
    %c0_i32_125 = arith.constant 0 : i32
    %c0_i32_126 = arith.constant 0 : i32
    %195 = tpu.memref_slice %arg5[%c0_i32_125, %c0_i32_126] : memref<4096x128xf32, #tpu.memory_space<any>> -> memref<1024x128xf32, #tpu.memory_space<any>>
    %c0_i32_127 = arith.constant 0 : i32
    %c0_i32_128 = arith.constant 0 : i32
    %196 = tpu.memref_slice %arg10[%c0_i32_127, %c0_i32_128] : memref<4096x128xf32, #tpu.memory_space<vmem>> -> memref<1024x128xf32, #tpu.memory_space<vmem>>
    %197 = tpu.memref_slice %arg12[%c0_i32_124] : memref<4x!tpu.dma_semaphore, #tpu.memory_space<semaphore_mem>> -> memref<1x!tpu.dma_semaphore, #tpu.memory_space<semaphore_mem>>
    %198 = tpu.memref_squeeze %197 : memref<1x!tpu.dma_semaphore, #tpu.memory_space<semaphore_mem>> -> memref<!tpu.dma_semaphore, #tpu.memory_space<semaphore_mem>>
    tpu.wait_dma2 semaphore(%198 : memref<!tpu.dma_semaphore, #tpu.memory_space<semaphore_mem>>) src(%195 : memref<1024x128xf32, #tpu.memory_space<any>>) dst(%196 : memref<1024x128xf32, #tpu.memory_space<vmem>>)
    %c0_129 = arith.constant 0 : index
    %c0_130 = arith.constant 0 : index
    %199 = vector.load %arg11[%c0_129, %c0_130] : memref<2x4096xf32, #tpu.memory_space<vmem>>, vector<2x1024xf32>
    %c0_131 = arith.constant 0 : index
    %c0_132 = arith.constant 0 : index
    %200 = vector.load %arg10[%c0_131, %c0_132] : memref<4096x128xf32, #tpu.memory_space<vmem>>, vector<1024x128xf32>
    %cst_133 = arith.constant dense<0.000000e+00> : vector<2x128xf32>
    %201 = tpu.matmul %199, %200, %cst_133 {dimension_numbers = #tpu.dot_dimension_numbers<[1], [0], [0], [1], [0, 0, 1, 1], [], []>} : vector<2x1024xf32>, vector<1024x128xf32>, vector<2x128xf32> -> vector<2x128xf32>
    %202 = arith.addf %194, %201 : vector<2x128xf32>
    %c1_i32_134 = arith.constant 1 : i32
    %c1024_i32_135 = arith.constant 1024 : i32
    %c0_i32_136 = arith.constant 0 : i32
    %203 = tpu.memref_slice %arg5[%c1024_i32_135, %c0_i32_136] : memref<4096x128xf32, #tpu.memory_space<any>> -> memref<1024x128xf32, #tpu.memory_space<any>>
    %c1024_i32_137 = arith.constant 1024 : i32
    %c0_i32_138 = arith.constant 0 : i32
    %204 = tpu.memref_slice %arg10[%c1024_i32_137, %c0_i32_138] : memref<4096x128xf32, #tpu.memory_space<vmem>> -> memref<1024x128xf32, #tpu.memory_space<vmem>>
    %205 = tpu.memref_slice %arg12[%c1_i32_134] : memref<4x!tpu.dma_semaphore, #tpu.memory_space<semaphore_mem>> -> memref<1x!tpu.dma_semaphore, #tpu.memory_space<semaphore_mem>>
    %206 = tpu.memref_squeeze %205 : memref<1x!tpu.dma_semaphore, #tpu.memory_space<semaphore_mem>> -> memref<!tpu.dma_semaphore, #tpu.memory_space<semaphore_mem>>
    tpu.wait_dma2 semaphore(%206 : memref<!tpu.dma_semaphore, #tpu.memory_space<semaphore_mem>>) src(%203 : memref<1024x128xf32, #tpu.memory_space<any>>) dst(%204 : memref<1024x128xf32, #tpu.memory_space<vmem>>)
    %c0_139 = arith.constant 0 : index
    %c1024_140 = arith.constant 1024 : index
    %207 = vector.load %arg11[%c0_139, %c1024_140] : memref<2x4096xf32, #tpu.memory_space<vmem>>, vector<2x1024xf32>
    %c1024_141 = arith.constant 1024 : index
    %c0_142 = arith.constant 0 : index
    %208 = vector.load %arg10[%c1024_141, %c0_142] : memref<4096x128xf32, #tpu.memory_space<vmem>>, vector<1024x128xf32>
    %cst_143 = arith.constant dense<0.000000e+00> : vector<2x128xf32>
    %209 = tpu.matmul %207, %208, %cst_143 {dimension_numbers = #tpu.dot_dimension_numbers<[1], [0], [0], [1], [0, 0, 1, 1], [], []>} : vector<2x1024xf32>, vector<1024x128xf32>, vector<2x128xf32> -> vector<2x128xf32>
    %210 = arith.addf %202, %209 : vector<2x128xf32>
    %c2_i32_144 = arith.constant 2 : i32
    %c2048_i32_145 = arith.constant 2048 : i32
    %c0_i32_146 = arith.constant 0 : i32
    %211 = tpu.memref_slice %arg5[%c2048_i32_145, %c0_i32_146] : memref<4096x128xf32, #tpu.memory_space<any>> -> memref<1024x128xf32, #tpu.memory_space<any>>
    %c2048_i32_147 = arith.constant 2048 : i32
    %c0_i32_148 = arith.constant 0 : i32
    %212 = tpu.memref_slice %arg10[%c2048_i32_147, %c0_i32_148] : memref<4096x128xf32, #tpu.memory_space<vmem>> -> memref<1024x128xf32, #tpu.memory_space<vmem>>
    %213 = tpu.memref_slice %arg12[%c2_i32_144] : memref<4x!tpu.dma_semaphore, #tpu.memory_space<semaphore_mem>> -> memref<1x!tpu.dma_semaphore, #tpu.memory_space<semaphore_mem>>
    %214 = tpu.memref_squeeze %213 : memref<1x!tpu.dma_semaphore, #tpu.memory_space<semaphore_mem>> -> memref<!tpu.dma_semaphore, #tpu.memory_space<semaphore_mem>>
    tpu.wait_dma2 semaphore(%214 : memref<!tpu.dma_semaphore, #tpu.memory_space<semaphore_mem>>) src(%211 : memref<1024x128xf32, #tpu.memory_space<any>>) dst(%212 : memref<1024x128xf32, #tpu.memory_space<vmem>>)
    %c0_149 = arith.constant 0 : index
    %c2048_150 = arith.constant 2048 : index
    %215 = vector.load %arg11[%c0_149, %c2048_150] : memref<2x4096xf32, #tpu.memory_space<vmem>>, vector<2x1024xf32>
    %c2048_151 = arith.constant 2048 : index
    %c0_152 = arith.constant 0 : index
    %216 = vector.load %arg10[%c2048_151, %c0_152] : memref<4096x128xf32, #tpu.memory_space<vmem>>, vector<1024x128xf32>
    %cst_153 = arith.constant dense<0.000000e+00> : vector<2x128xf32>
    %217 = tpu.matmul %215, %216, %cst_153 {dimension_numbers = #tpu.dot_dimension_numbers<[1], [0], [0], [1], [0, 0, 1, 1], [], []>} : vector<2x1024xf32>, vector<1024x128xf32>, vector<2x128xf32> -> vector<2x128xf32>
    %218 = arith.addf %210, %217 : vector<2x128xf32>
    %c3_i32_154 = arith.constant 3 : i32
    %c3072_i32_155 = arith.constant 3072 : i32
    %c0_i32_156 = arith.constant 0 : i32
    %219 = tpu.memref_slice %arg5[%c3072_i32_155, %c0_i32_156] : memref<4096x128xf32, #tpu.memory_space<any>> -> memref<1024x128xf32, #tpu.memory_space<any>>
    %c3072_i32_157 = arith.constant 3072 : i32
    %c0_i32_158 = arith.constant 0 : i32
    %220 = tpu.memref_slice %arg10[%c3072_i32_157, %c0_i32_158] : memref<4096x128xf32, #tpu.memory_space<vmem>> -> memref<1024x128xf32, #tpu.memory_space<vmem>>
    %221 = tpu.memref_slice %arg12[%c3_i32_154] : memref<4x!tpu.dma_semaphore, #tpu.memory_space<semaphore_mem>> -> memref<1x!tpu.dma_semaphore, #tpu.memory_space<semaphore_mem>>
    %222 = tpu.memref_squeeze %221 : memref<1x!tpu.dma_semaphore, #tpu.memory_space<semaphore_mem>> -> memref<!tpu.dma_semaphore, #tpu.memory_space<semaphore_mem>>
    tpu.wait_dma2 semaphore(%222 : memref<!tpu.dma_semaphore, #tpu.memory_space<semaphore_mem>>) src(%219 : memref<1024x128xf32, #tpu.memory_space<any>>) dst(%220 : memref<1024x128xf32, #tpu.memory_space<vmem>>)
    %c0_159 = arith.constant 0 : index
    %c3072_160 = arith.constant 3072 : index
    %223 = vector.load %arg11[%c0_159, %c3072_160] : memref<2x4096xf32, #tpu.memory_space<vmem>>, vector<2x1024xf32>
    %c3072_161 = arith.constant 3072 : index
    %c0_162 = arith.constant 0 : index
    %224 = vector.load %arg10[%c3072_161, %c0_162] : memref<4096x128xf32, #tpu.memory_space<vmem>>, vector<1024x128xf32>
    %cst_163 = arith.constant dense<0.000000e+00> : vector<2x128xf32>
    %225 = tpu.matmul %223, %224, %cst_163 {dimension_numbers = #tpu.dot_dimension_numbers<[1], [0], [0], [1], [0, 0, 1, 1], [], []>} : vector<2x1024xf32>, vector<1024x128xf32>, vector<2x128xf32> -> vector<2x128xf32>
    %226 = arith.addf %218, %225 : vector<2x128xf32>
    %c0_164 = arith.constant 0 : index
    %c0_165 = arith.constant 0 : index
    %227 = vector.load %arg6[%c0_164, %c0_165] : memref<1x128xf32, #tpu.memory_space<vmem>>, vector<1x128xf32>
    %228 = vector.broadcast %227 : vector<1x128xf32> to vector<2x128xf32>
    %229 = arith.addf %226, %228 : vector<2x128xf32>
    %cst_166 = arith.constant 0.000000e+00 : f32
    %230 = vector.broadcast %cst_166 : f32 to vector<2x128xf32>
    %231 = arith.maximumf %229, %230 : vector<2x128xf32>
    %c0_167 = arith.constant 0 : index
    %c0_168 = arith.constant 0 : index
    %232 = vector.load %arg7[%c0_167, %c0_168] : memref<128x2xf32, #tpu.memory_space<vmem>>, vector<128x2xf32>
    %cst_169 = arith.constant dense<0.000000e+00> : vector<2x2xf32>
    %233 = tpu.matmul %231, %232, %cst_169 {dimension_numbers = #tpu.dot_dimension_numbers<[1], [0], [0], [1], [0, 0, 1, 1], [], []>} : vector<2x128xf32>, vector<128x2xf32>, vector<2x2xf32> -> vector<2x2xf32>
    %c0_170 = arith.constant 0 : index
    %c0_171 = arith.constant 0 : index
    %234 = vector.load %arg8[%c0_170, %c0_171] : memref<1x2xf32, #tpu.memory_space<vmem>>, vector<1x2xf32>
    %235 = vector.broadcast %234 : vector<1x2xf32> to vector<2x2xf32>
    %236 = arith.addf %233, %235 : vector<2x2xf32>
    %c0_172 = arith.constant 0 : index
    %c0_173 = arith.constant 0 : index
    %237 = vector.load %arg9[%c0_172, %c0_173] : memref<2x2xf32, #tpu.memory_space<vmem>>, vector<2x2xf32>
    tpu.vector_store %arg9[%c0_172, %c0_173], %236 {strides = array<i32>} : memref<2x2xf32, #tpu.memory_space<vmem>>, vector<2x2xf32>,
    return
  }
}

</mosaic_0001>

<llo_original>
// kernel: squeeze.1
$region0: #{squeeze.1}
  %s0 = inlined_call_operand.vmem [shape: f32[2,1,16,8], index: 0, kind: input, shape index: {}]
  %s1 = inlined_call_operand.vmem [shape: f32[1,256], index: 1, kind: output, shape index: {}]
  $region1: #{squeeze.1} parent=0
    #allocation0 [shape = 'u8[8192]{0}', space=vmem, size = 0x2000, scoped, tag = 'scoped mem for output reshape']
    %s2 = smov 3
    %v3 = vld [vmem:[%s0] ss:$16 sm:%s2]
    %vm4 = vcmask 64512
    %5 = vst.msk [vmem:[#allocation0] ss:$8 sm:$0x3] %vm4, %v3
    %s6 = scalar_lea.vmem %s0, 15
    %s7 = smov 3
    %v8 = vld [vmem:[%s6] ss:$16 sm:%s7]
    %9 = vrot.lane.b32.xlu0 %v8, 120
    %v10 = vpop.permute.xlu0 %9
    %vm11 = vcmask 1048512
    %12 = vst.msk [vmem:[#allocation0] ss:$8 sm:$0x3] %vm11, %v10
    %s13 = scalar_lea.vmem %s0, 14
    %s14 = smov 3
    %v15 = vld [vmem:[%s13] ss:$16 sm:%s14]
    %16 = vrot.lane.b32.xlu0 %v15, 112
    %v17 = vpop.permute.xlu0 %16
    %vm18 = vcmask 982912
    %19 = vst.msk [vmem:[#allocation0] ss:$8 sm:$0x3] %vm18, %v17
    %s20 = scalar_lea.vmem %s0, 13
    %s21 = smov 3
    %v22 = vld [vmem:[%s20] ss:$16 sm:%s21]
    %23 = vrot.lane.b32.xlu0 %v22, 104
    %v24 = vpop.permute.xlu0 %23
    %vm25 = vcmask 917312
    %26 = vst.msk [vmem:[#allocation0] ss:$8 sm:$0x3] %vm25, %v24
    %s27 = scalar_lea.vmem %s0, 12
    %s28 = smov 3
    %v29 = vld [vmem:[%s27] ss:$16 sm:%s28]
    %30 = vrot.lane.b32.xlu0 %v29, 96
    %v31 = vpop.permute.xlu0 %30
    %vm32 = vcmask 851712
    %33 = vst.msk [vmem:[#allocation0] ss:$8 sm:$0x3] %vm32, %v31
    %s34 = scalar_lea.vmem %s0, 11
    %s35 = smov 3
    %v36 = vld [vmem:[%s34] ss:$16 sm:%s35]
    %37 = vrot.lane.b32.xlu0 %v36, 88
    %v38 = vpop.permute.xlu0 %37
    %vm39 = vcmask 786112
    %40 = vst.msk [vmem:[#allocation0] ss:$8 sm:$0x3] %vm39, %v38
    %s41 = scalar_lea.vmem %s0, 10
    %s42 = smov 3
    %v43 = vld [vmem:[%s41] ss:$16 sm:%s42]
    %44 = vrot.lane.b32.xlu0 %v43, 80
    %v45 = vpop.permute.xlu0 %44
    %vm46 = vcmask 720512
    %47 = vst.msk [vmem:[#allocation0] ss:$8 sm:$0x3] %vm46, %v45
    %s48 = scalar_lea.vmem %s0, 9
    %s49 = smov 3
    %v50 = vld [vmem:[%s48] ss:$16 sm:%s49]
    %51 = vrot.lane.b32.xlu0 %v50, 72
    %v52 = vpop.permute.xlu0 %51
    %vm53 = vcmask 654912
    %54 = vst.msk [vmem:[#allocation0] ss:$8 sm:$0x3] %vm53, %v52
    %s55 = scalar_lea.vmem %s0, 8
    %s56 = smov 3
    %v57 = vld [vmem:[%s55] ss:$16 sm:%s56]
    %58 = vrot.lane.b32.xlu0 %v57, 64
    %v59 = vpop.permute.xlu0 %58
    %vm60 = vcmask 589312
    %61 = vst.msk [vmem:[#allocation0] ss:$8 sm:$0x3] %vm60, %v59
    %s62 = scalar_lea.vmem %s0, 7
    %s63 = smov 3
    %v64 = vld [vmem:[%s62] ss:$16 sm:%s63]
    %65 = vrot.lane.b32.xlu0 %v64, 56
    %v66 = vpop.permute.xlu0 %65
    %vm67 = vcmask 523712
    %68 = vst.msk [vmem:[#allocation0] ss:$8 sm:$0x3] %vm67, %v66
    %s69 = scalar_lea.vmem %s0, 6
    %s70 = smov 3
    %v71 = vld [vmem:[%s69] ss:$16 sm:%s70]
    %72 = vrot.lane.b32.xlu0 %v71, 48
    %v73 = vpop.permute.xlu0 %72
    %vm74 = vcmask 458112
    %75 = vst.msk [vmem:[#allocation0] ss:$8 sm:$0x3] %vm74, %v73
    %s76 = scalar_lea.vmem %s0, 5
    %s77 = smov 3
    %v78 = vld [vmem:[%s76] ss:$16 sm:%s77]
    %79 = vrot.lane.b32.xlu0 %v78, 40
    %v80 = vpop.permute.xlu0 %79
    %vm81 = vcmask 392512
    %82 = vst.msk [vmem:[#allocation0] ss:$8 sm:$0x3] %vm81, %v80
    %s83 = scalar_lea.vmem %s0, 4
    %s84 = smov 3
    %v85 = vld [vmem:[%s83] ss:$16 sm:%s84]
    %86 = vrot.lane.b32.xlu0 %v85, 32
    %v87 = vpop.permute.xlu0 %86
    %vm88 = vcmask 326912
    %89 = vst.msk [vmem:[#allocation0] ss:$8 sm:$0x3] %vm88, %v87
    %s90 = scalar_lea.vmem %s0, 3
    %s91 = smov 3
    %v92 = vld [vmem:[%s90] ss:$16 sm:%s91]
    %93 = vrot.lane.b32.xlu0 %v92, 24
    %v94 = vpop.permute.xlu0 %93
    %vm95 = vcmask 261312
    %96 = vst.msk [vmem:[#allocation0] ss:$8 sm:$0x3] %vm95, %v94
    %s97 = scalar_lea.vmem %s0, 2
    %s98 = smov 3
    %v99 = vld [vmem:[%s97] ss:$16 sm:%s98]
    %100 = vrot.lane.b32.xlu0 %v99, 16
    %v101 = vpop.permute.xlu0 %100
    %vm102 = vcmask 195712
    %103 = vst.msk [vmem:[#allocation0] ss:$8 sm:$0x3] %vm102, %v101
    %s104 = scalar_lea.vmem %s0, 1
    %s105 = smov 3
    %v106 = vld [vmem:[%s104] ss:$16 sm:%s105]
    %107 = vrot.lane.b32.xlu0 %v106, 8
    %v108 = vpop.permute.xlu0 %107
    %vm109 = vcmask 130112
    %110 = vst.msk [vmem:[#allocation0] ss:$8 sm:$0x3] %vm109, %v108
    %s112 = sshllo.u32 0, 1
    %v114 = vld [vmem:[#allocation0] sm:%s112]
    %s115 = sshllo.u32 0, 1
    %116 = vst [vmem:[%s1] sm:%s115] %v114
    %s117 = scalar_lea.vmem [#allocation0], 8
    %v118 = vld [vmem:[%s117] sm:%s112]
    %s119 = sshllo.u32 0, 1
    %s120 = scalar_lea.vmem %s1, 1
    %121 = vst [vmem:[%s120] sm:%s119] %v118

// kernel: simple_cnn_forward.1
$region0: #{simple_cnn_forward.1}
  #allocation0 [shape = 'u32[]', space=smem, size = 0x4, offset = 0x4, fixed_abs, tag = 'smem constant byte address 0x4 - core index']
  #allocation1 [shape = 'u32[144,128]{1,0:T(1,128)}', space=vmem, size = 0x12000, scoped, tag = 'internal scratch']
  #allocation2 [shape = 'f32[4096,128]{1,0:T(8,128)}', space=vmem, size = 0x200000, scoped, tag = 'scratch operand']
  #allocation3 [shape = 'f32[2,4096]{1,0:T(2,128)}', space=vmem, size = 0x8000, scoped, tag = 'scratch operand']
  #allocation4 [shape = 's32[4]{0}', space=sflag, size = 0x10, scoped, tag = 'scratch operand']
  #allocation12 [shape = 's32[]', space=sflag, size = 0x4, offset = 0, fixed_abs, tag = 'sflag constant byte address 0x0 - dummy sync flag']
  #allocation13 [shape = 's32[]', space=sflag, size = 0x4, offset = 0, fixed_abs, tag = 'sflag constant byte address 0x0 - dummy sync flag']
  #allocation14 [shape = 'u32[]', space=smem, size = 0x4, offset = 0x44, fixed_abs, tag = 'smem constant byte address 0x44 - assertion arg 0']
  #allocation15 [shape = 'u32[]', space=smem, size = 0x4, offset = 0x48, fixed_abs, tag = 'smem constant byte address 0x48 - assertion arg 1']
  #allocation16 [shape = 's32[]', space=sflag, size = 0x4, offset = 0, fixed_abs, tag = 'sflag constant byte address 0x0 - dummy sync flag']
  #allocation17 [shape = 's32[]', space=sflag, size = 0x4, offset = 0, fixed_abs, tag = 'sflag constant byte address 0x0 - dummy sync flag']
  #allocation18 [shape = 's32[]', space=sflag, size = 0x4, offset = 0, fixed_abs, tag = 'sflag constant byte address 0x0 - dummy sync flag']
  #allocation19 [shape = 's32[]', space=sflag, size = 0x4, offset = 0, fixed_abs, tag = 'sflag constant byte address 0x0 - dummy sync flag']
  #allocation20 [shape = 's32[]', space=sflag, size = 0x4, offset = 0, fixed_abs, tag = 'sflag constant byte address 0x0 - dummy sync flag']
  #allocation21 [shape = 's32[]', space=sflag, size = 0x4, offset = 0, fixed_abs, tag = 'sflag constant byte address 0x0 - dummy sync flag']
  %s0 = inlined_call_operand.vmem [shape: f32[1,256], index: 0, kind: input, shape index: {}]
  %s1 = inlined_call_operand.vmem [shape: f32[16,3], index: 1, kind: input, shape index: {}]
  %s2 = inlined_call_operand.vmem [shape: f32[16,1], index: 2, kind: input, shape index: {}]
  %s3 = inlined_call_operand.hbm [shape: f32[32,48], index: 3, kind: input, shape index: {}]
  %s4 = inlined_call_operand.vmem [shape: f32[32,1], index: 4, kind: input, shape index: {}]
  %s5 = inlined_call_operand.hbm [shape: f32[4096,128], index: 5, kind: input, shape index: {}]
  %s6 = inlined_call_operand.hbm [shape: f32[1,128], index: 6, kind: input, shape index: {}]
  %s7 = inlined_call_operand.vmem [shape: f32[128,2], index: 7, kind: input, shape index: {}]
  %s8 = inlined_call_operand.hbm [shape: f32[1,2], index: 8, kind: input, shape index: {}]
  %s9 = inlined_call_operand.hbm [shape: f32[2,2], index: 9, kind: output, shape index: {}]
  %s10 = sld [smem:[#allocation0]]
  $region70: #{simple_cnn_forward.1} parent=0
    _
  %s12 = ssub.s32 1, %s10
  %s13 = scalar_select 0, %s12, %s10
  $region1: #{simple_cnn_forward.1} parent=0
    #allocation5 [shape = 'u8[16384]{0}', space=vmem, size = 0x4000, scoped, tag = 'input window, operand 3, single buffered']
    #allocation6 [shape = 's32[1]{0}', space=sflag, size = 0x4, scoped, tag = 'scoped memory for simple_cnn_forward.1']
    #allocation7 [shape = 's32[1]{0}', space=sflag, size = 0x4, scoped, tag = 'scoped memory for simple_cnn_forward.1']
    #allocation8 [shape = 'u8[512]{0}', space=vmem, size = 0x400, scoped, tag = 'input window, operand 6, single buffered']
    #allocation9 [shape = 's32[1]{0}', space=sflag, size = 0x4, scoped, tag = 'scoped memory for simple_cnn_forward.1']
    #allocation10 [shape = 'u8[512]{0}', space=vmem, size = 0x400, scoped, tag = 'input window, operand 8, single buffered']
    #allocation11 [shape = 'u8[1024]{0}', space=vmem, size = 0x400, scoped, tag = 'output window, operand 0, single buffered']
    %14 = vsyncpa [#allocation6], 0
    %15 = vsyncpa [#allocation9], 0
    %16 = vsyncpa [#allocation7], 0
    // Predicated region
    $region2: #{simple_cnn_forward.1} parent=1 // pred_check
      _
    $region3: #{simple_cnn_forward.1} parent=1 // pred_check_branch
      %18 = sbr.rel (0) target = $region5
    $region4: #{simple_cnn_forward.1} parent=1 // pred_region
      _
    $region5: #{simple_cnn_forward.1} parent=1 // pred_fallthru
      _
    // Predicated region
    $region6: #{simple_cnn_forward.1} parent=1 // pred_check
      _
    $region7: #{simple_cnn_forward.1} parent=1 // pred_check_branch
      %20 = sbr.rel (0) target = $region9
    $region8: #{simple_cnn_forward.1} parent=1 // pred_region
      _
    $region9: #{simple_cnn_forward.1} parent=1 // pred_fallthru
      _
    // Predicated region
    $region10: #{simple_cnn_forward.1} parent=1 // pred_check
      _
    $region11: #{simple_cnn_forward.1} parent=1 // pred_check_branch
      %22 = sbr.rel (0) target = $region13
    $region12: #{simple_cnn_forward.1} parent=1 // pred_region
      _
    $region13: #{simple_cnn_forward.1} parent=1 // pred_fallthru
      _
    // Predicated region
    $region14: #{simple_cnn_forward.1} parent=1 // pred_check
      _
    $region15: #{simple_cnn_forward.1} parent=1 // pred_check_branch
      %24 = sbr.rel (0) target = $region17
    $region16: #{simple_cnn_forward.1} parent=1 // pred_region
      %s26 = ssub.s32 512, 512
      %27 = vsyncadd [#allocation6], %s26
      %s28 = sshll.u32 [#allocation5], 4
      %s29 = int_to_ptr.vmem [resolvable:$true] %s28
      %34 = dma.hbm_to_vmem [thread:$0]  %s3, 512, %s29, [#allocation6], 128, 128, 8
    $region17: #{simple_cnn_forward.1} parent=1 // pred_fallthru
      _
    // Predicated region
    $region18: #{simple_cnn_forward.1} parent=1 // pred_check
      _
    $region19: #{simple_cnn_forward.1} parent=1 // pred_check_branch
      %36 = sbr.rel (0) target = $region21
    $region20: #{simple_cnn_forward.1} parent=1 // pred_region
      _
    $region21: #{simple_cnn_forward.1} parent=1 // pred_fallthru
      _
    // Predicated region
    $region22: #{simple_cnn_forward.1} parent=1 // pred_check
      _
    $region23: #{simple_cnn_forward.1} parent=1 // pred_check_branch
      %38 = sbr.rel (0) target = $region25
    $region24: #{simple_cnn_forward.1} parent=1 // pred_region
      %s40 = ssub.s32 16, 16
      %41 = vsyncadd [#allocation9], %s40
      %s43 = sshll.u32 [#allocation8], 4
      %s44 = int_to_ptr.vmem [resolvable:$true] %s43
      %46 = dma.hbm_to_vmem [thread:$0]  %s6, 16, %s44, [#allocation9]
    $region25: #{simple_cnn_forward.1} parent=1 // pred_fallthru
      _
    // Predicated region
    $region26: #{simple_cnn_forward.1} parent=1 // pred_check
      _
    $region27: #{simple_cnn_forward.1} parent=1 // pred_check_branch
      %48 = sbr.rel (0) target = $region29
    $region28: #{simple_cnn_forward.1} parent=1 // pred_region
      _
    $region29: #{simple_cnn_forward.1} parent=1 // pred_fallthru
      _
    // Predicated region
    $region30: #{simple_cnn_forward.1} parent=1 // pred_check
      _
    $region31: #{simple_cnn_forward.1} parent=1 // pred_check_branch
      %50 = sbr.rel (0) target = $region33
    $region32: #{simple_cnn_forward.1} parent=1 // pred_region
      %s52 = ssub.s32 16, 16
      %53 = vsyncadd [#allocation9], %s52
      %s55 = sshll.u32 [#allocation10], 4
      %s56 = int_to_ptr.vmem [resolvable:$true] %s55
      %58 = dma.hbm_to_vmem [thread:$0]  %s8, 16, %s56, [#allocation9]
    $region33: #{simple_cnn_forward.1} parent=1 // pred_fallthru
      _
    // Predicated region
    $region34: #{simple_cnn_forward.1} parent=1 // pred_check
      _
    $region35: #{simple_cnn_forward.1} parent=1 // pred_check_branch
      %60 = sbr.rel (0) target = $region37
    $region36: #{simple_cnn_forward.1} parent=1 // pred_region
      %61 = dma.done [#allocation6], 512
    $region37: #{simple_cnn_forward.1} parent=1 // pred_fallthru
      _
    // Predicated region
    $region38: #{simple_cnn_forward.1} parent=1 // pred_check
      _
    $region39: #{simple_cnn_forward.1} parent=1 // pred_check_branch
      %63 = sbr.rel (0) target = $region41
    $region40: #{simple_cnn_forward.1} parent=1 // pred_region
      %64 = dma.done [#allocation9], 16
    $region41: #{simple_cnn_forward.1} parent=1 // pred_fallthru
      _
    // Predicated region
    $region42: #{simple_cnn_forward.1} parent=1 // pred_check
      _
    $region43: #{simple_cnn_forward.1} parent=1 // pred_check_branch
      %66 = sbr.rel (0) target = $region45
    $region44: #{simple_cnn_forward.1} parent=1 // pred_region
      %67 = dma.done [#allocation9], 16
    $region45: #{simple_cnn_forward.1} parent=1 // pred_fallthru
      _
    // Predicated region
    $region46: #{simple_cnn_forward.1} parent=1 // pred_check
      _
    $region47: #{simple_cnn_forward.1} parent=1 // pred_check_branch
      %69 = sbr.rel target = $region49
    $region48: #{simple_cnn_forward.1} parent=1 // pred_region
      %70 = sst [smem:[#allocation14]] [#allocation13]
      %71 = sst [smem:[#allocation15]] [#allocation12]
    $region49: #{simple_cnn_forward.1} parent=1 // pred_fallthru
      _
    %73 = shalt.err (0)
    %s75 = sshll.u32 [#allocation2], 4
    %s76 = int_to_ptr.vmem [resolvable:$true] %s75
    %78 = dma.hbm_to_vmem [thread:$0]  %s5, 16384, %s76, [#allocation4]
    %s79 = scalar_lea.hbm %s5, 16384
    %s80 = scalar_lea.vmem [#allocation2], 1024
    %s81 = scalar_lea.sflag [#allocation4], 1
    // Predicated region
    $region50: #{simple_cnn_forward.1} parent=1 // pred_check
      _
    $region51: #{simple_cnn_forward.1} parent=1 // pred_check_branch
      %83 = sbr.rel target = $region53
    $region52: #{simple_cnn_forward.1} parent=1 // pred_region
      %84 = sst [smem:[#allocation14]] [#allocation17]
      %85 = sst [smem:[#allocation15]] [#allocation16]
    $region53: #{simple_cnn_forward.1} parent=1 // pred_fallthru
      _
    %87 = shalt.err (0)
    %s89 = sshll.u32 %s80, 4
    %s90 = int_to_ptr.vmem [resolvable:$true] %s89
    %92 = dma.hbm_to_vmem [thread:$0]  %s79, 16384, %s90, %s81
    %s93 = scalar_lea.hbm %s5, 32768
    %s94 = scalar_lea.vmem [#allocation2], 2048
    %s95 = scalar_lea.sflag [#allocation4], 2
    // Predicated region
    $region54: #{simple_cnn_forward.1} parent=1 // pred_check
      _
    $region55: #{simple_cnn_forward.1} parent=1 // pred_check_branch
      %97 = sbr.rel target = $region57
    $region56: #{simple_cnn_forward.1} parent=1 // pred_region
      %98 = sst [smem:[#allocation14]] [#allocation19]
      %99 = sst [smem:[#allocation15]] [#allocation18]
    $region57: #{simple_cnn_forward.1} parent=1 // pred_fallthru
      _
    %101 = shalt.err (0)
    %s103 = sshll.u32 %s94, 4
    %s104 = int_to_ptr.vmem [resolvable:$true] %s103
    %106 = dma.hbm_to_vmem [thread:$0]  %s93, 16384, %s104, %s95
    %s107 = scalar_lea.hbm %s5, 49152
    %s108 = scalar_lea.vmem [#allocation2], 3072
    %s109 = scalar_lea.sflag [#allocation4], 3
    // Predicated region
    $region58: #{simple_cnn_forward.1} parent=1 // pred_check
      _
    $region59: #{simple_cnn_forward.1} parent=1 // pred_check_branch
      %111 = sbr.rel target = $region61
    $region60: #{simple_cnn_forward.1} parent=1 // pred_region
      %112 = sst [smem:[#allocation14]] [#allocation21]
      %113 = sst [smem:[#allocation15]] [#allocation20]
    $region61: #{simple_cnn_forward.1} parent=1 // pred_fallthru
      _
    %115 = shalt.err (0)
    %s117 = sshll.u32 %s108, 4
    %s118 = int_to_ptr.vmem [resolvable:$true] %s117
    %120 = dma.hbm_to_vmem [thread:$0]  %s107, 16384, %s118, %s109
    %v121 = vlaneseq
    %v122 = vand.u32 %v121, 127
    %v123 = vadd.s32 %v122, 128
    %v124 = vand.u32 %v122, 127
    %v125 = vand.u32 %v123, 127
    %vm126 = vcmp.ge.s32.totalorder %v124, 8
    %vm127 = vcmp.ge.s32.totalorder %v125, 8
    %v128 = vsel %vm126, 1, 0
    %v129 = vsel %vm127, 1, 0
    %v130 = vcvt.s32.f32 %v128
    %v131 = vcvt.s32.f32 %v129
    %vm132 = vcmp.lt.s32.totalorder %v124, 120
    %vm133 = vcmp.lt.s32.totalorder %v125, 120
    %v134 = vsel %vm132, 1, 0
    %v135 = vsel %vm133, 1, 0
    %v136 = vcvt.s32.f32 %v134
    %v137 = vcvt.s32.f32 %v135
    %v138 = vld [vmem:[%s0] sm:$0x3]
    %v140 = vlaneseq
    %v141 = vshrl.u32 %v140, 7
    %v142 = vsub.s32 0, %v141
    %v143 = vrot.slane %v138, %v142
    %v144 = vlaneseq
    %v145 = vshrl.u32 %v144, 7
    %v146 = vsub.s32 1, %v145
    %v147 = vrot.slane %v138, %v146
    %150 = vrot.lane.b32.xlu0 %v143, 8
    %v151 = vpop.permute.xlu0 %150
    %152 = vrot.lane.b32.xlu0 %v147, 8
    %v153 = vpop.permute.xlu0 %152
    %vm154 = vcmp.lt.s32.totalorder %v122, 8
    %v155 = vsel %vm154, %v151, %v153
    %v156 = vsel %vm154, %v153, %v151
    %v157 = vmul.f32 %v156, %v130
    %v158 = vmul.f32 %v155, %v131
    %159 = vrot.lane.b32.xlu0 %v143, 120
    %v160 = vpop.permute.xlu0 %159
    %161 = vrot.lane.b32.xlu0 %v147, 120
    %v162 = vpop.permute.xlu0 %161
    %vm163 = vcmp.lt.s32.totalorder %v122, 120
    %v164 = vsel %vm163, %v160, %v162
    %v165 = vsel %vm163, %v162, %v160
    %v166 = vmul.f32 %v164, %v136
    %v167 = vmul.f32 %v165, %v137
    %v168 = vld [vmem:[%s1] sm:$0xff]
    %v169 = vld [vmem:[%s1 + $0x8] sm:$0xff]
    %171 = vset.pattern.permute.xlu0 0
    %172 = vperm.xlu0 %171, %v168
    %v173 = vpop.permute.xlu0 %172
    %176 = vset.pattern.permute.xlu0 0
    %177 = vperm.xlu0 %176, %v169
    %v178 = vpop.permute.xlu0 %177
    %v180 = vlaneseq
    %v181 = vshrl.u32 %v180, 7
    %v182 = vsub.s32 0, %v181
    %v183 = vrot.slane %v157, %v182
    %v184 = vlaneseq
    %v185 = vshrl.u32 %v184, 7
    %v186 = vsub.s32 0, %v185
    %v187 = vrot.slane %v158, %v186
    %v188 = vmul.f32 %v173, %v183
    %v189 = vmul.f32 %v173, %v187
    %v190 = vmul.f32 %v178, %v183
    %v191 = vmul.f32 %v178, %v187
    %192 = vset.pattern.permute.xlu0 1
    %193 = vperm.xlu0 %192, %v168
    %v194 = vpop.permute.xlu0 %193
    %196 = vset.pattern.permute.xlu0 1
    %197 = vperm.xlu0 %196, %v169
    %v198 = vpop.permute.xlu0 %197
    %v200 = vmul.f32 %v194, %v143
    %v201 = vmul.f32 %v194, %v147
    %v202 = vmul.f32 %v198, %v143
    %v203 = vmul.f32 %v198, %v147
    %v204 = vadd.f32 %v188, %v200
    %v205 = vadd.f32 %v189, %v201
    %v206 = vadd.f32 %v190, %v202
    %v207 = vadd.f32 %v191, %v203
    %208 = vset.pattern.permute.xlu0 2
    %209 = vperm.xlu0 %208, %v168
    %v210 = vpop.permute.xlu0 %209
    %212 = vset.pattern.permute.xlu0 2
    %213 = vperm.xlu0 %212, %v169
    %v214 = vpop.permute.xlu0 %213
    %v216 = vlaneseq
    %v217 = vshrl.u32 %v216, 7
    %v218 = vsub.s32 0, %v217
    %v219 = vrot.slane %v166, %v218
    %v220 = vlaneseq
    %v221 = vshrl.u32 %v220, 7
    %v222 = vsub.s32 0, %v221
    %v223 = vrot.slane %v167, %v222
    %v224 = vmul.f32 %v210, %v219
    %v225 = vmul.f32 %v210, %v223
    %v226 = vmul.f32 %v214, %v219
    %v227 = vmul.f32 %v214, %v223
    %v228 = vadd.f32 %v204, %v224
    %v229 = vadd.f32 %v205, %v225
    %v230 = vadd.f32 %v206, %v226
    %v231 = vadd.f32 %v207, %v227
    %v232 = vld [vmem:[%s2] sm:$0xff]
    %v233 = vld [vmem:[%s2 + $0x8] sm:$0xff]
    %235 = vset.pattern.permute.xlu0 0
    %236 = vperm.xlu0 %235, %v232
    %v237 = vpop.permute.xlu0 %236
    %240 = vset.pattern.permute.xlu0 0
    %241 = vperm.xlu0 %240, %v233
    %v242 = vpop.permute.xlu0 %241
    %v244 = vadd.f32 %v228, %v237
    %v245 = vadd.f32 %v229, %v237
    %v246 = vadd.f32 %v230, %v242
    %v247 = vadd.f32 %v231, %v242
    %v248 = vmax.f32 %v244, 0.0
    %v249 = vmax.f32 %v245, 0.0
    %v250 = vmax.f32 %v246, 0.0
    %v251 = vmax.f32 %v247, 0.0
    %252 = vrot.lane.b32.xlu0 %v248, 8
    %v253 = vpop.permute.xlu0 %252
    %254 = vrot.lane.b32.xlu0 %v250, 8
    %v255 = vpop.permute.xlu0 %254
    %256 = vrot.lane.b32.xlu0 %v249, 8
    %v257 = vpop.permute.xlu0 %256
    %258 = vrot.lane.b32.xlu0 %v251, 8
    %v259 = vpop.permute.xlu0 %258
    %v260 = vsel %vm154, %v253, %v257
    %v261 = vsel %vm154, %v255, %v259
    %v262 = vsel %vm154, %v257, %v253
    %v263 = vsel %vm154, %v259, %v255
    %v264 = vmul.f32 %v262, %v130
    %v265 = vmul.f32 %v260, %v131
    %v266 = vmul.f32 %v263, %v130
    %v267 = vmul.f32 %v261, %v131
    %268 = vrot.lane.b32.xlu0 %v248, 120
    %v269 = vpop.permute.xlu0 %268
    %270 = vrot.lane.b32.xlu0 %v250, 120
    %v271 = vpop.permute.xlu0 %270
    %272 = vrot.lane.b32.xlu0 %v249, 120
    %v273 = vpop.permute.xlu0 %272
    %274 = vrot.lane.b32.xlu0 %v251, 120
    %v275 = vpop.permute.xlu0 %274
    %v276 = vsel %vm163, %v269, %v273
    %v277 = vsel %vm163, %v271, %v275
    %v278 = vsel %vm163, %v273, %v269
    %v279 = vsel %vm163, %v275, %v271
    %v280 = vmul.f32 %v276, %v136
    %v281 = vmul.f32 %v278, %v137
    %v282 = vmul.f32 %v277, %v136
    %v283 = vmul.f32 %v279, %v137
    %v284 = vld [vmem:[#allocation5] sm:$0xff]
    %v285 = vld [vmem:[#allocation5 + $0x8] sm:$0xff]
    %v286 = vld [vmem:[#allocation5 + $0x10] sm:$0xff]
    %v287 = vld [vmem:[#allocation5 + $0x18] sm:$0xff]
    %v288 = vld [vmem:[%s4] sm:$0xff]
    %v289 = vld [vmem:[%s4 + $0x8] sm:$0xff]
    %v290 = vld [vmem:[%s4 + $0x10] sm:$0xff]
    %v291 = vld [vmem:[%s4 + $0x18] sm:$0xff]
    %293 = vset.pattern.permute.xlu0 0
    %294 = vperm.xlu0 %293, %v288
    %v295 = vpop.permute.xlu0 %294
    %298 = vset.pattern.permute.xlu0 0
    %299 = vperm.xlu0 %298, %v289
    %v300 = vpop.permute.xlu0 %299
    %303 = vset.pattern.permute.xlu0 0
    %304 = vperm.xlu0 %303, %v290
    %v305 = vpop.permute.xlu0 %304
    %308 = vset.pattern.permute.xlu0 0
    %309 = vperm.xlu0 %308, %v291
    %v310 = vpop.permute.xlu0 %309
    %vm312 = vcmask 392192
    %v314 = vsel %vm312, %v284, 0
    %v317 = vsel %vm312, %v285, 0
    %v320 = vsel %vm312, %v286, 0
    %v323 = vsel %vm312, %v287, 0
    %325 = vmatprep.subr.mxu0 %v265
    %326 = vmatpush1.msra.mxu0 %v264
    %327 = vmatprep.subr.mxu0 %v267
    %328 = vmatpush1.msra.mxu0 %v266
    %329 = vmatprep.subr.mxu0 %v249
    %330 = vmatpush1.msra.mxu0 %v248
    %331 = vmatprep.subr.mxu0 %v251
    %332 = vmatpush1.msra.mxu0 %v250
    %333 = vmatprep.subr.mxu0 %v281
    %334 = vmatpush1.msra.mxu0 %v280
    %335 = vmatprep.subr.mxu0 %v283
    %336 = vmatpush1.msra.mxu0 %v282
    %337 = vmatprep.subr.mxu0 0.0
    %338 = vmatpush1.msra.mxu0 0.0
    %339 = vmatprep.subr.mxu0 0.0
    %340 = vmatpush1.msra.mxu0 0.0
    %341 = vmatprep.subr.mxu0 0.0
    %342 = vmatpush1.msra.mxu0 0.0
    %343 = vmatprep.subr.mxu0 0.0
    %344 = vmatpush1.msra.mxu0 0.0
    %345 = vmatprep.subr.mxu0 0.0
    %346 = vmatpush1.msra.mxu0 0.0
    %347 = vmatprep.subr.mxu0 0.0
    %348 = vmatpush1.msra.mxu0 0.0
    %349 = vmatprep.subr.mxu0 0.0
    %350 = vmatpush1.msra.mxu0 0.0
    %351 = vmatprep.subr.mxu0 0.0
    %352 = vmatpush1.msra.mxu0 0.0
    %353 = vmatprep.subr.mxu0 0.0
    %354 = vmatpush1.msra.mxu0 0.0
    %355 = vmatprep.subr.mxu0 0.0
    %356 = vmatpush1.msra.mxu0 0.0
    %357 = vmatprep.subr.mxu0 0.0
    %358 = vmatpush1.msra.mxu0 0.0
    %359 = vmatprep.subr.mxu0 0.0
    %360 = vmatpush1.msra.mxu0 0.0
    %361 = vmatprep.subr.mxu0 0.0
    %362 = vmatpush1.msra.mxu0 0.0
    %363 = vmatprep.subr.mxu0 0.0
    %364 = vmatpush1.msra.mxu0 0.0
    %365 = vmatprep.subr.mxu0 0.0
    %366 = vmatpush1.msra.mxu0 0.0
    %367 = vmatprep.subr.mxu0 0.0
    %368 = vmatpush1.msra.mxu0 0.0
    %369 = vmatprep.subr.mxu0 0.0
    %370 = vmatpush1.msra.mxu0 0.0
    %371 = vmatprep.subr.mxu0 0.0
    %372 = vmatpush1.msra.mxu0 0.0
    %373 = vmatprep.subr.mxu0 0.0
    %374 = vmatpush1.msra.mxu0 0.0
    %375 = vmatprep.subr.mxu0 0.0
    %376 = vmatpush1.msra.mxu0 0.0
    %377 = vmatprep.subr.mxu0 0.0
    %378 = vmatpush1.msra.mxu0 0.0
    %379 = vmatprep.subr.mxu0 0.0
    %380 = vmatpush1.msra.mxu0 0.0
    %381 = vmatprep.subr.mxu0 0.0
    %382 = vmatpush1.msra.mxu0 0.0
    %383 = vmatprep.subr.mxu0 0.0
    %384 = vmatpush1.msra.mxu0 0.0
    %385 = vmatprep.subr.mxu0 0.0
    %386 = vmatpush1.msra.mxu0 0.0
    %387 = vmatprep.subr.mxu0 0.0
    %388 = vmatpush1.msra.mxu0 0.0
    %389 = vmatprep.mubr.f32.mxu0 0.0
    %390 = vmatmul.mubr.f32.gmra.mrb[0].mxu0 %v314
    %v391 = vpop.f32.mrb[0].mxu0
    %v392 = vadd.f32 %v295, %v391
    %v393 = vpop.f32.mrb[0].mxu0
    %v394 = vadd.f32 %v295, %v393
    %395 = vmatprep.mubr.f32.mxu0 0.0
    %396 = vmatmul.mubr.f32.gmra.mrb[0].mxu0 %v317
    %v397 = vpop.f32.mrb[0].mxu0
    %v398 = vadd.f32 %v300, %v397
    %v399 = vpop.f32.mrb[0].mxu0
    %v400 = vadd.f32 %v300, %v399
    %401 = vmatprep.mubr.f32.mxu0 0.0
    %402 = vmatmul.mubr.f32.gmra.mrb[0].mxu0 %v320
    %v403 = vpop.f32.mrb[0].mxu0
    %v404 = vadd.f32 %v305, %v403
    %v405 = vpop.f32.mrb[0].mxu0
    %v406 = vadd.f32 %v305, %v405
    %407 = vmatprep.mubr.f32.mxu0 0.0
    %408 = vmatmul.mubr.f32.gmra.mrb[0].mxu0 %v323
    %v409 = vpop.f32.mrb[0].mxu0
    %v410 = vadd.f32 %v310, %v409
    %v411 = vpop.f32.mrb[0].mxu0
    %v412 = vadd.f32 %v310, %v411
    %413 = vdwg.mxu0
    %v414 = vmax.f32 %v392, 0.0
    %v415 = vmax.f32 %v394, 0.0
    %v416 = vmax.f32 %v398, 0.0
    %v417 = vmax.f32 %v400, 0.0
    %v418 = vmax.f32 %v404, 0.0
    %v419 = vmax.f32 %v406, 0.0
    %v420 = vmax.f32 %v410, 0.0
    %v421 = vmax.f32 %v412, 0.0
    %422 = vst [vmem:[#allocation3] sm:$0x1] %v414
    %v425 = vunpack.c.l.s4 1983009808
    %v426 = vunpack.c.0.s8 %v425
    %v427 = vlaneseq
    %v428 = vshrl.u32 %v427, 7
    %v429 = vsub.s32 %v426, %v428
    %v430 = vrot.slane %v414, %v429
    %v431 = vrot.slane %v430, 7
    %v432 = vrot.slane %v431, 2
    %434 = vst [vmem:[#allocation3 + $0x2] sm:$0x1] %v432
    %v435 = vcombine.high %v430, %v430
    %437 = vst [vmem:[#allocation3 + $0x4] sm:$0x1] %v435
    %v438 = vrot.slane %v435, 7
    %v439 = vrot.slane %v438, 2
    %441 = vst [vmem:[#allocation3 + $0x6] sm:$0x1] %v439
    %v442 = vcombine.high %v414, %v414
    %v444 = vunpack.c.l.s4 1983009808
    %v445 = vunpack.c.0.s8 %v444
    %v446 = vlaneseq
    %v447 = vshrl.u32 %v446, 7
    %v448 = vsub.s32 %v445, %v447
    %v449 = vrot.slane %v442, %v448
    %451 = vst [vmem:[#allocation3 + $0x8] sm:$0x1] %v449
    %v452 = vrot.slane %v449, 7
    %v453 = vrot.slane %v452, 2
    %455 = vst [vmem:[#allocation3 + $0xa] sm:$0x1] %v453
    %v456 = vcombine.high %v449, %v449
    %458 = vst [vmem:[#allocation3 + $0xc] sm:$0x1] %v456
    %v459 = vrot.slane %v456, 7
    %v460 = vrot.slane %v459, 2
    %462 = vst [vmem:[#allocation3 + $0xe] sm:$0x1] %v460
    %463 = vst [vmem:[#allocation3 + $0x10] sm:$0x1] %v416
    %v466 = vunpack.c.l.s4 1983009808
    %v467 = vunpack.c.0.s8 %v466
    %v468 = vlaneseq
    %v469 = vshrl.u32 %v468, 7
    %v470 = vsub.s32 %v467, %v469
    %v471 = vrot.slane %v416, %v470
    %v472 = vrot.slane %v471, 7
    %v473 = vrot.slane %v472, 2
    %475 = vst [vmem:[#allocation3 + $0x12] sm:$0x1] %v473
    %v476 = vcombine.high %v471, %v471
    %478 = vst [vmem:[#allocation3 + $0x14] sm:$0x1] %v476
    %v479 = vrot.slane %v476, 7
    %v480 = vrot.slane %v479, 2
    %482 = vst [vmem:[#allocation3 + $0x16] sm:$0x1] %v480
    %v483 = vcombine.high %v416, %v416
    %v485 = vunpack.c.l.s4 1983009808
    %v486 = vunpack.c.0.s8 %v485
    %v487 = vlaneseq
    %v488 = vshrl.u32 %v487, 7
    %v489 = vsub.s32 %v486, %v488
    %v490 = vrot.slane %v483, %v489
    %492 = vst [vmem:[#allocation3 + $0x18] sm:$0x1] %v490
    %v493 = vrot.slane %v490, 7
    %v494 = vrot.slane %v493, 2
    %496 = vst [vmem:[#allocation3 + $0x1a] sm:$0x1] %v494
    %v497 = vcombine.high %v490, %v490
    %499 = vst [vmem:[#allocation3 + $0x1c] sm:$0x1] %v497
    %v500 = vrot.slane %v497, 7
    %v501 = vrot.slane %v500, 2
    %503 = vst [vmem:[#allocation3 + $0x1e] sm:$0x1] %v501
    %504 = vst [vmem:[#allocation3 + $0x20] sm:$0x1] %v418
    %v507 = vunpack.c.l.s4 1983009808
    %v508 = vunpack.c.0.s8 %v507
    %v509 = vlaneseq
    %v510 = vshrl.u32 %v509, 7
    %v511 = vsub.s32 %v508, %v510
    %v512 = vrot.slane %v418, %v511
    %v513 = vrot.slane %v512, 7
    %v514 = vrot.slane %v513, 2
    %516 = vst [vmem:[#allocation3 + $0x22] sm:$0x1] %v514
    %v517 = vcombine.high %v512, %v512
    %519 = vst [vmem:[#allocation3 + $0x24] sm:$0x1] %v517
    %v520 = vrot.slane %v517, 7
    %v521 = vrot.slane %v520, 2
    %523 = vst [vmem:[#allocation3 + $0x26] sm:$0x1] %v521
    %v524 = vcombine.high %v418, %v418
    %v526 = vunpack.c.l.s4 1983009808
    %v527 = vunpack.c.0.s8 %v526
    %v528 = vlaneseq
    %v529 = vshrl.u32 %v528, 7
    %v530 = vsub.s32 %v527, %v529
    %v531 = vrot.slane %v524, %v530
    %533 = vst [vmem:[#allocation3 + $0x28] sm:$0x1] %v531
    %v534 = vrot.slane %v531, 7
    %v535 = vrot.slane %v534, 2
    %537 = vst [vmem:[#allocation3 + $0x2a] sm:$0x1] %v535
    %v538 = vcombine.high %v531, %v531
    %540 = vst [vmem:[#allocation3 + $0x2c] sm:$0x1] %v538
    %v541 = vrot.slane %v538, 7
    %v542 = vrot.slane %v541, 2
    %544 = vst [vmem:[#allocation3 + $0x2e] sm:$0x1] %v542
    %545 = vst [vmem:[#allocation3 + $0x30] sm:$0x1] %v420
    %v548 = vunpack.c.l.s4 1983009808
    %v549 = vunpack.c.0.s8 %v548
    %v550 = vlaneseq
    %v551 = vshrl.u32 %v550, 7
    %v552 = vsub.s32 %v549, %v551
    %v553 = vrot.slane %v420, %v552
    %v554 = vrot.slane %v553, 7
    %v555 = vrot.slane %v554, 2
    %557 = vst [vmem:[#allocation3 + $0x32] sm:$0x1] %v555
    %v558 = vcombine.high %v553, %v553
    %560 = vst [vmem:[#allocation3 + $0x34] sm:$0x1] %v558
    %v561 = vrot.slane %v558, 7
    %v562 = vrot.slane %v561, 2
    %564 = vst [vmem:[#allocation3 + $0x36] sm:$0x1] %v562
    %v565 = vcombine.high %v420, %v420
    %v567 = vunpack.c.l.s4 1983009808
    %v568 = vunpack.c.0.s8 %v567
    %v569 = vlaneseq
    %v570 = vshrl.u32 %v569, 7
    %v571 = vsub.s32 %v568, %v570
    %v572 = vrot.slane %v565, %v571
    %574 = vst [vmem:[#allocation3 + $0x38] sm:$0x1] %v572
    %v575 = vrot.slane %v572, 7
    %v576 = vrot.slane %v575, 2
    %578 = vst [vmem:[#allocation3 + $0x3a] sm:$0x1] %v576
    %v579 = vcombine.high %v572, %v572
    %581 = vst [vmem:[#allocation3 + $0x3c] sm:$0x1] %v579
    %v582 = vrot.slane %v579, 7
    %v583 = vrot.slane %v582, 2
    %585 = vst [vmem:[#allocation3 + $0x3e] sm:$0x1] %v583
    %586 = vst [vmem:[#allocation3 + $0x1] sm:$0x1] %v415
    %v589 = vunpack.c.l.s4 1983009808
    %v590 = vunpack.c.0.s8 %v589
    %v591 = vlaneseq
    %v592 = vshrl.u32 %v591, 7
    %v593 = vsub.s32 %v590, %v592
    %v594 = vrot.slane %v415, %v593
    %v595 = vrot.slane %v594, 7
    %v596 = vrot.slane %v595, 2
    %598 = vst [vmem:[#allocation3 + $0x3] sm:$0x1] %v596
    %v599 = vcombine.high %v594, %v594
    %601 = vst [vmem:[#allocation3 + $0x5] sm:$0x1] %v599
    %v602 = vrot.slane %v599, 7
    %v603 = vrot.slane %v602, 2
    %605 = vst [vmem:[#allocation3 + $0x7] sm:$0x1] %v603
    %v606 = vcombine.high %v415, %v415
    %v608 = vunpack.c.l.s4 1983009808
    %v609 = vunpack.c.0.s8 %v608
    %v610 = vlaneseq
    %v611 = vshrl.u32 %v610, 7
    %v612 = vsub.s32 %v609, %v611
    %v613 = vrot.slane %v606, %v612
    %615 = vst [vmem:[#allocation3 + $0x9] sm:$0x1] %v613
    %v616 = vrot.slane %v613, 7
    %v617 = vrot.slane %v616, 2
    %619 = vst [vmem:[#allocation3 + $0xb] sm:$0x1] %v617
    %v620 = vcombine.high %v613, %v613
    %622 = vst [vmem:[#allocation3 + $0xd] sm:$0x1] %v620
    %v623 = vrot.slane %v620, 7
    %v624 = vrot.slane %v623, 2
    %626 = vst [vmem:[#allocation3 + $0xf] sm:$0x1] %v624
    %627 = vst [vmem:[#allocation3 + $0x11] sm:$0x1] %v417
    %v630 = vunpack.c.l.s4 1983009808
    %v631 = vunpack.c.0.s8 %v630
    %v632 = vlaneseq
    %v633 = vshrl.u32 %v632, 7
    %v634 = vsub.s32 %v631, %v633
    %v635 = vrot.slane %v417, %v634
    %v636 = vrot.slane %v635, 7
    %v637 = vrot.slane %v636, 2
    %639 = vst [vmem:[#allocation3 + $0x13] sm:$0x1] %v637
    %v640 = vcombine.high %v635, %v635
    %642 = vst [vmem:[#allocation3 + $0x15] sm:$0x1] %v640
    %v643 = vrot.slane %v640, 7
    %v644 = vrot.slane %v643, 2
    %646 = vst [vmem:[#allocation3 + $0x17] sm:$0x1] %v644
    %v647 = vcombine.high %v417, %v417
    %v649 = vunpack.c.l.s4 1983009808
    %v650 = vunpack.c.0.s8 %v649
    %v651 = vlaneseq
    %v652 = vshrl.u32 %v651, 7
    %v653 = vsub.s32 %v650, %v652
    %v654 = vrot.slane %v647, %v653
    %656 = vst [vmem:[#allocation3 + $0x19] sm:$0x1] %v654
    %v657 = vrot.slane %v654, 7
    %v658 = vrot.slane %v657, 2
    %660 = vst [vmem:[#allocation3 + $0x1b] sm:$0x1] %v658
    %v661 = vcombine.high %v654, %v654
    %663 = vst [vmem:[#allocation3 + $0x1d] sm:$0x1] %v661
    %v664 = vrot.slane %v661, 7
    %v665 = vrot.slane %v664, 2
    %667 = vst [vmem:[#allocation3 + $0x1f] sm:$0x1] %v665
    %668 = vst [vmem:[#allocation3 + $0x21] sm:$0x1] %v419
    %v671 = vunpack.c.l.s4 1983009808
    %v672 = vunpack.c.0.s8 %v671
    %v673 = vlaneseq
    %v674 = vshrl.u32 %v673, 7
    %v675 = vsub.s32 %v672, %v674
    %v676 = vrot.slane %v419, %v675
    %v677 = vrot.slane %v676, 7
    %v678 = vrot.slane %v677, 2
    %680 = vst [vmem:[#allocation3 + $0x23] sm:$0x1] %v678
    %v681 = vcombine.high %v676, %v676
    %683 = vst [vmem:[#allocation3 + $0x25] sm:$0x1] %v681
    %v684 = vrot.slane %v681, 7
    %v685 = vrot.slane %v684, 2
    %687 = vst [vmem:[#allocation3 + $0x27] sm:$0x1] %v685
    %v688 = vcombine.high %v419, %v419
    %v690 = vunpack.c.l.s4 1983009808
    %v691 = vunpack.c.0.s8 %v690
    %v692 = vlaneseq
    %v693 = vshrl.u32 %v692, 7
    %v694 = vsub.s32 %v691, %v693
    %v695 = vrot.slane %v688, %v694
    %697 = vst [vmem:[#allocation3 + $0x29] sm:$0x1] %v695
    %v698 = vrot.slane %v695, 7
    %v699 = vrot.slane %v698, 2
    %701 = vst [vmem:[#allocation3 + $0x2b] sm:$0x1] %v699
    %v702 = vcombine.high %v695, %v695
    %704 = vst [vmem:[#allocation3 + $0x2d] sm:$0x1] %v702
    %v705 = vrot.slane %v702, 7
    %v706 = vrot.slane %v705, 2
    %708 = vst [vmem:[#allocation3 + $0x2f] sm:$0x1] %v706
    %709 = vst [vmem:[#allocation3 + $0x31] sm:$0x1] %v421
    %v712 = vunpack.c.l.s4 1983009808
    %v713 = vunpack.c.0.s8 %v712
    %v714 = vlaneseq
    %v715 = vshrl.u32 %v714, 7
    %v716 = vsub.s32 %v713, %v715
    %v717 = vrot.slane %v421, %v716
    %v718 = vrot.slane %v717, 7
    %v719 = vrot.slane %v718, 2
    %721 = vst [vmem:[#allocation3 + $0x33] sm:$0x1] %v719
    %v722 = vcombine.high %v717, %v717
    %724 = vst [vmem:[#allocation3 + $0x35] sm:$0x1] %v722
    %v725 = vrot.slane %v722, 7
    %v726 = vrot.slane %v725, 2
    %728 = vst [vmem:[#allocation3 + $0x37] sm:$0x1] %v726
    %v729 = vcombine.high %v421, %v421
    %v731 = vunpack.c.l.s4 1983009808
    %v732 = vunpack.c.0.s8 %v731
    %v733 = vlaneseq
    %v734 = vshrl.u32 %v733, 7
    %v735 = vsub.s32 %v732, %v734
    %v736 = vrot.slane %v729, %v735
    %738 = vst [vmem:[#allocation3 + $0x39] sm:$0x1] %v736
    %v739 = vrot.slane %v736, 7
    %v740 = vrot.slane %v739, 2
    %742 = vst [vmem:[#allocation3 + $0x3b] sm:$0x1] %v740
    %v743 = vcombine.high %v736, %v736
    %745 = vst [vmem:[#allocation3 + $0x3d] sm:$0x1] %v743
    %v746 = vrot.slane %v743, 7
    %v747 = vrot.slane %v746, 2
    %749 = vst [vmem:[#allocation3 + $0x3f] sm:$0x1] %v747
    %s750 = smul.u32 1024, 1
    %s751 = sshll.u32 %s750, 4
    %752 = dma.done [#allocation4], %s751
    %v753 = vld [vmem:[#allocation3] sm:$0xff]
    %v754 = vld [vmem:[#allocation3 + $0x8] sm:$0xff]
    %v755 = vld [vmem:[#allocation2] sm:$0xff]
    %v756 = vld [vmem:[#allocation2 + $0x8] sm:$0xff]
    %v757 = vld [vmem:[#allocation2 + $0x10] sm:$0xff]
    %v758 = vld [vmem:[#allocation2 + $0x18] sm:$0xff]
    %v759 = vld [vmem:[#allocation2 + $0x20] sm:$0xff]
    %v760 = vld [vmem:[#allocation2 + $0x28] sm:$0xff]
    %v761 = vld [vmem:[#allocation2 + $0x30] sm:$0xff]
    %v762 = vld [vmem:[#allocation2 + $0x38] sm:$0xff]
    %v763 = vld [vmem:[#allocation2 + $0x40] sm:$0xff]
    %v764 = vld [vmem:[#allocation2 + $0x48] sm:$0xff]
    %v765 = vld [vmem:[#allocation2 + $0x50] sm:$0xff]
    %v766 = vld [vmem:[#allocation2 + $0x58] sm:$0xff]
    %v767 = vld [vmem:[#allocation2 + $0x60] sm:$0xff]
    %v768 = vld [vmem:[#allocation2 + $0x68] sm:$0xff]
    %v769 = vld [vmem:[#allocation2 + $0x70] sm:$0xff]
    %v770 = vld [vmem:[#allocation2 + $0x78] sm:$0xff]
    %v771 = vld [vmem:[#allocation2 + $0x80] sm:$0xff]
    %v772 = vld [vmem:[#allocation2 + $0x88] sm:$0xff]
    %v773 = vld [vmem:[#allocation2 + $0x90] sm:$0xff]
    %v774 = vld [vmem:[#allocation2 + $0x98] sm:$0xff]
    %v775 = vld [vmem:[#allocation2 + $0xa0] sm:$0xff]
    %v776 = vld [vmem:[#allocation2 + $0xa8] sm:$0xff]
    %v777 = vld [vmem:[#allocation2 + $0xb0] sm:$0xff]
    %v778 = vld [vmem:[#allocation2 + $0xb8] sm:$0xff]
    %v779 = vld [vmem:[#allocation2 + $0xc0] sm:$0xff]
    %v780 = vld [vmem:[#allocation2 + $0xc8] sm:$0xff]
    %v781 = vld [vmem:[#allocation2 + $0xd0] sm:$0xff]
    %v782 = vld [vmem:[#allocation2 + $0xd8] sm:$0xff]
    %v783 = vld [vmem:[#allocation2 + $0xe0] sm:$0xff]
    %v784 = vld [vmem:[#allocation2 + $0xe8] sm:$0xff]
    %v785 = vld [vmem:[#allocation2 + $0xf0] sm:$0xff]
    %v786 = vld [vmem:[#allocation2 + $0xf8] sm:$0xff]
    %v787 = vld [vmem:[#allocation2 + $0x100] sm:$0xff]
    %v788 = vld [vmem:[#allocation2 + $0x108] sm:$0xff]
    %v789 = vld [vmem:[#allocation2 + $0x110] sm:$0xff]
    %v790 = vld [vmem:[#allocation2 + $0x118] sm:$0xff]
    %v791 = vld [vmem:[#allocation2 + $0x120] sm:$0xff]
    %v792 = vld [vmem:[#allocation2 + $0x128] sm:$0xff]
    %v793 = vld [vmem:[#allocation2 + $0x130] sm:$0xff]
    %v794 = vld [vmem:[#allocation2 + $0x138] sm:$0xff]
    %v795 = vld [vmem:[#allocation2 + $0x140] sm:$0xff]
    %v796 = vld [vmem:[#allocation2 + $0x148] sm:$0xff]
    %v797 = vld [vmem:[#allocation2 + $0x150] sm:$0xff]
    %v798 = vld [vmem:[#allocation2 + $0x158] sm:$0xff]
    %v799 = vld [vmem:[#allocation2 + $0x160] sm:$0xff]
    %v800 = vld [vmem:[#allocation2 + $0x168] sm:$0xff]
    %v801 = vld [vmem:[#allocation2 + $0x170] sm:$0xff]
    %v802 = vld [vmem:[#allocation2 + $0x178] sm:$0xff]
    %v803 = vld [vmem:[#allocation2 + $0x180] sm:$0xff]
    %v804 = vld [vmem:[#allocation2 + $0x188] sm:$0xff]
    %v805 = vld [vmem:[#allocation2 + $0x190] sm:$0xff]
    %v806 = vld [vmem:[#allocation2 + $0x198] sm:$0xff]
    %v807 = vld [vmem:[#allocation2 + $0x1a0] sm:$0xff]
    %v808 = vld [vmem:[#allocation2 + $0x1a8] sm:$0xff]
    %v809 = vld [vmem:[#allocation2 + $0x1b0] sm:$0xff]
    %v810 = vld [vmem:[#allocation2 + $0x1b8] sm:$0xff]
    %v811 = vld [vmem:[#allocation2 + $0x1c0] sm:$0xff]
    %v812 = vld [vmem:[#allocation2 + $0x1c8] sm:$0xff]
    %v813 = vld [vmem:[#allocation2 + $0x1d0] sm:$0xff]
    %v814 = vld [vmem:[#allocation2 + $0x1d8] sm:$0xff]
    %v815 = vld [vmem:[#allocation2 + $0x1e0] sm:$0xff]
    %v816 = vld [vmem:[#allocation2 + $0x1e8] sm:$0xff]
    %v817 = vld [vmem:[#allocation2 + $0x1f0] sm:$0xff]
    %v818 = vld [vmem:[#allocation2 + $0x1f8] sm:$0xff]
    %v819 = vld [vmem:[#allocation2 + $0x200] sm:$0xff]
    %v820 = vld [vmem:[#allocation2 + $0x208] sm:$0xff]
    %v821 = vld [vmem:[#allocation2 + $0x210] sm:$0xff]
    %v822 = vld [vmem:[#allocation2 + $0x218] sm:$0xff]
    %v823 = vld [vmem:[#allocation2 + $0x220] sm:$0xff]
    %v824 = vld [vmem:[#allocation2 + $0x228] sm:$0xff]
    %v825 = vld [vmem:[#allocation2 + $0x230] sm:$0xff]
    %v826 = vld [vmem:[#allocation2 + $0x238] sm:$0xff]
    %v827 = vld [vmem:[#allocation2 + $0x240] sm:$0xff]
    %v828 = vld [vmem:[#allocation2 + $0x248] sm:$0xff]
    %v829 = vld [vmem:[#allocation2 + $0x250] sm:$0xff]
    %v830 = vld [vmem:[#allocation2 + $0x258] sm:$0xff]
    %v831 = vld [vmem:[#allocation2 + $0x260] sm:$0xff]
    %v832 = vld [vmem:[#allocation2 + $0x268] sm:$0xff]
    %v833 = vld [vmem:[#allocation2 + $0x270] sm:$0xff]
    %v834 = vld [vmem:[#allocation2 + $0x278] sm:$0xff]
    %v835 = vld [vmem:[#allocation2 + $0x280] sm:$0xff]
    %v836 = vld [vmem:[#allocation2 + $0x288] sm:$0xff]
    %v837 = vld [vmem:[#allocation2 + $0x290] sm:$0xff]
    %v838 = vld [vmem:[#allocation2 + $0x298] sm:$0xff]
    %v839 = vld [vmem:[#allocation2 + $0x2a0] sm:$0xff]
    %v840 = vld [vmem:[#allocation2 + $0x2a8] sm:$0xff]
    %v841 = vld [vmem:[#allocation2 + $0x2b0] sm:$0xff]
    %v842 = vld [vmem:[#allocation2 + $0x2b8] sm:$0xff]
    %v843 = vld [vmem:[#allocation2 + $0x2c0] sm:$0xff]
    %v844 = vld [vmem:[#allocation2 + $0x2c8] sm:$0xff]
    %v845 = vld [vmem:[#allocation2 + $0x2d0] sm:$0xff]
    %v846 = vld [vmem:[#allocation2 + $0x2d8] sm:$0xff]
    %v847 = vld [vmem:[#allocation2 + $0x2e0] sm:$0xff]
    %v848 = vld [vmem:[#allocation2 + $0x2e8] sm:$0xff]
    %v849 = vld [vmem:[#allocation2 + $0x2f0] sm:$0xff]
    %v850 = vld [vmem:[#allocation2 + $0x2f8] sm:$0xff]
    %v851 = vld [vmem:[#allocation2 + $0x300] sm:$0xff]
    %v852 = vld [vmem:[#allocation2 + $0x308] sm:$0xff]
    %v853 = vld [vmem:[#allocation2 + $0x310] sm:$0xff]
    %v854 = vld [vmem:[#allocation2 + $0x318] sm:$0xff]
    %v855 = vld [vmem:[#allocation2 + $0x320] sm:$0xff]
    %v856 = vld [vmem:[#allocation2 + $0x328] sm:$0xff]
    %v857 = vld [vmem:[#allocation2 + $0x330] sm:$0xff]
    %v858 = vld [vmem:[#allocation2 + $0x338] sm:$0xff]
    %v859 = vld [vmem:[#allocation2 + $0x340] sm:$0xff]
    %v860 = vld [vmem:[#allocation2 + $0x348] sm:$0xff]
    %v861 = vld [vmem:[#allocation2 + $0x350] sm:$0xff]
    %v862 = vld [vmem:[#allocation2 + $0x358] sm:$0xff]
    %v863 = vld [vmem:[#allocation2 + $0x360] sm:$0xff]
    %v864 = vld [vmem:[#allocation2 + $0x368] sm:$0xff]
    %v865 = vld [vmem:[#allocation2 + $0x370] sm:$0xff]
    %v866 = vld [vmem:[#allocation2 + $0x378] sm:$0xff]
    %v867 = vld [vmem:[#allocation2 + $0x380] sm:$0xff]
    %v868 = vld [vmem:[#allocation2 + $0x388] sm:$0xff]
    %v869 = vld [vmem:[#allocation2 + $0x390] sm:$0xff]
    %v870 = vld [vmem:[#allocation2 + $0x398] sm:$0xff]
    %v871 = vld [vmem:[#allocation2 + $0x3a0] sm:$0xff]
    %v872 = vld [vmem:[#allocation2 + $0x3a8] sm:$0xff]
    %v873 = vld [vmem:[#allocation2 + $0x3b0] sm:$0xff]
    %v874 = vld [vmem:[#allocation2 + $0x3b8] sm:$0xff]
    %v875 = vld [vmem:[#allocation2 + $0x3c0] sm:$0xff]
    %v876 = vld [vmem:[#allocation2 + $0x3c8] sm:$0xff]
    %v877 = vld [vmem:[#allocation2 + $0x3d0] sm:$0xff]
    %v878 = vld [vmem:[#allocation2 + $0x3d8] sm:$0xff]
    %v879 = vld [vmem:[#allocation2 + $0x3e0] sm:$0xff]
    %v880 = vld [vmem:[#allocation2 + $0x3e8] sm:$0xff]
    %v881 = vld [vmem:[#allocation2 + $0x3f0] sm:$0xff]
    %v882 = vld [vmem:[#allocation2 + $0x3f8] sm:$0xff]
    %s883 = sshll.u32 %s750, 4
    %884 = dma.done %s81, %s883
    %v885 = vld [vmem:[#allocation3 + $0x10] sm:$0xff]
    %v886 = vld [vmem:[#allocation3 + $0x18] sm:$0xff]
    %v887 = vld [vmem:[#allocation2 + $0x400] sm:$0xff]
    %v888 = vld [vmem:[#allocation2 + $0x408] sm:$0xff]
    %v889 = vld [vmem:[#allocation2 + $0x410] sm:$0xff]
    %v890 = vld [vmem:[#allocation2 + $0x418] sm:$0xff]
    %v891 = vld [vmem:[#allocation2 + $0x420] sm:$0xff]
    %v892 = vld [vmem:[#allocation2 + $0x428] sm:$0xff]
    %v893 = vld [vmem:[#allocation2 + $0x430] sm:$0xff]
    %v894 = vld [vmem:[#allocation2 + $0x438] sm:$0xff]
    %v895 = vld [vmem:[#allocation2 + $0x440] sm:$0xff]
    %v896 = vld [vmem:[#allocation2 + $0x448] sm:$0xff]
    %v897 = vld [vmem:[#allocation2 + $0x450] sm:$0xff]
    %v898 = vld [vmem:[#allocation2 + $0x458] sm:$0xff]
    %v899 = vld [vmem:[#allocation2 + $0x460] sm:$0xff]
    %v900 = vld [vmem:[#allocation2 + $0x468] sm:$0xff]
    %v901 = vld [vmem:[#allocation2 + $0x470] sm:$0xff]
    %v902 = vld [vmem:[#allocation2 + $0x478] sm:$0xff]
    %v903 = vld [vmem:[#allocation2 + $0x480] sm:$0xff]
    %v904 = vld [vmem:[#allocation2 + $0x488] sm:$0xff]
    %v905 = vld [vmem:[#allocation2 + $0x490] sm:$0xff]
    %v906 = vld [vmem:[#allocation2 + $0x498] sm:$0xff]
    %v907 = vld [vmem:[#allocation2 + $0x4a0] sm:$0xff]
    %v908 = vld [vmem:[#allocation2 + $0x4a8] sm:$0xff]
    %v909 = vld [vmem:[#allocation2 + $0x4b0] sm:$0xff]
    %v910 = vld [vmem:[#allocation2 + $0x4b8] sm:$0xff]
    %v911 = vld [vmem:[#allocation2 + $0x4c0] sm:$0xff]
    %v912 = vld [vmem:[#allocation2 + $0x4c8] sm:$0xff]
    %v913 = vld [vmem:[#allocation2 + $0x4d0] sm:$0xff]
    %v914 = vld [vmem:[#allocation2 + $0x4d8] sm:$0xff]
    %v915 = vld [vmem:[#allocation2 + $0x4e0] sm:$0xff]
    %v916 = vld [vmem:[#allocation2 + $0x4e8] sm:$0xff]
    %v917 = vld [vmem:[#allocation2 + $0x4f0] sm:$0xff]
    %v918 = vld [vmem:[#allocation2 + $0x4f8] sm:$0xff]
    %v919 = vld [vmem:[#allocation2 + $0x500] sm:$0xff]
    %v920 = vld [vmem:[#allocation2 + $0x508] sm:$0xff]
    %v921 = vld [vmem:[#allocation2 + $0x510] sm:$0xff]
    %v922 = vld [vmem:[#allocation2 + $0x518] sm:$0xff]
    %v923 = vld [vmem:[#allocation2 + $0x520] sm:$0xff]
    %v924 = vld [vmem:[#allocation2 + $0x528] sm:$0xff]
    %v925 = vld [vmem:[#allocation2 + $0x530] sm:$0xff]
    %v926 = vld [vmem:[#allocation2 + $0x538] sm:$0xff]
    %v927 = vld [vmem:[#allocation2 + $0x540] sm:$0xff]
    %v928 = vld [vmem:[#allocation2 + $0x548] sm:$0xff]
    %v929 = vld [vmem:[#allocation2 + $0x550] sm:$0xff]
    %v930 = vld [vmem:[#allocation2 + $0x558] sm:$0xff]
    %v931 = vld [vmem:[#allocation2 + $0x560] sm:$0xff]
    %v932 = vld [vmem:[#allocation2 + $0x568] sm:$0xff]
    %v933 = vld [vmem:[#allocation2 + $0x570] sm:$0xff]
    %v934 = vld [vmem:[#allocation2 + $0x578] sm:$0xff]
    %v935 = vld [vmem:[#allocation2 + $0x580] sm:$0xff]
    %v936 = vld [vmem:[#allocation2 + $0x588] sm:$0xff]
    %v937 = vld [vmem:[#allocation2 + $0x590] sm:$0xff]
    %v938 = vld [vmem:[#allocation2 + $0x598] sm:$0xff]
    %v939 = vld [vmem:[#allocation2 + $0x5a0] sm:$0xff]
    %v940 = vld [vmem:[#allocation2 + $0x5a8] sm:$0xff]
    %v941 = vld [vmem:[#allocation2 + $0x5b0] sm:$0xff]
    %v942 = vld [vmem:[#allocation2 + $0x5b8] sm:$0xff]
    %v943 = vld [vmem:[#allocation2 + $0x5c0] sm:$0xff]
    %v944 = vld [vmem:[#allocation2 + $0x5c8] sm:$0xff]
    %v945 = vld [vmem:[#allocation2 + $0x5d0] sm:$0xff]
    %v946 = vld [vmem:[#allocation2 + $0x5d8] sm:$0xff]
    %v947 = vld [vmem:[#allocation2 + $0x5e0] sm:$0xff]
    %v948 = vld [vmem:[#allocation2 + $0x5e8] sm:$0xff]
    %v949 = vld [vmem:[#allocation2 + $0x5f0] sm:$0xff]
    %v950 = vld [vmem:[#allocation2 + $0x5f8] sm:$0xff]
    %v951 = vld [vmem:[#allocation2 + $0x600] sm:$0xff]
    %v952 = vld [vmem:[#allocation2 + $0x608] sm:$0xff]
    %v953 = vld [vmem:[#allocation2 + $0x610] sm:$0xff]
    %v954 = vld [vmem:[#allocation2 + $0x618] sm:$0xff]
    %v955 = vld [vmem:[#allocation2 + $0x620] sm:$0xff]
    %v956 = vld [vmem:[#allocation2 + $0x628] sm:$0xff]
    %v957 = vld [vmem:[#allocation2 + $0x630] sm:$0xff]
    %v958 = vld [vmem:[#allocation2 + $0x638] sm:$0xff]
    %v959 = vld [vmem:[#allocation2 + $0x640] sm:$0xff]
    %v960 = vld [vmem:[#allocation2 + $0x648] sm:$0xff]
    %v961 = vld [vmem:[#allocation2 + $0x650] sm:$0xff]
    %v962 = vld [vmem:[#allocation2 + $0x658] sm:$0xff]
    %v963 = vld [vmem:[#allocation2 + $0x660] sm:$0xff]
    %v964 = vld [vmem:[#allocation2 + $0x668] sm:$0xff]
    %v965 = vld [vmem:[#allocation2 + $0x670] sm:$0xff]
    %v966 = vld [vmem:[#allocation2 + $0x678] sm:$0xff]
    %v967 = vld [vmem:[#allocation2 + $0x680] sm:$0xff]
    %v968 = vld [vmem:[#allocation2 + $0x688] sm:$0xff]
    %v969 = vld [vmem:[#allocation2 + $0x690] sm:$0xff]
    %v970 = vld [vmem:[#allocation2 + $0x698] sm:$0xff]
    %v971 = vld [vmem:[#allocation2 + $0x6a0] sm:$0xff]
    %v972 = vld [vmem:[#allocation2 + $0x6a8] sm:$0xff]
    %v973 = vld [vmem:[#allocation2 + $0x6b0] sm:$0xff]
    %v974 = vld [vmem:[#allocation2 + $0x6b8] sm:$0xff]
    %v975 = vld [vmem:[#allocation2 + $0x6c0] sm:$0xff]
    %v976 = vld [vmem:[#allocation2 + $0x6c8] sm:$0xff]
    %v977 = vld [vmem:[#allocation2 + $0x6d0] sm:$0xff]
    %v978 = vld [vmem:[#allocation2 + $0x6d8] sm:$0xff]
    %v979 = vld [vmem:[#allocation2 + $0x6e0] sm:$0xff]
    %v980 = vld [vmem:[#allocation2 + $0x6e8] sm:$0xff]
    %v981 = vld [vmem:[#allocation2 + $0x6f0] sm:$0xff]
    %v982 = vld [vmem:[#allocation2 + $0x6f8] sm:$0xff]
    %v983 = vld [vmem:[#allocation2 + $0x700] sm:$0xff]
    %v984 = vld [vmem:[#allocation2 + $0x708] sm:$0xff]
    %v985 = vld [vmem:[#allocation2 + $0x710] sm:$0xff]
    %v986 = vld [vmem:[#allocation2 + $0x718] sm:$0xff]
    %v987 = vld [vmem:[#allocation2 + $0x720] sm:$0xff]
    %v988 = vld [vmem:[#allocation2 + $0x728] sm:$0xff]
    %v989 = vld [vmem:[#allocation2 + $0x730] sm:$0xff]
    %v990 = vld [vmem:[#allocation2 + $0x738] sm:$0xff]
    %v991 = vld [vmem:[#allocation2 + $0x740] sm:$0xff]
    %v992 = vld [vmem:[#allocation2 + $0x748] sm:$0xff]
    %v993 = vld [vmem:[#allocation2 + $0x750] sm:$0xff]
    %v994 = vld [vmem:[#allocation2 + $0x758] sm:$0xff]
    %v995 = vld [vmem:[#allocation2 + $0x760] sm:$0xff]
    %v996 = vld [vmem:[#allocation2 + $0x768] sm:$0xff]
    %v997 = vld [vmem:[#allocation2 + $0x770] sm:$0xff]
    %v998 = vld [vmem:[#allocation2 + $0x778] sm:$0xff]
    %v999 = vld [vmem:[#allocation2 + $0x780] sm:$0xff]
    %v1000 = vld [vmem:[#allocation2 + $0x788] sm:$0xff]
    %v1001 = vld [vmem:[#allocation2 + $0x790] sm:$0xff]
    %v1002 = vld [vmem:[#allocation2 + $0x798] sm:$0xff]
    %v1003 = vld [vmem:[#allocation2 + $0x7a0] sm:$0xff]
    %v1004 = vld [vmem:[#allocation2 + $0x7a8] sm:$0xff]
    %v1005 = vld [vmem:[#allocation2 + $0x7b0] sm:$0xff]
    %v1006 = vld [vmem:[#allocation2 + $0x7b8] sm:$0xff]
    %v1007 = vld [vmem:[#allocation2 + $0x7c0] sm:$0xff]
    %v1008 = vld [vmem:[#allocation2 + $0x7c8] sm:$0xff]
    %v1009 = vld [vmem:[#allocation2 + $0x7d0] sm:$0xff]
    %v1010 = vld [vmem:[#allocation2 + $0x7d8] sm:$0xff]
    %v1011 = vld [vmem:[#allocation2 + $0x7e0] sm:$0xff]
    %v1012 = vld [vmem:[#allocation2 + $0x7e8] sm:$0xff]
    %v1013 = vld [vmem:[#allocation2 + $0x7f0] sm:$0xff]
    %v1014 = vld [vmem:[#allocation2 + $0x7f8] sm:$0xff]
    %v1017 = vcombine.high %v885, %v885
    %v1019 = vunpack.c.l.s4 1983009808
    %v1020 = vunpack.c.0.s8 %v1019
    %v1021 = vlaneseq
    %v1022 = vshrl.u32 %v1021, 7
    %v1023 = vsub.s32 %v1020, %v1022
    %v1024 = vrot.slane %v885, %v1023
    %v1026 = vunpack.c.l.s4 1983009808
    %v1027 = vunpack.c.0.s8 %v1026
    %v1028 = vlaneseq
    %v1029 = vshrl.u32 %v1028, 7
    %v1030 = vsub.s32 %v1027, %v1029
    %v1031 = vrot.slane %v1017, %v1030
    %v1032 = vcombine.high %v1024, %v1024
    %v1033 = vcombine.high %v1031, %v1031
    %v1034 = vcombine.high %v886, %v886
    %v1036 = vunpack.c.l.s4 1983009808
    %v1037 = vunpack.c.0.s8 %v1036
    %v1038 = vlaneseq
    %v1039 = vshrl.u32 %v1038, 7
    %v1040 = vsub.s32 %v1037, %v1039
    %v1041 = vrot.slane %v886, %v1040
    %v1043 = vunpack.c.l.s4 1983009808
    %v1044 = vunpack.c.0.s8 %v1043
    %v1045 = vlaneseq
    %v1046 = vshrl.u32 %v1045, 7
    %v1047 = vsub.s32 %v1044, %v1046
    %v1048 = vrot.slane %v1034, %v1047
    %v1049 = vcombine.high %v1041, %v1041
    %v1050 = vcombine.high %v1048, %v1048
    %1059 = vmatprep.subr.mxu0 0.0
    %1060 = vmatpush1.msra.mxu0 %v887
    %1061 = vmatprep.subr.mxu0 0.0
    %1062 = vmatpush1.msra.mxu0 %v888
    %1063 = vmatprep.subr.mxu0 0.0
    %1064 = vmatpush1.msra.mxu0 %v889
    %1065 = vmatprep.subr.mxu0 0.0
    %1066 = vmatpush1.msra.mxu0 %v890
    %1067 = vmatprep.subr.mxu0 0.0
    %1068 = vmatpush1.msra.mxu0 %v891
    %1069 = vmatprep.subr.mxu0 0.0
    %1070 = vmatpush1.msra.mxu0 %v892
    %1071 = vmatprep.subr.mxu0 0.0
    %1072 = vmatpush1.msra.mxu0 %v893
    %1073 = vmatprep.subr.mxu0 0.0
    %1074 = vmatpush1.msra.mxu0 %v894
    %1075 = vmatprep.subr.mxu0 0.0
    %1076 = vmatpush1.msra.mxu0 %v895
    %1077 = vmatprep.subr.mxu0 0.0
    %1078 = vmatpush1.msra.mxu0 %v896
    %1079 = vmatprep.subr.mxu0 0.0
    %1080 = vmatpush1.msra.mxu0 %v897
    %1081 = vmatprep.subr.mxu0 0.0
    %1082 = vmatpush1.msra.mxu0 %v898
    %1083 = vmatprep.subr.mxu0 0.0
    %1084 = vmatpush1.msra.mxu0 %v899
    %1085 = vmatprep.subr.mxu0 0.0
    %1086 = vmatpush1.msra.mxu0 %v900
    %1087 = vmatprep.subr.mxu0 0.0
    %1088 = vmatpush1.msra.mxu0 %v901
    %1089 = vmatprep.subr.mxu0 0.0
    %1090 = vmatpush1.msra.mxu0 %v902
    %1091 = vmatprep.subr.mxu0 0.0
    %1092 = vmatpush1.msra.mxu0 %v903
    %1093 = vmatprep.subr.mxu0 0.0
    %1094 = vmatpush1.msra.mxu0 %v904
    %1095 = vmatprep.subr.mxu0 0.0
    %1096 = vmatpush1.msra.mxu0 %v905
    %1097 = vmatprep.subr.mxu0 0.0
    %1098 = vmatpush1.msra.mxu0 %v906
    %1099 = vmatprep.subr.mxu0 0.0
    %1100 = vmatpush1.msra.mxu0 %v907
    %1101 = vmatprep.subr.mxu0 0.0
    %1102 = vmatpush1.msra.mxu0 %v908
    %1103 = vmatprep.subr.mxu0 0.0
    %1104 = vmatpush1.msra.mxu0 %v909
    %1105 = vmatprep.subr.mxu0 0.0
    %1106 = vmatpush1.msra.mxu0 %v910
    %1107 = vmatprep.subr.mxu0 0.0
    %1108 = vmatpush1.msra.mxu0 %v911
    %1109 = vmatprep.subr.mxu0 0.0
    %1110 = vmatpush1.msra.mxu0 %v912
    %1111 = vmatprep.subr.mxu0 0.0
    %1112 = vmatpush1.msra.mxu0 %v913
    %1113 = vmatprep.subr.mxu0 0.0
    %1114 = vmatpush1.msra.mxu0 %v914
    %1115 = vmatprep.subr.mxu0 0.0
    %1116 = vmatpush1.msra.mxu0 %v915
    %1117 = vmatprep.subr.mxu0 0.0
    %1118 = vmatpush1.msra.mxu0 %v916
    %1119 = vmatprep.subr.mxu0 0.0
    %1120 = vmatpush1.msra.mxu0 %v917
    %1121 = vmatprep.subr.mxu0 0.0
    %1122 = vmatpush1.msra.mxu0 %v918
    %1123 = vmatprep.mubr.f32.mxu0 %v1032
    %1124 = vmatmul.mubr.f32.gmra.mrb[0].mxu0 %v1024
    %v1125 = vpop.f32.mrb[0].mxu0
    %v1126 = vadd.f32 0.0, %v1125
    %v1127 = vpop.f32.mrb[0].mxu0
    %1128 = vdwg.mxu0
    %1129 = vmatprep.subr.mxu0 0.0
    %1130 = vmatpush1.msra.mxu0 %v919
    %1131 = vmatprep.subr.mxu0 0.0
    %1132 = vmatpush1.msra.mxu0 %v920
    %1133 = vmatprep.subr.mxu0 0.0
    %1134 = vmatpush1.msra.mxu0 %v921
    %1135 = vmatprep.subr.mxu0 0.0
    %1136 = vmatpush1.msra.mxu0 %v922
    %1137 = vmatprep.subr.mxu0 0.0
    %1138 = vmatpush1.msra.mxu0 %v923
    %1139 = vmatprep.subr.mxu0 0.0
    %1140 = vmatpush1.msra.mxu0 %v924
    %1141 = vmatprep.subr.mxu0 0.0
    %1142 = vmatpush1.msra.mxu0 %v925
    %1143 = vmatprep.subr.mxu0 0.0
    %1144 = vmatpush1.msra.mxu0 %v926
    %1145 = vmatprep.subr.mxu0 0.0
    %1146 = vmatpush1.msra.mxu0 %v927
    %1147 = vmatprep.subr.mxu0 0.0
    %1148 = vmatpush1.msra.mxu0 %v928
    %1149 = vmatprep.subr.mxu0 0.0
    %1150 = vmatpush1.msra.mxu0 %v929
    %1151 = vmatprep.subr.mxu0 0.0
    %1152 = vmatpush1.msra.mxu0 %v930
    %1153 = vmatprep.subr.mxu0 0.0
    %1154 = vmatpush1.msra.mxu0 %v931
    %1155 = vmatprep.subr.mxu0 0.0
    %1156 = vmatpush1.msra.mxu0 %v932
    %1157 = vmatprep.subr.mxu0 0.0
    %1158 = vmatpush1.msra.mxu0 %v933
    %1159 = vmatprep.subr.mxu0 0.0
    %1160 = vmatpush1.msra.mxu0 %v934
    %1161 = vmatprep.subr.mxu0 0.0
    %1162 = vmatpush1.msra.mxu0 %v935
    %1163 = vmatprep.subr.mxu0 0.0
    %1164 = vmatpush1.msra.mxu0 %v936
    %1165 = vmatprep.subr.mxu0 0.0
    %1166 = vmatpush1.msra.mxu0 %v937
    %1167 = vmatprep.subr.mxu0 0.0
    %1168 = vmatpush1.msra.mxu0 %v938
    %1169 = vmatprep.subr.mxu0 0.0
    %1170 = vmatpush1.msra.mxu0 %v939
    %1171 = vmatprep.subr.mxu0 0.0
    %1172 = vmatpush1.msra.mxu0 %v940
    %1173 = vmatprep.subr.mxu0 0.0
    %1174 = vmatpush1.msra.mxu0 %v941
    %1175 = vmatprep.subr.mxu0 0.0
    %1176 = vmatpush1.msra.mxu0 %v942
    %1177 = vmatprep.subr.mxu0 0.0
    %1178 = vmatpush1.msra.mxu0 %v943
    %1179 = vmatprep.subr.mxu0 0.0
    %1180 = vmatpush1.msra.mxu0 %v944
    %1181 = vmatprep.subr.mxu0 0.0
    %1182 = vmatpush1.msra.mxu0 %v945
    %1183 = vmatprep.subr.mxu0 0.0
    %1184 = vmatpush1.msra.mxu0 %v946
    %1185 = vmatprep.subr.mxu0 0.0
    %1186 = vmatpush1.msra.mxu0 %v947
    %1187 = vmatprep.subr.mxu0 0.0
    %1188 = vmatpush1.msra.mxu0 %v948
    %1189 = vmatprep.subr.mxu0 0.0
    %1190 = vmatpush1.msra.mxu0 %v949
    %1191 = vmatprep.subr.mxu0 0.0
    %1192 = vmatpush1.msra.mxu0 %v950
    %1193 = vmatprep.mubr.f32.mxu0 %v1033
    %1194 = vmatmul.mubr.f32.gmra.mrb[0].mxu0 %v1031
    %v1195 = vpop.f32.mrb[0].mxu0
    %v1196 = vadd.f32 %v1126, %v1195
    %v1197 = vpop.f32.mrb[0].mxu0
    %1198 = vdwg.mxu0
    %1199 = vmatprep.subr.mxu0 0.0
    %1200 = vmatpush1.msra.mxu0 %v951
    %1201 = vmatprep.subr.mxu0 0.0
    %1202 = vmatpush1.msra.mxu0 %v952
    %1203 = vmatprep.subr.mxu0 0.0
    %1204 = vmatpush1.msra.mxu0 %v953
    %1205 = vmatprep.subr.mxu0 0.0
    %1206 = vmatpush1.msra.mxu0 %v954
    %1207 = vmatprep.subr.mxu0 0.0
    %1208 = vmatpush1.msra.mxu0 %v955
    %1209 = vmatprep.subr.mxu0 0.0
    %1210 = vmatpush1.msra.mxu0 %v956
    %1211 = vmatprep.subr.mxu0 0.0
    %1212 = vmatpush1.msra.mxu0 %v957
    %1213 = vmatprep.subr.mxu0 0.0
    %1214 = vmatpush1.msra.mxu0 %v958
    %1215 = vmatprep.subr.mxu0 0.0
    %1216 = vmatpush1.msra.mxu0 %v959
    %1217 = vmatprep.subr.mxu0 0.0
    %1218 = vmatpush1.msra.mxu0 %v960
    %1219 = vmatprep.subr.mxu0 0.0
    %1220 = vmatpush1.msra.mxu0 %v961
    %1221 = vmatprep.subr.mxu0 0.0
    %1222 = vmatpush1.msra.mxu0 %v962
    %1223 = vmatprep.subr.mxu0 0.0
    %1224 = vmatpush1.msra.mxu0 %v963
    %1225 = vmatprep.subr.mxu0 0.0
    %1226 = vmatpush1.msra.mxu0 %v964
    %1227 = vmatprep.subr.mxu0 0.0
    %1228 = vmatpush1.msra.mxu0 %v965
    %1229 = vmatprep.subr.mxu0 0.0
    %1230 = vmatpush1.msra.mxu0 %v966
    %1231 = vmatprep.subr.mxu0 0.0
    %1232 = vmatpush1.msra.mxu0 %v967
    %1233 = vmatprep.subr.mxu0 0.0
    %1234 = vmatpush1.msra.mxu0 %v968
    %1235 = vmatprep.subr.mxu0 0.0
    %1236 = vmatpush1.msra.mxu0 %v969
    %1237 = vmatprep.subr.mxu0 0.0
    %1238 = vmatpush1.msra.mxu0 %v970
    %1239 = vmatprep.subr.mxu0 0.0
    %1240 = vmatpush1.msra.mxu0 %v971
    %1241 = vmatprep.subr.mxu0 0.0
    %1242 = vmatpush1.msra.mxu0 %v972
    %1243 = vmatprep.subr.mxu0 0.0
    %1244 = vmatpush1.msra.mxu0 %v973
    %1245 = vmatprep.subr.mxu0 0.0
    %1246 = vmatpush1.msra.mxu0 %v974
    %1247 = vmatprep.subr.mxu0 0.0
    %1248 = vmatpush1.msra.mxu0 %v975
    %1249 = vmatprep.subr.mxu0 0.0
    %1250 = vmatpush1.msra.mxu0 %v976
    %1251 = vmatprep.subr.mxu0 0.0
    %1252 = vmatpush1.msra.mxu0 %v977
    %1253 = vmatprep.subr.mxu0 0.0
    %1254 = vmatpush1.msra.mxu0 %v978
    %1255 = vmatprep.subr.mxu0 0.0
    %1256 = vmatpush1.msra.mxu0 %v979
    %1257 = vmatprep.subr.mxu0 0.0
    %1258 = vmatpush1.msra.mxu0 %v980
    %1259 = vmatprep.subr.mxu0 0.0
    %1260 = vmatpush1.msra.mxu0 %v981
    %1261 = vmatprep.subr.mxu0 0.0
    %1262 = vmatpush1.msra.mxu0 %v982
    %1263 = vmatprep.mubr.f32.mxu0 %v1049
    %1264 = vmatmul.mubr.f32.gmra.mrb[0].mxu0 %v1041
    %v1265 = vpop.f32.mrb[0].mxu0
    %v1266 = vadd.f32 %v1196, %v1265
    %v1267 = vpop.f32.mrb[0].mxu0
    %1268 = vdwg.mxu0
    %1269 = vmatprep.subr.mxu0 0.0
    %1270 = vmatpush1.msra.mxu0 %v983
    %1271 = vmatprep.subr.mxu0 0.0
    %1272 = vmatpush1.msra.mxu0 %v984
    %1273 = vmatprep.subr.mxu0 0.0
    %1274 = vmatpush1.msra.mxu0 %v985
    %1275 = vmatprep.subr.mxu0 0.0
    %1276 = vmatpush1.msra.mxu0 %v986
    %1277 = vmatprep.subr.mxu0 0.0
    %1278 = vmatpush1.msra.mxu0 %v987
    %1279 = vmatprep.subr.mxu0 0.0
    %1280 = vmatpush1.msra.mxu0 %v988
    %1281 = vmatprep.subr.mxu0 0.0
    %1282 = vmatpush1.msra.mxu0 %v989
    %1283 = vmatprep.subr.mxu0 0.0
    %1284 = vmatpush1.msra.mxu0 %v990
    %1285 = vmatprep.subr.mxu0 0.0
    %1286 = vmatpush1.msra.mxu0 %v991
    %1287 = vmatprep.subr.mxu0 0.0
    %1288 = vmatpush1.msra.mxu0 %v992
    %1289 = vmatprep.subr.mxu0 0.0
    %1290 = vmatpush1.msra.mxu0 %v993
    %1291 = vmatprep.subr.mxu0 0.0
    %1292 = vmatpush1.msra.mxu0 %v994
    %1293 = vmatprep.subr.mxu0 0.0
    %1294 = vmatpush1.msra.mxu0 %v995
    %1295 = vmatprep.subr.mxu0 0.0
    %1296 = vmatpush1.msra.mxu0 %v996
    %1297 = vmatprep.subr.mxu0 0.0
    %1298 = vmatpush1.msra.mxu0 %v997
    %1299 = vmatprep.subr.mxu0 0.0
    %1300 = vmatpush1.msra.mxu0 %v998
    %1301 = vmatprep.subr.mxu0 0.0
    %1302 = vmatpush1.msra.mxu0 %v999
    %1303 = vmatprep.subr.mxu0 0.0
    %1304 = vmatpush1.msra.mxu0 %v1000
    %1305 = vmatprep.subr.mxu0 0.0
    %1306 = vmatpush1.msra.mxu0 %v1001
    %1307 = vmatprep.subr.mxu0 0.0
    %1308 = vmatpush1.msra.mxu0 %v1002
    %1309 = vmatprep.subr.mxu0 0.0
    %1310 = vmatpush1.msra.mxu0 %v1003
    %1311 = vmatprep.subr.mxu0 0.0
    %1312 = vmatpush1.msra.mxu0 %v1004
    %1313 = vmatprep.subr.mxu0 0.0
    %1314 = vmatpush1.msra.mxu0 %v1005
    %1315 = vmatprep.subr.mxu0 0.0
    %1316 = vmatpush1.msra.mxu0 %v1006
    %1317 = vmatprep.subr.mxu0 0.0
    %1318 = vmatpush1.msra.mxu0 %v1007
    %1319 = vmatprep.subr.mxu0 0.0
    %1320 = vmatpush1.msra.mxu0 %v1008
    %1321 = vmatprep.subr.mxu0 0.0
    %1322 = vmatpush1.msra.mxu0 %v1009
    %1323 = vmatprep.subr.mxu0 0.0
    %1324 = vmatpush1.msra.mxu0 %v1010
    %1325 = vmatprep.subr.mxu0 0.0
    %1326 = vmatpush1.msra.mxu0 %v1011
    %1327 = vmatprep.subr.mxu0 0.0
    %1328 = vmatpush1.msra.mxu0 %v1012
    %1329 = vmatprep.subr.mxu0 0.0
    %1330 = vmatpush1.msra.mxu0 %v1013
    %1331 = vmatprep.subr.mxu0 0.0
    %1332 = vmatpush1.msra.mxu0 %v1014
    %1333 = vmatprep.mubr.f32.mxu0 %v1050
    %1334 = vmatmul.mubr.f32.gmra.mrb[0].mxu0 %v1048
    %v1335 = vpop.f32.mrb[0].mxu0
    %v1336 = vadd.f32 %v1266, %v1335
    %v1337 = vpop.f32.mrb[0].mxu0
    %1338 = vdwg.mxu0
    %v1341 = vcombine.high %v753, %v753
    %v1343 = vunpack.c.l.s4 1983009808
    %v1344 = vunpack.c.0.s8 %v1343
    %v1345 = vlaneseq
    %v1346 = vshrl.u32 %v1345, 7
    %v1347 = vsub.s32 %v1344, %v1346
    %v1348 = vrot.slane %v753, %v1347
    %v1350 = vunpack.c.l.s4 1983009808
    %v1351 = vunpack.c.0.s8 %v1350
    %v1352 = vlaneseq
    %v1353 = vshrl.u32 %v1352, 7
    %v1354 = vsub.s32 %v1351, %v1353
    %v1355 = vrot.slane %v1341, %v1354
    %v1356 = vcombine.high %v1348, %v1348
    %v1357 = vcombine.high %v1355, %v1355
    %v1358 = vcombine.high %v754, %v754
    %v1360 = vunpack.c.l.s4 1983009808
    %v1361 = vunpack.c.0.s8 %v1360
    %v1362 = vlaneseq
    %v1363 = vshrl.u32 %v1362, 7
    %v1364 = vsub.s32 %v1361, %v1363
    %v1365 = vrot.slane %v754, %v1364
    %v1367 = vunpack.c.l.s4 1983009808
    %v1368 = vunpack.c.0.s8 %v1367
    %v1369 = vlaneseq
    %v1370 = vshrl.u32 %v1369, 7
    %v1371 = vsub.s32 %v1368, %v1370
    %v1372 = vrot.slane %v1358, %v1371
    %v1373 = vcombine.high %v1365, %v1365
    %v1374 = vcombine.high %v1372, %v1372
    %1383 = vmatprep.subr.mxu0 0.0
    %1384 = vmatpush1.msra.mxu0 %v755
    %1385 = vmatprep.subr.mxu0 0.0
    %1386 = vmatpush1.msra.mxu0 %v756
    %1387 = vmatprep.subr.mxu0 0.0
    %1388 = vmatpush1.msra.mxu0 %v757
    %1389 = vmatprep.subr.mxu0 0.0
    %1390 = vmatpush1.msra.mxu0 %v758
    %1391 = vmatprep.subr.mxu0 0.0
    %1392 = vmatpush1.msra.mxu0 %v759
    %1393 = vmatprep.subr.mxu0 0.0
    %1394 = vmatpush1.msra.mxu0 %v760
    %1395 = vmatprep.subr.mxu0 0.0
    %1396 = vmatpush1.msra.mxu0 %v761
    %1397 = vmatprep.subr.mxu0 0.0
    %1398 = vmatpush1.msra.mxu0 %v762
    %1399 = vmatprep.subr.mxu0 0.0
    %1400 = vmatpush1.msra.mxu0 %v763
    %1401 = vmatprep.subr.mxu0 0.0
    %1402 = vmatpush1.msra.mxu0 %v764
    %1403 = vmatprep.subr.mxu0 0.0
    %1404 = vmatpush1.msra.mxu0 %v765
    %1405 = vmatprep.subr.mxu0 0.0
    %1406 = vmatpush1.msra.mxu0 %v766
    %1407 = vmatprep.subr.mxu0 0.0
    %1408 = vmatpush1.msra.mxu0 %v767
    %1409 = vmatprep.subr.mxu0 0.0
    %1410 = vmatpush1.msra.mxu0 %v768
    %1411 = vmatprep.subr.mxu0 0.0
    %1412 = vmatpush1.msra.mxu0 %v769
    %1413 = vmatprep.subr.mxu0 0.0
    %1414 = vmatpush1.msra.mxu0 %v770
    %1415 = vmatprep.subr.mxu0 0.0
    %1416 = vmatpush1.msra.mxu0 %v771
    %1417 = vmatprep.subr.mxu0 0.0
    %1418 = vmatpush1.msra.mxu0 %v772
    %1419 = vmatprep.subr.mxu0 0.0
    %1420 = vmatpush1.msra.mxu0 %v773
    %1421 = vmatprep.subr.mxu0 0.0
    %1422 = vmatpush1.msra.mxu0 %v774
    %1423 = vmatprep.subr.mxu0 0.0
    %1424 = vmatpush1.msra.mxu0 %v775
    %1425 = vmatprep.subr.mxu0 0.0
    %1426 = vmatpush1.msra.mxu0 %v776
    %1427 = vmatprep.subr.mxu0 0.0
    %1428 = vmatpush1.msra.mxu0 %v777
    %1429 = vmatprep.subr.mxu0 0.0
    %1430 = vmatpush1.msra.mxu0 %v778
    %1431 = vmatprep.subr.mxu0 0.0
    %1432 = vmatpush1.msra.mxu0 %v779
    %1433 = vmatprep.subr.mxu0 0.0
    %1434 = vmatpush1.msra.mxu0 %v780
    %1435 = vmatprep.subr.mxu0 0.0
    %1436 = vmatpush1.msra.mxu0 %v781
    %1437 = vmatprep.subr.mxu0 0.0
    %1438 = vmatpush1.msra.mxu0 %v782
    %1439 = vmatprep.subr.mxu0 0.0
    %1440 = vmatpush1.msra.mxu0 %v783
    %1441 = vmatprep.subr.mxu0 0.0
    %1442 = vmatpush1.msra.mxu0 %v784
    %1443 = vmatprep.subr.mxu0 0.0
    %1444 = vmatpush1.msra.mxu0 %v785
    %1445 = vmatprep.subr.mxu0 0.0
    %1446 = vmatpush1.msra.mxu0 %v786
    %1447 = vmatprep.mubr.f32.mxu0 %v1356
    %1448 = vmatmul.mubr.f32.gmra.mrb[0].mxu0 %v1348
    %v1449 = vpop.f32.mrb[0].mxu0
    %v1450 = vadd.f32 %v1336, %v1449
    %v1451 = vpop.f32.mrb[0].mxu0
    %1452 = vdwg.mxu0
    %1453 = vmatprep.subr.mxu0 0.0
    %1454 = vmatpush1.msra.mxu0 %v787
    %1455 = vmatprep.subr.mxu0 0.0
    %1456 = vmatpush1.msra.mxu0 %v788
    %1457 = vmatprep.subr.mxu0 0.0
    %1458 = vmatpush1.msra.mxu0 %v789
    %1459 = vmatprep.subr.mxu0 0.0
    %1460 = vmatpush1.msra.mxu0 %v790
    %1461 = vmatprep.subr.mxu0 0.0
    %1462 = vmatpush1.msra.mxu0 %v791
    %1463 = vmatprep.subr.mxu0 0.0
    %1464 = vmatpush1.msra.mxu0 %v792
    %1465 = vmatprep.subr.mxu0 0.0
    %1466 = vmatpush1.msra.mxu0 %v793
    %1467 = vmatprep.subr.mxu0 0.0
    %1468 = vmatpush1.msra.mxu0 %v794
    %1469 = vmatprep.subr.mxu0 0.0
    %1470 = vmatpush1.msra.mxu0 %v795
    %1471 = vmatprep.subr.mxu0 0.0
    %1472 = vmatpush1.msra.mxu0 %v796
    %1473 = vmatprep.subr.mxu0 0.0
    %1474 = vmatpush1.msra.mxu0 %v797
    %1475 = vmatprep.subr.mxu0 0.0
    %1476 = vmatpush1.msra.mxu0 %v798
    %1477 = vmatprep.subr.mxu0 0.0
    %1478 = vmatpush1.msra.mxu0 %v799
    %1479 = vmatprep.subr.mxu0 0.0
    %1480 = vmatpush1.msra.mxu0 %v800
    %1481 = vmatprep.subr.mxu0 0.0
    %1482 = vmatpush1.msra.mxu0 %v801
    %1483 = vmatprep.subr.mxu0 0.0
    %1484 = vmatpush1.msra.mxu0 %v802
    %1485 = vmatprep.subr.mxu0 0.0
    %1486 = vmatpush1.msra.mxu0 %v803
    %1487 = vmatprep.subr.mxu0 0.0
    %1488 = vmatpush1.msra.mxu0 %v804
    %1489 = vmatprep.subr.mxu0 0.0
    %1490 = vmatpush1.msra.mxu0 %v805
    %1491 = vmatprep.subr.mxu0 0.0
    %1492 = vmatpush1.msra.mxu0 %v806
    %1493 = vmatprep.subr.mxu0 0.0
    %1494 = vmatpush1.msra.mxu0 %v807
    %1495 = vmatprep.subr.mxu0 0.0
    %1496 = vmatpush1.msra.mxu0 %v808
    %1497 = vmatprep.subr.mxu0 0.0
    %1498 = vmatpush1.msra.mxu0 %v809
    %1499 = vmatprep.subr.mxu0 0.0
    %1500 = vmatpush1.msra.mxu0 %v810
    %1501 = vmatprep.subr.mxu0 0.0
    %1502 = vmatpush1.msra.mxu0 %v811
    %1503 = vmatprep.subr.mxu0 0.0
    %1504 = vmatpush1.msra.mxu0 %v812
    %1505 = vmatprep.subr.mxu0 0.0
    %1506 = vmatpush1.msra.mxu0 %v813
    %1507 = vmatprep.subr.mxu0 0.0
    %1508 = vmatpush1.msra.mxu0 %v814
    %1509 = vmatprep.subr.mxu0 0.0
    %1510 = vmatpush1.msra.mxu0 %v815
    %1511 = vmatprep.subr.mxu0 0.0
    %1512 = vmatpush1.msra.mxu0 %v816
    %1513 = vmatprep.subr.mxu0 0.0
    %1514 = vmatpush1.msra.mxu0 %v817
    %1515 = vmatprep.subr.mxu0 0.0
    %1516 = vmatpush1.msra.mxu0 %v818
    %1517 = vmatprep.mubr.f32.mxu0 %v1357
    %1518 = vmatmul.mubr.f32.gmra.mrb[0].mxu0 %v1355
    %v1519 = vpop.f32.mrb[0].mxu0
    %v1520 = vadd.f32 %v1450, %v1519
    %v1521 = vpop.f32.mrb[0].mxu0
    %1522 = vdwg.mxu0
    %1523 = vmatprep.subr.mxu0 0.0
    %1524 = vmatpush1.msra.mxu0 %v819
    %1525 = vmatprep.subr.mxu0 0.0
    %1526 = vmatpush1.msra.mxu0 %v820
    %1527 = vmatprep.subr.mxu0 0.0
    %1528 = vmatpush1.msra.mxu0 %v821
    %1529 = vmatprep.subr.mxu0 0.0
    %1530 = vmatpush1.msra.mxu0 %v822
    %1531 = vmatprep.subr.mxu0 0.0
    %1532 = vmatpush1.msra.mxu0 %v823
    %1533 = vmatprep.subr.mxu0 0.0
    %1534 = vmatpush1.msra.mxu0 %v824
    %1535 = vmatprep.subr.mxu0 0.0
    %1536 = vmatpush1.msra.mxu0 %v825
    %1537 = vmatprep.subr.mxu0 0.0
    %1538 = vmatpush1.msra.mxu0 %v826
    %1539 = vmatprep.subr.mxu0 0.0
    %1540 = vmatpush1.msra.mxu0 %v827
    %1541 = vmatprep.subr.mxu0 0.0
    %1542 = vmatpush1.msra.mxu0 %v828
    %1543 = vmatprep.subr.mxu0 0.0
    %1544 = vmatpush1.msra.mxu0 %v829
    %1545 = vmatprep.subr.mxu0 0.0
    %1546 = vmatpush1.msra.mxu0 %v830
    %1547 = vmatprep.subr.mxu0 0.0
    %1548 = vmatpush1.msra.mxu0 %v831
    %1549 = vmatprep.subr.mxu0 0.0
    %1550 = vmatpush1.msra.mxu0 %v832
    %1551 = vmatprep.subr.mxu0 0.0
    %1552 = vmatpush1.msra.mxu0 %v833
    %1553 = vmatprep.subr.mxu0 0.0
    %1554 = vmatpush1.msra.mxu0 %v834
    %1555 = vmatprep.subr.mxu0 0.0
    %1556 = vmatpush1.msra.mxu0 %v835
    %1557 = vmatprep.subr.mxu0 0.0
    %1558 = vmatpush1.msra.mxu0 %v836
    %1559 = vmatprep.subr.mxu0 0.0
    %1560 = vmatpush1.msra.mxu0 %v837
    %1561 = vmatprep.subr.mxu0 0.0
    %1562 = vmatpush1.msra.mxu0 %v838
    %1563 = vmatprep.subr.mxu0 0.0
    %1564 = vmatpush1.msra.mxu0 %v839
    %1565 = vmatprep.subr.mxu0 0.0
    %1566 = vmatpush1.msra.mxu0 %v840
    %1567 = vmatprep.subr.mxu0 0.0
    %1568 = vmatpush1.msra.mxu0 %v841
    %1569 = vmatprep.subr.mxu0 0.0
    %1570 = vmatpush1.msra.mxu0 %v842
    %1571 = vmatprep.subr.mxu0 0.0
    %1572 = vmatpush1.msra.mxu0 %v843
    %1573 = vmatprep.subr.mxu0 0.0
    %1574 = vmatpush1.msra.mxu0 %v844
    %1575 = vmatprep.subr.mxu0 0.0
    %1576 = vmatpush1.msra.mxu0 %v845
    %1577 = vmatprep.subr.mxu0 0.0
    %1578 = vmatpush1.msra.mxu0 %v846
    %1579 = vmatprep.subr.mxu0 0.0
    %1580 = vmatpush1.msra.mxu0 %v847
    %1581 = vmatprep.subr.mxu0 0.0
    %1582 = vmatpush1.msra.mxu0 %v848
    %1583 = vmatprep.subr.mxu0 0.0
    %1584 = vmatpush1.msra.mxu0 %v849
    %1585 = vmatprep.subr.mxu0 0.0
    %1586 = vmatpush1.msra.mxu0 %v850
    %1587 = vmatprep.mubr.f32.mxu0 %v1373
    %1588 = vmatmul.mubr.f32.gmra.mrb[0].mxu0 %v1365
    %v1589 = vpop.f32.mrb[0].mxu0
    %v1590 = vadd.f32 %v1520, %v1589
    %v1591 = vpop.f32.mrb[0].mxu0
    %1592 = vdwg.mxu0
    %1593 = vmatprep.subr.mxu0 0.0
    %1594 = vmatpush1.msra.mxu0 %v851
    %1595 = vmatprep.subr.mxu0 0.0
    %1596 = vmatpush1.msra.mxu0 %v852
    %1597 = vmatprep.subr.mxu0 0.0
    %1598 = vmatpush1.msra.mxu0 %v853
    %1599 = vmatprep.subr.mxu0 0.0
    %1600 = vmatpush1.msra.mxu0 %v854
    %1601 = vmatprep.subr.mxu0 0.0
    %1602 = vmatpush1.msra.mxu0 %v855
    %1603 = vmatprep.subr.mxu0 0.0
    %1604 = vmatpush1.msra.mxu0 %v856
    %1605 = vmatprep.subr.mxu0 0.0
    %1606 = vmatpush1.msra.mxu0 %v857
    %1607 = vmatprep.subr.mxu0 0.0
    %1608 = vmatpush1.msra.mxu0 %v858
    %1609 = vmatprep.subr.mxu0 0.0
    %1610 = vmatpush1.msra.mxu0 %v859
    %1611 = vmatprep.subr.mxu0 0.0
    %1612 = vmatpush1.msra.mxu0 %v860
    %1613 = vmatprep.subr.mxu0 0.0
    %1614 = vmatpush1.msra.mxu0 %v861
    %1615 = vmatprep.subr.mxu0 0.0
    %1616 = vmatpush1.msra.mxu0 %v862
    %1617 = vmatprep.subr.mxu0 0.0
    %1618 = vmatpush1.msra.mxu0 %v863
    %1619 = vmatprep.subr.mxu0 0.0
    %1620 = vmatpush1.msra.mxu0 %v864
    %1621 = vmatprep.subr.mxu0 0.0
    %1622 = vmatpush1.msra.mxu0 %v865
    %1623 = vmatprep.subr.mxu0 0.0
    %1624 = vmatpush1.msra.mxu0 %v866
    %1625 = vmatprep.subr.mxu0 0.0
    %1626 = vmatpush1.msra.mxu0 %v867
    %1627 = vmatprep.subr.mxu0 0.0
    %1628 = vmatpush1.msra.mxu0 %v868
    %1629 = vmatprep.subr.mxu0 0.0
    %1630 = vmatpush1.msra.mxu0 %v869
    %1631 = vmatprep.subr.mxu0 0.0
    %1632 = vmatpush1.msra.mxu0 %v870
    %1633 = vmatprep.subr.mxu0 0.0
    %1634 = vmatpush1.msra.mxu0 %v871
    %1635 = vmatprep.subr.mxu0 0.0
    %1636 = vmatpush1.msra.mxu0 %v872
    %1637 = vmatprep.subr.mxu0 0.0
    %1638 = vmatpush1.msra.mxu0 %v873
    %1639 = vmatprep.subr.mxu0 0.0
    %1640 = vmatpush1.msra.mxu0 %v874
    %1641 = vmatprep.subr.mxu0 0.0
    %1642 = vmatpush1.msra.mxu0 %v875
    %1643 = vmatprep.subr.mxu0 0.0
    %1644 = vmatpush1.msra.mxu0 %v876
    %1645 = vmatprep.subr.mxu0 0.0
    %1646 = vmatpush1.msra.mxu0 %v877
    %1647 = vmatprep.subr.mxu0 0.0
    %1648 = vmatpush1.msra.mxu0 %v878
    %1649 = vmatprep.subr.mxu0 0.0
    %1650 = vmatpush1.msra.mxu0 %v879
    %1651 = vmatprep.subr.mxu0 0.0
    %1652 = vmatpush1.msra.mxu0 %v880
    %1653 = vmatprep.subr.mxu0 0.0
    %1654 = vmatpush1.msra.mxu0 %v881
    %1655 = vmatprep.subr.mxu0 0.0
    %1656 = vmatpush1.msra.mxu0 %v882
    %1657 = vmatprep.mubr.f32.mxu0 %v1374
    %1658 = vmatmul.mubr.f32.gmra.mrb[0].mxu0 %v1372
    %v1659 = vpop.f32.mrb[0].mxu0
    %v1660 = vadd.f32 %v1590, %v1659
    %v1661 = vpop.f32.mrb[0].mxu0
    %1662 = vdwg.mxu0
    %s1663 = sshll.u32 %s750, 4
    %1664 = dma.done %s95, %s1663
    %v1665 = vld [vmem:[#allocation3 + $0x20] sm:$0xff]
    %v1666 = vld [vmem:[#allocation3 + $0x28] sm:$0xff]
    %v1667 = vld [vmem:[#allocation2 + $0x800] sm:$0xff]
    %v1668 = vld [vmem:[#allocation2 + $0x808] sm:$0xff]
    %v1669 = vld [vmem:[#allocation2 + $0x810] sm:$0xff]
    %v1670 = vld [vmem:[#allocation2 + $0x818] sm:$0xff]
    %v1671 = vld [vmem:[#allocation2 + $0x820] sm:$0xff]
    %v1672 = vld [vmem:[#allocation2 + $0x828] sm:$0xff]
    %v1673 = vld [vmem:[#allocation2 + $0x830] sm:$0xff]
    %v1674 = vld [vmem:[#allocation2 + $0x838] sm:$0xff]
    %v1675 = vld [vmem:[#allocation2 + $0x840] sm:$0xff]
    %v1676 = vld [vmem:[#allocation2 + $0x848] sm:$0xff]
    %v1677 = vld [vmem:[#allocation2 + $0x850] sm:$0xff]
    %v1678 = vld [vmem:[#allocation2 + $0x858] sm:$0xff]
    %v1679 = vld [vmem:[#allocation2 + $0x860] sm:$0xff]
    %v1680 = vld [vmem:[#allocation2 + $0x868] sm:$0xff]
    %v1681 = vld [vmem:[#allocation2 + $0x870] sm:$0xff]
    %v1682 = vld [vmem:[#allocation2 + $0x878] sm:$0xff]
    %v1683 = vld [vmem:[#allocation2 + $0x880] sm:$0xff]
    %v1684 = vld [vmem:[#allocation2 + $0x888] sm:$0xff]
    %v1685 = vld [vmem:[#allocation2 + $0x890] sm:$0xff]
    %v1686 = vld [vmem:[#allocation2 + $0x898] sm:$0xff]
    %v1687 = vld [vmem:[#allocation2 + $0x8a0] sm:$0xff]
    %v1688 = vld [vmem:[#allocation2 + $0x8a8] sm:$0xff]
    %v1689 = vld [vmem:[#allocation2 + $0x8b0] sm:$0xff]
    %v1690 = vld [vmem:[#allocation2 + $0x8b8] sm:$0xff]
    %v1691 = vld [vmem:[#allocation2 + $0x8c0] sm:$0xff]
    %v1692 = vld [vmem:[#allocation2 + $0x8c8] sm:$0xff]
    %v1693 = vld [vmem:[#allocation2 + $0x8d0] sm:$0xff]
    %v1694 = vld [vmem:[#allocation2 + $0x8d8] sm:$0xff]
    %v1695 = vld [vmem:[#allocation2 + $0x8e0] sm:$0xff]
    %v1696 = vld [vmem:[#allocation2 + $0x8e8] sm:$0xff]
    %v1697 = vld [vmem:[#allocation2 + $0x8f0] sm:$0xff]
    %v1698 = vld [vmem:[#allocation2 + $0x8f8] sm:$0xff]
    %v1699 = vld [vmem:[#allocation2 + $0x900] sm:$0xff]
    %v1700 = vld [vmem:[#allocation2 + $0x908] sm:$0xff]
    %v1701 = vld [vmem:[#allocation2 + $0x910] sm:$0xff]
    %v1702 = vld [vmem:[#allocation2 + $0x918] sm:$0xff]
    %v1703 = vld [vmem:[#allocation2 + $0x920] sm:$0xff]
    %v1704 = vld [vmem:[#allocation2 + $0x928] sm:$0xff]
    %v1705 = vld [vmem:[#allocation2 + $0x930] sm:$0xff]
    %v1706 = vld [vmem:[#allocation2 + $0x938] sm:$0xff]
    %v1707 = vld [vmem:[#allocation2 + $0x940] sm:$0xff]
    %v1708 = vld [vmem:[#allocation2 + $0x948] sm:$0xff]
    %v1709 = vld [vmem:[#allocation2 + $0x950] sm:$0xff]
    %v1710 = vld [vmem:[#allocation2 + $0x958] sm:$0xff]
    %v1711 = vld [vmem:[#allocation2 + $0x960] sm:$0xff]
    %v1712 = vld [vmem:[#allocation2 + $0x968] sm:$0xff]
    %v1713 = vld [vmem:[#allocation2 + $0x970] sm:$0xff]
    %v1714 = vld [vmem:[#allocation2 + $0x978] sm:$0xff]
    %v1715 = vld [vmem:[#allocation2 + $0x980] sm:$0xff]
    %v1716 = vld [vmem:[#allocation2 + $0x988] sm:$0xff]
    %v1717 = vld [vmem:[#allocation2 + $0x990] sm:$0xff]
    %v1718 = vld [vmem:[#allocation2 + $0x998] sm:$0xff]
    %v1719 = vld [vmem:[#allocation2 + $0x9a0] sm:$0xff]
    %v1720 = vld [vmem:[#allocation2 + $0x9a8] sm:$0xff]
    %v1721 = vld [vmem:[#allocation2 + $0x9b0] sm:$0xff]
    %v1722 = vld [vmem:[#allocation2 + $0x9b8] sm:$0xff]
    %v1723 = vld [vmem:[#allocation2 + $0x9c0] sm:$0xff]
    %v1724 = vld [vmem:[#allocation2 + $0x9c8] sm:$0xff]
    %v1725 = vld [vmem:[#allocation2 + $0x9d0] sm:$0xff]
    %v1726 = vld [vmem:[#allocation2 + $0x9d8] sm:$0xff]
    %v1727 = vld [vmem:[#allocation2 + $0x9e0] sm:$0xff]
    %v1728 = vld [vmem:[#allocation2 + $0x9e8] sm:$0xff]
    %v1729 = vld [vmem:[#allocation2 + $0x9f0] sm:$0xff]
    %v1730 = vld [vmem:[#allocation2 + $0x9f8] sm:$0xff]
    %v1731 = vld [vmem:[#allocation2 + $0xa00] sm:$0xff]
    %v1732 = vld [vmem:[#allocation2 + $0xa08] sm:$0xff]
    %v1733 = vld [vmem:[#allocation2 + $0xa10] sm:$0xff]
    %v1734 = vld [vmem:[#allocation2 + $0xa18] sm:$0xff]
    %v1735 = vld [vmem:[#allocation2 + $0xa20] sm:$0xff]
    %v1736 = vld [vmem:[#allocation2 + $0xa28] sm:$0xff]
    %v1737 = vld [vmem:[#allocation2 + $0xa30] sm:$0xff]
    %v1738 = vld [vmem:[#allocation2 + $0xa38] sm:$0xff]
    %v1739 = vld [vmem:[#allocation2 + $0xa40] sm:$0xff]
    %v1740 = vld [vmem:[#allocation2 + $0xa48] sm:$0xff]
    %v1741 = vld [vmem:[#allocation2 + $0xa50] sm:$0xff]
    %v1742 = vld [vmem:[#allocation2 + $0xa58] sm:$0xff]
    %v1743 = vld [vmem:[#allocation2 + $0xa60] sm:$0xff]
    %v1744 = vld [vmem:[#allocation2 + $0xa68] sm:$0xff]
    %v1745 = vld [vmem:[#allocation2 + $0xa70] sm:$0xff]
    %v1746 = vld [vmem:[#allocation2 + $0xa78] sm:$0xff]
    %v1747 = vld [vmem:[#allocation2 + $0xa80] sm:$0xff]
    %v1748 = vld [vmem:[#allocation2 + $0xa88] sm:$0xff]
    %v1749 = vld [vmem:[#allocation2 + $0xa90] sm:$0xff]
    %v1750 = vld [vmem:[#allocation2 + $0xa98] sm:$0xff]
    %v1751 = vld [vmem:[#allocation2 + $0xaa0] sm:$0xff]
    %v1752 = vld [vmem:[#allocation2 + $0xaa8] sm:$0xff]
    %v1753 = vld [vmem:[#allocation2 + $0xab0] sm:$0xff]
    %v1754 = vld [vmem:[#allocation2 + $0xab8] sm:$0xff]
    %v1755 = vld [vmem:[#allocation2 + $0xac0] sm:$0xff]
    %v1756 = vld [vmem:[#allocation2 + $0xac8] sm:$0xff]
    %v1757 = vld [vmem:[#allocation2 + $0xad0] sm:$0xff]
    %v1758 = vld [vmem:[#allocation2 + $0xad8] sm:$0xff]
    %v1759 = vld [vmem:[#allocation2 + $0xae0] sm:$0xff]
    %v1760 = vld [vmem:[#allocation2 + $0xae8] sm:$0xff]
    %v1761 = vld [vmem:[#allocation2 + $0xaf0] sm:$0xff]
    %v1762 = vld [vmem:[#allocation2 + $0xaf8] sm:$0xff]
    %v1763 = vld [vmem:[#allocation2 + $0xb00] sm:$0xff]
    %v1764 = vld [vmem:[#allocation2 + $0xb08] sm:$0xff]
    %v1765 = vld [vmem:[#allocation2 + $0xb10] sm:$0xff]
    %v1766 = vld [vmem:[#allocation2 + $0xb18] sm:$0xff]
    %v1767 = vld [vmem:[#allocation2 + $0xb20] sm:$0xff]
    %v1768 = vld [vmem:[#allocation2 + $0xb28] sm:$0xff]
    %v1769 = vld [vmem:[#allocation2 + $0xb30] sm:$0xff]
    %v1770 = vld [vmem:[#allocation2 + $0xb38] sm:$0xff]
    %v1771 = vld [vmem:[#allocation2 + $0xb40] sm:$0xff]
    %v1772 = vld [vmem:[#allocation2 + $0xb48] sm:$0xff]
    %v1773 = vld [vmem:[#allocation2 + $0xb50] sm:$0xff]
    %v1774 = vld [vmem:[#allocation2 + $0xb58] sm:$0xff]
    %v1775 = vld [vmem:[#allocation2 + $0xb60] sm:$0xff]
    %v1776 = vld [vmem:[#allocation2 + $0xb68] sm:$0xff]
    %v1777 = vld [vmem:[#allocation2 + $0xb70] sm:$0xff]
    %v1778 = vld [vmem:[#allocation2 + $0xb78] sm:$0xff]
    %v1779 = vld [vmem:[#allocation2 + $0xb80] sm:$0xff]
    %v1780 = vld [vmem:[#allocation2 + $0xb88] sm:$0xff]
    %v1781 = vld [vmem:[#allocation2 + $0xb90] sm:$0xff]
    %v1782 = vld [vmem:[#allocation2 + $0xb98] sm:$0xff]
    %v1783 = vld [vmem:[#allocation2 + $0xba0] sm:$0xff]
    %v1784 = vld [vmem:[#allocation2 + $0xba8] sm:$0xff]
    %v1785 = vld [vmem:[#allocation2 + $0xbb0] sm:$0xff]
    %v1786 = vld [vmem:[#allocation2 + $0xbb8] sm:$0xff]
    %v1787 = vld [vmem:[#allocation2 + $0xbc0] sm:$0xff]
    %v1788 = vld [vmem:[#allocation2 + $0xbc8] sm:$0xff]
    %v1789 = vld [vmem:[#allocation2 + $0xbd0] sm:$0xff]
    %v1790 = vld [vmem:[#allocation2 + $0xbd8] sm:$0xff]
    %v1791 = vld [vmem:[#allocation2 + $0xbe0] sm:$0xff]
    %v1792 = vld [vmem:[#allocation2 + $0xbe8] sm:$0xff]
    %v1793 = vld [vmem:[#allocation2 + $0xbf0] sm:$0xff]
    %v1794 = vld [vmem:[#allocation2 + $0xbf8] sm:$0xff]
    %v1797 = vcombine.high %v1665, %v1665
    %v1799 = vunpack.c.l.s4 1983009808
    %v1800 = vunpack.c.0.s8 %v1799
    %v1801 = vlaneseq
    %v1802 = vshrl.u32 %v1801, 7
    %v1803 = vsub.s32 %v1800, %v1802
    %v1804 = vrot.slane %v1665, %v1803
    %v1806 = vunpack.c.l.s4 1983009808
    %v1807 = vunpack.c.0.s8 %v1806
    %v1808 = vlaneseq
    %v1809 = vshrl.u32 %v1808, 7
    %v1810 = vsub.s32 %v1807, %v1809
    %v1811 = vrot.slane %v1797, %v1810
    %v1812 = vcombine.high %v1804, %v1804
    %v1813 = vcombine.high %v1811, %v1811
    %v1814 = vcombine.high %v1666, %v1666
    %v1816 = vunpack.c.l.s4 1983009808
    %v1817 = vunpack.c.0.s8 %v1816
    %v1818 = vlaneseq
    %v1819 = vshrl.u32 %v1818, 7
    %v1820 = vsub.s32 %v1817, %v1819
    %v1821 = vrot.slane %v1666, %v1820
    %v1823 = vunpack.c.l.s4 1983009808
    %v1824 = vunpack.c.0.s8 %v1823
    %v1825 = vlaneseq
    %v1826 = vshrl.u32 %v1825, 7
    %v1827 = vsub.s32 %v1824, %v1826
    %v1828 = vrot.slane %v1814, %v1827
    %v1829 = vcombine.high %v1821, %v1821
    %v1830 = vcombine.high %v1828, %v1828
    %1839 = vmatprep.subr.mxu0 0.0
    %1840 = vmatpush1.msra.mxu0 %v1667
    %1841 = vmatprep.subr.mxu0 0.0
    %1842 = vmatpush1.msra.mxu0 %v1668
    %1843 = vmatprep.subr.mxu0 0.0
    %1844 = vmatpush1.msra.mxu0 %v1669
    %1845 = vmatprep.subr.mxu0 0.0
    %1846 = vmatpush1.msra.mxu0 %v1670
    %1847 = vmatprep.subr.mxu0 0.0
    %1848 = vmatpush1.msra.mxu0 %v1671
    %1849 = vmatprep.subr.mxu0 0.0
    %1850 = vmatpush1.msra.mxu0 %v1672
    %1851 = vmatprep.subr.mxu0 0.0
    %1852 = vmatpush1.msra.mxu0 %v1673
    %1853 = vmatprep.subr.mxu0 0.0
    %1854 = vmatpush1.msra.mxu0 %v1674
    %1855 = vmatprep.subr.mxu0 0.0
    %1856 = vmatpush1.msra.mxu0 %v1675
    %1857 = vmatprep.subr.mxu0 0.0
    %1858 = vmatpush1.msra.mxu0 %v1676
    %1859 = vmatprep.subr.mxu0 0.0
    %1860 = vmatpush1.msra.mxu0 %v1677
    %1861 = vmatprep.subr.mxu0 0.0
    %1862 = vmatpush1.msra.mxu0 %v1678
    %1863 = vmatprep.subr.mxu0 0.0
    %1864 = vmatpush1.msra.mxu0 %v1679
    %1865 = vmatprep.subr.mxu0 0.0
    %1866 = vmatpush1.msra.mxu0 %v1680
    %1867 = vmatprep.subr.mxu0 0.0
    %1868 = vmatpush1.msra.mxu0 %v1681
    %1869 = vmatprep.subr.mxu0 0.0
    %1870 = vmatpush1.msra.mxu0 %v1682
    %1871 = vmatprep.subr.mxu0 0.0
    %1872 = vmatpush1.msra.mxu0 %v1683
    %1873 = vmatprep.subr.mxu0 0.0
    %1874 = vmatpush1.msra.mxu0 %v1684
    %1875 = vmatprep.subr.mxu0 0.0
    %1876 = vmatpush1.msra.mxu0 %v1685
    %1877 = vmatprep.subr.mxu0 0.0
    %1878 = vmatpush1.msra.mxu0 %v1686
    %1879 = vmatprep.subr.mxu0 0.0
    %1880 = vmatpush1.msra.mxu0 %v1687
    %1881 = vmatprep.subr.mxu0 0.0
    %1882 = vmatpush1.msra.mxu0 %v1688
    %1883 = vmatprep.subr.mxu0 0.0
    %1884 = vmatpush1.msra.mxu0 %v1689
    %1885 = vmatprep.subr.mxu0 0.0
    %1886 = vmatpush1.msra.mxu0 %v1690
    %1887 = vmatprep.subr.mxu0 0.0
    %1888 = vmatpush1.msra.mxu0 %v1691
    %1889 = vmatprep.subr.mxu0 0.0
    %1890 = vmatpush1.msra.mxu0 %v1692
    %1891 = vmatprep.subr.mxu0 0.0
    %1892 = vmatpush1.msra.mxu0 %v1693
    %1893 = vmatprep.subr.mxu0 0.0
    %1894 = vmatpush1.msra.mxu0 %v1694
    %1895 = vmatprep.subr.mxu0 0.0
    %1896 = vmatpush1.msra.mxu0 %v1695
    %1897 = vmatprep.subr.mxu0 0.0
    %1898 = vmatpush1.msra.mxu0 %v1696
    %1899 = vmatprep.subr.mxu0 0.0
    %1900 = vmatpush1.msra.mxu0 %v1697
    %1901 = vmatprep.subr.mxu0 0.0
    %1902 = vmatpush1.msra.mxu0 %v1698
    %1903 = vmatprep.mubr.f32.mxu0 %v1812
    %1904 = vmatmul.mubr.f32.gmra.mrb[0].mxu0 %v1804
    %v1905 = vpop.f32.mrb[0].mxu0
    %v1906 = vadd.f32 0.0, %v1905
    %v1907 = vpop.f32.mrb[0].mxu0
    %1908 = vdwg.mxu0
    %1909 = vmatprep.subr.mxu0 0.0
    %1910 = vmatpush1.msra.mxu0 %v1699
    %1911 = vmatprep.subr.mxu0 0.0
    %1912 = vmatpush1.msra.mxu0 %v1700
    %1913 = vmatprep.subr.mxu0 0.0
    %1914 = vmatpush1.msra.mxu0 %v1701
    %1915 = vmatprep.subr.mxu0 0.0
    %1916 = vmatpush1.msra.mxu0 %v1702
    %1917 = vmatprep.subr.mxu0 0.0
    %1918 = vmatpush1.msra.mxu0 %v1703
    %1919 = vmatprep.subr.mxu0 0.0
    %1920 = vmatpush1.msra.mxu0 %v1704
    %1921 = vmatprep.subr.mxu0 0.0
    %1922 = vmatpush1.msra.mxu0 %v1705
    %1923 = vmatprep.subr.mxu0 0.0
    %1924 = vmatpush1.msra.mxu0 %v1706
    %1925 = vmatprep.subr.mxu0 0.0
    %1926 = vmatpush1.msra.mxu0 %v1707
    %1927 = vmatprep.subr.mxu0 0.0
    %1928 = vmatpush1.msra.mxu0 %v1708
    %1929 = vmatprep.subr.mxu0 0.0
    %1930 = vmatpush1.msra.mxu0 %v1709
    %1931 = vmatprep.subr.mxu0 0.0
    %1932 = vmatpush1.msra.mxu0 %v1710
    %1933 = vmatprep.subr.mxu0 0.0
    %1934 = vmatpush1.msra.mxu0 %v1711
    %1935 = vmatprep.subr.mxu0 0.0
    %1936 = vmatpush1.msra.mxu0 %v1712
    %1937 = vmatprep.subr.mxu0 0.0
    %1938 = vmatpush1.msra.mxu0 %v1713
    %1939 = vmatprep.subr.mxu0 0.0
    %1940 = vmatpush1.msra.mxu0 %v1714
    %1941 = vmatprep.subr.mxu0 0.0
    %1942 = vmatpush1.msra.mxu0 %v1715
    %1943 = vmatprep.subr.mxu0 0.0
    %1944 = vmatpush1.msra.mxu0 %v1716
    %1945 = vmatprep.subr.mxu0 0.0
    %1946 = vmatpush1.msra.mxu0 %v1717
    %1947 = vmatprep.subr.mxu0 0.0
    %1948 = vmatpush1.msra.mxu0 %v1718
    %1949 = vmatprep.subr.mxu0 0.0
    %1950 = vmatpush1.msra.mxu0 %v1719
    %1951 = vmatprep.subr.mxu0 0.0
    %1952 = vmatpush1.msra.mxu0 %v1720
    %1953 = vmatprep.subr.mxu0 0.0
    %1954 = vmatpush1.msra.mxu0 %v1721
    %1955 = vmatprep.subr.mxu0 0.0
    %1956 = vmatpush1.msra.mxu0 %v1722
    %1957 = vmatprep.subr.mxu0 0.0
    %1958 = vmatpush1.msra.mxu0 %v1723
    %1959 = vmatprep.subr.mxu0 0.0
    %1960 = vmatpush1.msra.mxu0 %v1724
    %1961 = vmatprep.subr.mxu0 0.0
    %1962 = vmatpush1.msra.mxu0 %v1725
    %1963 = vmatprep.subr.mxu0 0.0
    %1964 = vmatpush1.msra.mxu0 %v1726
    %1965 = vmatprep.subr.mxu0 0.0
    %1966 = vmatpush1.msra.mxu0 %v1727
    %1967 = vmatprep.subr.mxu0 0.0
    %1968 = vmatpush1.msra.mxu0 %v1728
    %1969 = vmatprep.subr.mxu0 0.0
    %1970 = vmatpush1.msra.mxu0 %v1729
    %1971 = vmatprep.subr.mxu0 0.0
    %1972 = vmatpush1.msra.mxu0 %v1730
    %1973 = vmatprep.mubr.f32.mxu0 %v1813
    %1974 = vmatmul.mubr.f32.gmra.mrb[0].mxu0 %v1811
    %v1975 = vpop.f32.mrb[0].mxu0
    %v1976 = vadd.f32 %v1906, %v1975
    %v1977 = vpop.f32.mrb[0].mxu0
    %1978 = vdwg.mxu0
    %1979 = vmatprep.subr.mxu0 0.0
    %1980 = vmatpush1.msra.mxu0 %v1731
    %1981 = vmatprep.subr.mxu0 0.0
    %1982 = vmatpush1.msra.mxu0 %v1732
    %1983 = vmatprep.subr.mxu0 0.0
    %1984 = vmatpush1.msra.mxu0 %v1733
    %1985 = vmatprep.subr.mxu0 0.0
    %1986 = vmatpush1.msra.mxu0 %v1734
    %1987 = vmatprep.subr.mxu0 0.0
    %1988 = vmatpush1.msra.mxu0 %v1735
    %1989 = vmatprep.subr.mxu0 0.0
    %1990 = vmatpush1.msra.mxu0 %v1736
    %1991 = vmatprep.subr.mxu0 0.0
    %1992 = vmatpush1.msra.mxu0 %v1737
    %1993 = vmatprep.subr.mxu0 0.0
    %1994 = vmatpush1.msra.mxu0 %v1738
    %1995 = vmatprep.subr.mxu0 0.0
    %1996 = vmatpush1.msra.mxu0 %v1739
    %1997 = vmatprep.subr.mxu0 0.0
    %1998 = vmatpush1.msra.mxu0 %v1740
    %1999 = vmatprep.subr.mxu0 0.0
    %2000 = vmatpush1.msra.mxu0 %v1741
    %2001 = vmatprep.subr.mxu0 0.0
    %2002 = vmatpush1.msra.mxu0 %v1742
    %2003 = vmatprep.subr.mxu0 0.0
    %2004 = vmatpush1.msra.mxu0 %v1743
    %2005 = vmatprep.subr.mxu0 0.0
    %2006 = vmatpush1.msra.mxu0 %v1744
    %2007 = vmatprep.subr.mxu0 0.0
    %2008 = vmatpush1.msra.mxu0 %v1745
    %2009 = vmatprep.subr.mxu0 0.0
    %2010 = vmatpush1.msra.mxu0 %v1746
    %2011 = vmatprep.subr.mxu0 0.0
    %2012 = vmatpush1.msra.mxu0 %v1747
    %2013 = vmatprep.subr.mxu0 0.0
    %2014 = vmatpush1.msra.mxu0 %v1748
    %2015 = vmatprep.subr.mxu0 0.0
    %2016 = vmatpush1.msra.mxu0 %v1749
    %2017 = vmatprep.subr.mxu0 0.0
    %2018 = vmatpush1.msra.mxu0 %v1750
    %2019 = vmatprep.subr.mxu0 0.0
    %2020 = vmatpush1.msra.mxu0 %v1751
    %2021 = vmatprep.subr.mxu0 0.0
    %2022 = vmatpush1.msra.mxu0 %v1752
    %2023 = vmatprep.subr.mxu0 0.0
    %2024 = vmatpush1.msra.mxu0 %v1753
    %2025 = vmatprep.subr.mxu0 0.0
    %2026 = vmatpush1.msra.mxu0 %v1754
    %2027 = vmatprep.subr.mxu0 0.0
    %2028 = vmatpush1.msra.mxu0 %v1755
    %2029 = vmatprep.subr.mxu0 0.0
    %2030 = vmatpush1.msra.mxu0 %v1756
    %2031 = vmatprep.subr.mxu0 0.0
    %2032 = vmatpush1.msra.mxu0 %v1757
    %2033 = vmatprep.subr.mxu0 0.0
    %2034 = vmatpush1.msra.mxu0 %v1758
    %2035 = vmatprep.subr.mxu0 0.0
    %2036 = vmatpush1.msra.mxu0 %v1759
    %2037 = vmatprep.subr.mxu0 0.0
    %2038 = vmatpush1.msra.mxu0 %v1760
    %2039 = vmatprep.subr.mxu0 0.0
    %2040 = vmatpush1.msra.mxu0 %v1761
    %2041 = vmatprep.subr.mxu0 0.0
    %2042 = vmatpush1.msra.mxu0 %v1762
    %2043 = vmatprep.mubr.f32.mxu0 %v1829
    %2044 = vmatmul.mubr.f32.gmra.mrb[0].mxu0 %v1821
    %v2045 = vpop.f32.mrb[0].mxu0
    %v2046 = vadd.f32 %v1976, %v2045
    %v2047 = vpop.f32.mrb[0].mxu0
    %2048 = vdwg.mxu0
    %2049 = vmatprep.subr.mxu0 0.0
    %2050 = vmatpush1.msra.mxu0 %v1763
    %2051 = vmatprep.subr.mxu0 0.0
    %2052 = vmatpush1.msra.mxu0 %v1764
    %2053 = vmatprep.subr.mxu0 0.0
    %2054 = vmatpush1.msra.mxu0 %v1765
    %2055 = vmatprep.subr.mxu0 0.0
    %2056 = vmatpush1.msra.mxu0 %v1766
    %2057 = vmatprep.subr.mxu0 0.0
    %2058 = vmatpush1.msra.mxu0 %v1767
    %2059 = vmatprep.subr.mxu0 0.0
    %2060 = vmatpush1.msra.mxu0 %v1768
    %2061 = vmatprep.subr.mxu0 0.0
    %2062 = vmatpush1.msra.mxu0 %v1769
    %2063 = vmatprep.subr.mxu0 0.0
    %2064 = vmatpush1.msra.mxu0 %v1770
    %2065 = vmatprep.subr.mxu0 0.0
    %2066 = vmatpush1.msra.mxu0 %v1771
    %2067 = vmatprep.subr.mxu0 0.0
    %2068 = vmatpush1.msra.mxu0 %v1772
    %2069 = vmatprep.subr.mxu0 0.0
    %2070 = vmatpush1.msra.mxu0 %v1773
    %2071 = vmatprep.subr.mxu0 0.0
    %2072 = vmatpush1.msra.mxu0 %v1774
    %2073 = vmatprep.subr.mxu0 0.0
    %2074 = vmatpush1.msra.mxu0 %v1775
    %2075 = vmatprep.subr.mxu0 0.0
    %2076 = vmatpush1.msra.mxu0 %v1776
    %2077 = vmatprep.subr.mxu0 0.0
    %2078 = vmatpush1.msra.mxu0 %v1777
    %2079 = vmatprep.subr.mxu0 0.0
    %2080 = vmatpush1.msra.mxu0 %v1778
    %2081 = vmatprep.subr.mxu0 0.0
    %2082 = vmatpush1.msra.mxu0 %v1779
    %2083 = vmatprep.subr.mxu0 0.0
    %2084 = vmatpush1.msra.mxu0 %v1780
    %2085 = vmatprep.subr.mxu0 0.0
    %2086 = vmatpush1.msra.mxu0 %v1781
    %2087 = vmatprep.subr.mxu0 0.0
    %2088 = vmatpush1.msra.mxu0 %v1782
    %2089 = vmatprep.subr.mxu0 0.0
    %2090 = vmatpush1.msra.mxu0 %v1783
    %2091 = vmatprep.subr.mxu0 0.0
    %2092 = vmatpush1.msra.mxu0 %v1784
    %2093 = vmatprep.subr.mxu0 0.0
    %2094 = vmatpush1.msra.mxu0 %v1785
    %2095 = vmatprep.subr.mxu0 0.0
    %2096 = vmatpush1.msra.mxu0 %v1786
    %2097 = vmatprep.subr.mxu0 0.0
    %2098 = vmatpush1.msra.mxu0 %v1787
    %2099 = vmatprep.subr.mxu0 0.0
    %2100 = vmatpush1.msra.mxu0 %v1788
    %2101 = vmatprep.subr.mxu0 0.0
    %2102 = vmatpush1.msra.mxu0 %v1789
    %2103 = vmatprep.subr.mxu0 0.0
    %2104 = vmatpush1.msra.mxu0 %v1790
    %2105 = vmatprep.subr.mxu0 0.0
    %2106 = vmatpush1.msra.mxu0 %v1791
    %2107 = vmatprep.subr.mxu0 0.0
    %2108 = vmatpush1.msra.mxu0 %v1792
    %2109 = vmatprep.subr.mxu0 0.0
    %2110 = vmatpush1.msra.mxu0 %v1793
    %2111 = vmatprep.subr.mxu0 0.0
    %2112 = vmatpush1.msra.mxu0 %v1794
    %2113 = vmatprep.mubr.f32.mxu0 %v1830
    %2114 = vmatmul.mubr.f32.gmra.mrb[0].mxu0 %v1828
    %v2115 = vpop.f32.mrb[0].mxu0
    %v2116 = vadd.f32 %v2046, %v2115
    %v2117 = vpop.f32.mrb[0].mxu0
    %2118 = vdwg.mxu0
    %v2119 = vadd.f32 %v1660, %v2116
    %s2120 = sshll.u32 %s750, 4
    %2121 = dma.done %s109, %s2120
    %v2122 = vld [vmem:[#allocation3 + $0x30] sm:$0xff]
    %v2123 = vld [vmem:[#allocation3 + $0x38] sm:$0xff]
    %v2124 = vld [vmem:[#allocation2 + $0xc00] sm:$0xff]
    %v2125 = vld [vmem:[#allocation2 + $0xc08] sm:$0xff]
    %v2126 = vld [vmem:[#allocation2 + $0xc10] sm:$0xff]
    %v2127 = vld [vmem:[#allocation2 + $0xc18] sm:$0xff]
    %v2128 = vld [vmem:[#allocation2 + $0xc20] sm:$0xff]
    %v2129 = vld [vmem:[#allocation2 + $0xc28] sm:$0xff]
    %v2130 = vld [vmem:[#allocation2 + $0xc30] sm:$0xff]
    %v2131 = vld [vmem:[#allocation2 + $0xc38] sm:$0xff]
    %v2132 = vld [vmem:[#allocation2 + $0xc40] sm:$0xff]
    %v2133 = vld [vmem:[#allocation2 + $0xc48] sm:$0xff]
    %v2134 = vld [vmem:[#allocation2 + $0xc50] sm:$0xff]
    %v2135 = vld [vmem:[#allocation2 + $0xc58] sm:$0xff]
    %v2136 = vld [vmem:[#allocation2 + $0xc60] sm:$0xff]
    %v2137 = vld [vmem:[#allocation2 + $0xc68] sm:$0xff]
    %v2138 = vld [vmem:[#allocation2 + $0xc70] sm:$0xff]
    %v2139 = vld [vmem:[#allocation2 + $0xc78] sm:$0xff]
    %v2140 = vld [vmem:[#allocation2 + $0xc80] sm:$0xff]
    %v2141 = vld [vmem:[#allocation2 + $0xc88] sm:$0xff]
    %v2142 = vld [vmem:[#allocation2 + $0xc90] sm:$0xff]
    %v2143 = vld [vmem:[#allocation2 + $0xc98] sm:$0xff]
    %v2144 = vld [vmem:[#allocation2 + $0xca0] sm:$0xff]
    %v2145 = vld [vmem:[#allocation2 + $0xca8] sm:$0xff]
    %v2146 = vld [vmem:[#allocation2 + $0xcb0] sm:$0xff]
    %v2147 = vld [vmem:[#allocation2 + $0xcb8] sm:$0xff]
    %v2148 = vld [vmem:[#allocation2 + $0xcc0] sm:$0xff]
    %v2149 = vld [vmem:[#allocation2 + $0xcc8] sm:$0xff]
    %v2150 = vld [vmem:[#allocation2 + $0xcd0] sm:$0xff]
    %v2151 = vld [vmem:[#allocation2 + $0xcd8] sm:$0xff]
    %v2152 = vld [vmem:[#allocation2 + $0xce0] sm:$0xff]
    %v2153 = vld [vmem:[#allocation2 + $0xce8] sm:$0xff]
    %v2154 = vld [vmem:[#allocation2 + $0xcf0] sm:$0xff]
    %v2155 = vld [vmem:[#allocation2 + $0xcf8] sm:$0xff]
    %v2156 = vld [vmem:[#allocation2 + $0xd00] sm:$0xff]
    %v2157 = vld [vmem:[#allocation2 + $0xd08] sm:$0xff]
    %v2158 = vld [vmem:[#allocation2 + $0xd10] sm:$0xff]
    %v2159 = vld [vmem:[#allocation2 + $0xd18] sm:$0xff]
    %v2160 = vld [vmem:[#allocation2 + $0xd20] sm:$0xff]
    %v2161 = vld [vmem:[#allocation2 + $0xd28] sm:$0xff]
    %v2162 = vld [vmem:[#allocation2 + $0xd30] sm:$0xff]
    %v2163 = vld [vmem:[#allocation2 + $0xd38] sm:$0xff]
    %v2164 = vld [vmem:[#allocation2 + $0xd40] sm:$0xff]
    %v2165 = vld [vmem:[#allocation2 + $0xd48] sm:$0xff]
    %v2166 = vld [vmem:[#allocation2 + $0xd50] sm:$0xff]
    %v2167 = vld [vmem:[#allocation2 + $0xd58] sm:$0xff]
    %v2168 = vld [vmem:[#allocation2 + $0xd60] sm:$0xff]
    %v2169 = vld [vmem:[#allocation2 + $0xd68] sm:$0xff]
    %v2170 = vld [vmem:[#allocation2 + $0xd70] sm:$0xff]
    %v2171 = vld [vmem:[#allocation2 + $0xd78] sm:$0xff]
    %v2172 = vld [vmem:[#allocation2 + $0xd80] sm:$0xff]
    %v2173 = vld [vmem:[#allocation2 + $0xd88] sm:$0xff]
    %v2174 = vld [vmem:[#allocation2 + $0xd90] sm:$0xff]
    %v2175 = vld [vmem:[#allocation2 + $0xd98] sm:$0xff]
    %v2176 = vld [vmem:[#allocation2 + $0xda0] sm:$0xff]
    %v2177 = vld [vmem:[#allocation2 + $0xda8] sm:$0xff]
    %v2178 = vld [vmem:[#allocation2 + $0xdb0] sm:$0xff]
    %v2179 = vld [vmem:[#allocation2 + $0xdb8] sm:$0xff]
    %v2180 = vld [vmem:[#allocation2 + $0xdc0] sm:$0xff]
    %v2181 = vld [vmem:[#allocation2 + $0xdc8] sm:$0xff]
    %v2182 = vld [vmem:[#allocation2 + $0xdd0] sm:$0xff]
    %v2183 = vld [vmem:[#allocation2 + $0xdd8] sm:$0xff]
    %v2184 = vld [vmem:[#allocation2 + $0xde0] sm:$0xff]
    %v2185 = vld [vmem:[#allocation2 + $0xde8] sm:$0xff]
    %v2186 = vld [vmem:[#allocation2 + $0xdf0] sm:$0xff]
    %v2187 = vld [vmem:[#allocation2 + $0xdf8] sm:$0xff]
    %v2188 = vld [vmem:[#allocation2 + $0xe00] sm:$0xff]
    %v2189 = vld [vmem:[#allocation2 + $0xe08] sm:$0xff]
    %v2190 = vld [vmem:[#allocation2 + $0xe10] sm:$0xff]
    %v2191 = vld [vmem:[#allocation2 + $0xe18] sm:$0xff]
    %v2192 = vld [vmem:[#allocation2 + $0xe20] sm:$0xff]
    %v2193 = vld [vmem:[#allocation2 + $0xe28] sm:$0xff]
    %v2194 = vld [vmem:[#allocation2 + $0xe30] sm:$0xff]
    %v2195 = vld [vmem:[#allocation2 + $0xe38] sm:$0xff]
    %v2196 = vld [vmem:[#allocation2 + $0xe40] sm:$0xff]
    %v2197 = vld [vmem:[#allocation2 + $0xe48] sm:$0xff]
    %v2198 = vld [vmem:[#allocation2 + $0xe50] sm:$0xff]
    %v2199 = vld [vmem:[#allocation2 + $0xe58] sm:$0xff]
    %v2200 = vld [vmem:[#allocation2 + $0xe60] sm:$0xff]
    %v2201 = vld [vmem:[#allocation2 + $0xe68] sm:$0xff]
    %v2202 = vld [vmem:[#allocation2 + $0xe70] sm:$0xff]
    %v2203 = vld [vmem:[#allocation2 + $0xe78] sm:$0xff]
    %v2204 = vld [vmem:[#allocation2 + $0xe80] sm:$0xff]
    %v2205 = vld [vmem:[#allocation2 + $0xe88] sm:$0xff]
    %v2206 = vld [vmem:[#allocation2 + $0xe90] sm:$0xff]
    %v2207 = vld [vmem:[#allocation2 + $0xe98] sm:$0xff]
    %v2208 = vld [vmem:[#allocation2 + $0xea0] sm:$0xff]
    %v2209 = vld [vmem:[#allocation2 + $0xea8] sm:$0xff]
    %v2210 = vld [vmem:[#allocation2 + $0xeb0] sm:$0xff]
    %v2211 = vld [vmem:[#allocation2 + $0xeb8] sm:$0xff]
    %v2212 = vld [vmem:[#allocation2 + $0xec0] sm:$0xff]
    %v2213 = vld [vmem:[#allocation2 + $0xec8] sm:$0xff]
    %v2214 = vld [vmem:[#allocation2 + $0xed0] sm:$0xff]
    %v2215 = vld [vmem:[#allocation2 + $0xed8] sm:$0xff]
    %v2216 = vld [vmem:[#allocation2 + $0xee0] sm:$0xff]
    %v2217 = vld [vmem:[#allocation2 + $0xee8] sm:$0xff]
    %v2218 = vld [vmem:[#allocation2 + $0xef0] sm:$0xff]
    %v2219 = vld [vmem:[#allocation2 + $0xef8] sm:$0xff]
    %v2220 = vld [vmem:[#allocation2 + $0xf00] sm:$0xff]
    %v2221 = vld [vmem:[#allocation2 + $0xf08] sm:$0xff]
    %v2222 = vld [vmem:[#allocation2 + $0xf10] sm:$0xff]
    %v2223 = vld [vmem:[#allocation2 + $0xf18] sm:$0xff]
    %v2224 = vld [vmem:[#allocation2 + $0xf20] sm:$0xff]
    %v2225 = vld [vmem:[#allocation2 + $0xf28] sm:$0xff]
    %v2226 = vld [vmem:[#allocation2 + $0xf30] sm:$0xff]
    %v2227 = vld [vmem:[#allocation2 + $0xf38] sm:$0xff]
    %v2228 = vld [vmem:[#allocation2 + $0xf40] sm:$0xff]
    %v2229 = vld [vmem:[#allocation2 + $0xf48] sm:$0xff]
    %v2230 = vld [vmem:[#allocation2 + $0xf50] sm:$0xff]
    %v2231 = vld [vmem:[#allocation2 + $0xf58] sm:$0xff]
    %v2232 = vld [vmem:[#allocation2 + $0xf60] sm:$0xff]
    %v2233 = vld [vmem:[#allocation2 + $0xf68] sm:$0xff]
    %v2234 = vld [vmem:[#allocation2 + $0xf70] sm:$0xff]
    %v2235 = vld [vmem:[#allocation2 + $0xf78] sm:$0xff]
    %v2236 = vld [vmem:[#allocation2 + $0xf80] sm:$0xff]
    %v2237 = vld [vmem:[#allocation2 + $0xf88] sm:$0xff]
    %v2238 = vld [vmem:[#allocation2 + $0xf90] sm:$0xff]
    %v2239 = vld [vmem:[#allocation2 + $0xf98] sm:$0xff]
    %v2240 = vld [vmem:[#allocation2 + $0xfa0] sm:$0xff]
    %v2241 = vld [vmem:[#allocation2 + $0xfa8] sm:$0xff]
    %v2242 = vld [vmem:[#allocation2 + $0xfb0] sm:$0xff]
    %v2243 = vld [vmem:[#allocation2 + $0xfb8] sm:$0xff]
    %v2244 = vld [vmem:[#allocation2 + $0xfc0] sm:$0xff]
    %v2245 = vld [vmem:[#allocation2 + $0xfc8] sm:$0xff]
    %v2246 = vld [vmem:[#allocation2 + $0xfd0] sm:$0xff]
    %v2247 = vld [vmem:[#allocation2 + $0xfd8] sm:$0xff]
    %v2248 = vld [vmem:[#allocation2 + $0xfe0] sm:$0xff]
    %v2249 = vld [vmem:[#allocation2 + $0xfe8] sm:$0xff]
    %v2250 = vld [vmem:[#allocation2 + $0xff0] sm:$0xff]
    %v2251 = vld [vmem:[#allocation2 + $0xff8] sm:$0xff]
    %v2254 = vcombine.high %v2122, %v2122
    %v2256 = vunpack.c.l.s4 1983009808
    %v2257 = vunpack.c.0.s8 %v2256
    %v2258 = vlaneseq
    %v2259 = vshrl.u32 %v2258, 7
    %v2260 = vsub.s32 %v2257, %v2259
    %v2261 = vrot.slane %v2122, %v2260
    %v2263 = vunpack.c.l.s4 1983009808
    %v2264 = vunpack.c.0.s8 %v2263
    %v2265 = vlaneseq
    %v2266 = vshrl.u32 %v2265, 7
    %v2267 = vsub.s32 %v2264, %v2266
    %v2268 = vrot.slane %v2254, %v2267
    %v2269 = vcombine.high %v2261, %v2261
    %v2270 = vcombine.high %v2268, %v2268
    %v2271 = vcombine.high %v2123, %v2123
    %v2273 = vunpack.c.l.s4 1983009808
    %v2274 = vunpack.c.0.s8 %v2273
    %v2275 = vlaneseq
    %v2276 = vshrl.u32 %v2275, 7
    %v2277 = vsub.s32 %v2274, %v2276
    %v2278 = vrot.slane %v2123, %v2277
    %v2280 = vunpack.c.l.s4 1983009808
    %v2281 = vunpack.c.0.s8 %v2280
    %v2282 = vlaneseq
    %v2283 = vshrl.u32 %v2282, 7
    %v2284 = vsub.s32 %v2281, %v2283
    %v2285 = vrot.slane %v2271, %v2284
    %v2286 = vcombine.high %v2278, %v2278
    %v2287 = vcombine.high %v2285, %v2285
    %2296 = vmatprep.subr.mxu0 0.0
    %2297 = vmatpush1.msra.mxu0 %v2124
    %2298 = vmatprep.subr.mxu0 0.0
    %2299 = vmatpush1.msra.mxu0 %v2125
    %2300 = vmatprep.subr.mxu0 0.0
    %2301 = vmatpush1.msra.mxu0 %v2126
    %2302 = vmatprep.subr.mxu0 0.0
    %2303 = vmatpush1.msra.mxu0 %v2127
    %2304 = vmatprep.subr.mxu0 0.0
    %2305 = vmatpush1.msra.mxu0 %v2128
    %2306 = vmatprep.subr.mxu0 0.0
    %2307 = vmatpush1.msra.mxu0 %v2129
    %2308 = vmatprep.subr.mxu0 0.0
    %2309 = vmatpush1.msra.mxu0 %v2130
    %2310 = vmatprep.subr.mxu0 0.0
    %2311 = vmatpush1.msra.mxu0 %v2131
    %2312 = vmatprep.subr.mxu0 0.0
    %2313 = vmatpush1.msra.mxu0 %v2132
    %2314 = vmatprep.subr.mxu0 0.0
    %2315 = vmatpush1.msra.mxu0 %v2133
    %2316 = vmatprep.subr.mxu0 0.0
    %2317 = vmatpush1.msra.mxu0 %v2134
    %2318 = vmatprep.subr.mxu0 0.0
    %2319 = vmatpush1.msra.mxu0 %v2135
    %2320 = vmatprep.subr.mxu0 0.0
    %2321 = vmatpush1.msra.mxu0 %v2136
    %2322 = vmatprep.subr.mxu0 0.0
    %2323 = vmatpush1.msra.mxu0 %v2137
    %2324 = vmatprep.subr.mxu0 0.0
    %2325 = vmatpush1.msra.mxu0 %v2138
    %2326 = vmatprep.subr.mxu0 0.0
    %2327 = vmatpush1.msra.mxu0 %v2139
    %2328 = vmatprep.subr.mxu0 0.0
    %2329 = vmatpush1.msra.mxu0 %v2140
    %2330 = vmatprep.subr.mxu0 0.0
    %2331 = vmatpush1.msra.mxu0 %v2141
    %2332 = vmatprep.subr.mxu0 0.0
    %2333 = vmatpush1.msra.mxu0 %v2142
    %2334 = vmatprep.subr.mxu0 0.0
    %2335 = vmatpush1.msra.mxu0 %v2143
    %2336 = vmatprep.subr.mxu0 0.0
    %2337 = vmatpush1.msra.mxu0 %v2144
    %2338 = vmatprep.subr.mxu0 0.0
    %2339 = vmatpush1.msra.mxu0 %v2145
    %2340 = vmatprep.subr.mxu0 0.0
    %2341 = vmatpush1.msra.mxu0 %v2146
    %2342 = vmatprep.subr.mxu0 0.0
    %2343 = vmatpush1.msra.mxu0 %v2147
    %2344 = vmatprep.subr.mxu0 0.0
    %2345 = vmatpush1.msra.mxu0 %v2148
    %2346 = vmatprep.subr.mxu0 0.0
    %2347 = vmatpush1.msra.mxu0 %v2149
    %2348 = vmatprep.subr.mxu0 0.0
    %2349 = vmatpush1.msra.mxu0 %v2150
    %2350 = vmatprep.subr.mxu0 0.0
    %2351 = vmatpush1.msra.mxu0 %v2151
    %2352 = vmatprep.subr.mxu0 0.0
    %2353 = vmatpush1.msra.mxu0 %v2152
    %2354 = vmatprep.subr.mxu0 0.0
    %2355 = vmatpush1.msra.mxu0 %v2153
    %2356 = vmatprep.subr.mxu0 0.0
    %2357 = vmatpush1.msra.mxu0 %v2154
    %2358 = vmatprep.subr.mxu0 0.0
    %2359 = vmatpush1.msra.mxu0 %v2155
    %2360 = vmatprep.mubr.f32.mxu0 %v2269
    %2361 = vmatmul.mubr.f32.gmra.mrb[0].mxu0 %v2261
    %v2362 = vpop.f32.mrb[0].mxu0
    %v2363 = vadd.f32 0.0, %v2362
    %v2364 = vpop.f32.mrb[0].mxu0
    %2365 = vdwg.mxu0
    %2366 = vmatprep.subr.mxu0 0.0
    %2367 = vmatpush1.msra.mxu0 %v2156
    %2368 = vmatprep.subr.mxu0 0.0
    %2369 = vmatpush1.msra.mxu0 %v2157
    %2370 = vmatprep.subr.mxu0 0.0
    %2371 = vmatpush1.msra.mxu0 %v2158
    %2372 = vmatprep.subr.mxu0 0.0
    %2373 = vmatpush1.msra.mxu0 %v2159
    %2374 = vmatprep.subr.mxu0 0.0
    %2375 = vmatpush1.msra.mxu0 %v2160
    %2376 = vmatprep.subr.mxu0 0.0
    %2377 = vmatpush1.msra.mxu0 %v2161
    %2378 = vmatprep.subr.mxu0 0.0
    %2379 = vmatpush1.msra.mxu0 %v2162
    %2380 = vmatprep.subr.mxu0 0.0
    %2381 = vmatpush1.msra.mxu0 %v2163
    %2382 = vmatprep.subr.mxu0 0.0
    %2383 = vmatpush1.msra.mxu0 %v2164
    %2384 = vmatprep.subr.mxu0 0.0
    %2385 = vmatpush1.msra.mxu0 %v2165
    %2386 = vmatprep.subr.mxu0 0.0
    %2387 = vmatpush1.msra.mxu0 %v2166
    %2388 = vmatprep.subr.mxu0 0.0
    %2389 = vmatpush1.msra.mxu0 %v2167
    %2390 = vmatprep.subr.mxu0 0.0
    %2391 = vmatpush1.msra.mxu0 %v2168
    %2392 = vmatprep.subr.mxu0 0.0
    %2393 = vmatpush1.msra.mxu0 %v2169
    %2394 = vmatprep.subr.mxu0 0.0
    %2395 = vmatpush1.msra.mxu0 %v2170
    %2396 = vmatprep.subr.mxu0 0.0
    %2397 = vmatpush1.msra.mxu0 %v2171
    %2398 = vmatprep.subr.mxu0 0.0
    %2399 = vmatpush1.msra.mxu0 %v2172
    %2400 = vmatprep.subr.mxu0 0.0
    %2401 = vmatpush1.msra.mxu0 %v2173
    %2402 = vmatprep.subr.mxu0 0.0
    %2403 = vmatpush1.msra.mxu0 %v2174
    %2404 = vmatprep.subr.mxu0 0.0
    %2405 = vmatpush1.msra.mxu0 %v2175
    %2406 = vmatprep.subr.mxu0 0.0
    %2407 = vmatpush1.msra.mxu0 %v2176
    %2408 = vmatprep.subr.mxu0 0.0
    %2409 = vmatpush1.msra.mxu0 %v2177
    %2410 = vmatprep.subr.mxu0 0.0
    %2411 = vmatpush1.msra.mxu0 %v2178
    %2412 = vmatprep.subr.mxu0 0.0
    %2413 = vmatpush1.msra.mxu0 %v2179
    %2414 = vmatprep.subr.mxu0 0.0
    %2415 = vmatpush1.msra.mxu0 %v2180
    %2416 = vmatprep.subr.mxu0 0.0
    %2417 = vmatpush1.msra.mxu0 %v2181
    %2418 = vmatprep.subr.mxu0 0.0
    %2419 = vmatpush1.msra.mxu0 %v2182
    %2420 = vmatprep.subr.mxu0 0.0
    %2421 = vmatpush1.msra.mxu0 %v2183
    %2422 = vmatprep.subr.mxu0 0.0
    %2423 = vmatpush1.msra.mxu0 %v2184
    %2424 = vmatprep.subr.mxu0 0.0
    %2425 = vmatpush1.msra.mxu0 %v2185
    %2426 = vmatprep.subr.mxu0 0.0
    %2427 = vmatpush1.msra.mxu0 %v2186
    %2428 = vmatprep.subr.mxu0 0.0
    %2429 = vmatpush1.msra.mxu0 %v2187
    %2430 = vmatprep.mubr.f32.mxu0 %v2270
    %2431 = vmatmul.mubr.f32.gmra.mrb[0].mxu0 %v2268
    %v2432 = vpop.f32.mrb[0].mxu0
    %v2433 = vadd.f32 %v2363, %v2432
    %v2434 = vpop.f32.mrb[0].mxu0
    %2435 = vdwg.mxu0
    %2436 = vmatprep.subr.mxu0 0.0
    %2437 = vmatpush1.msra.mxu0 %v2188
    %2438 = vmatprep.subr.mxu0 0.0
    %2439 = vmatpush1.msra.mxu0 %v2189
    %2440 = vmatprep.subr.mxu0 0.0
    %2441 = vmatpush1.msra.mxu0 %v2190
    %2442 = vmatprep.subr.mxu0 0.0
    %2443 = vmatpush1.msra.mxu0 %v2191
    %2444 = vmatprep.subr.mxu0 0.0
    %2445 = vmatpush1.msra.mxu0 %v2192
    %2446 = vmatprep.subr.mxu0 0.0
    %2447 = vmatpush1.msra.mxu0 %v2193
    %2448 = vmatprep.subr.mxu0 0.0
    %2449 = vmatpush1.msra.mxu0 %v2194
    %2450 = vmatprep.subr.mxu0 0.0
    %2451 = vmatpush1.msra.mxu0 %v2195
    %2452 = vmatprep.subr.mxu0 0.0
    %2453 = vmatpush1.msra.mxu0 %v2196
    %2454 = vmatprep.subr.mxu0 0.0
    %2455 = vmatpush1.msra.mxu0 %v2197
    %2456 = vmatprep.subr.mxu0 0.0
    %2457 = vmatpush1.msra.mxu0 %v2198
    %2458 = vmatprep.subr.mxu0 0.0
    %2459 = vmatpush1.msra.mxu0 %v2199
    %2460 = vmatprep.subr.mxu0 0.0
    %2461 = vmatpush1.msra.mxu0 %v2200
    %2462 = vmatprep.subr.mxu0 0.0
    %2463 = vmatpush1.msra.mxu0 %v2201
    %2464 = vmatprep.subr.mxu0 0.0
    %2465 = vmatpush1.msra.mxu0 %v2202
    %2466 = vmatprep.subr.mxu0 0.0
    %2467 = vmatpush1.msra.mxu0 %v2203
    %2468 = vmatprep.subr.mxu0 0.0
    %2469 = vmatpush1.msra.mxu0 %v2204
    %2470 = vmatprep.subr.mxu0 0.0
    %2471 = vmatpush1.msra.mxu0 %v2205
    %2472 = vmatprep.subr.mxu0 0.0
    %2473 = vmatpush1.msra.mxu0 %v2206
    %2474 = vmatprep.subr.mxu0 0.0
    %2475 = vmatpush1.msra.mxu0 %v2207
    %2476 = vmatprep.subr.mxu0 0.0
    %2477 = vmatpush1.msra.mxu0 %v2208
    %2478 = vmatprep.subr.mxu0 0.0
    %2479 = vmatpush1.msra.mxu0 %v2209
    %2480 = vmatprep.subr.mxu0 0.0
    %2481 = vmatpush1.msra.mxu0 %v2210
    %2482 = vmatprep.subr.mxu0 0.0
    %2483 = vmatpush1.msra.mxu0 %v2211
    %2484 = vmatprep.subr.mxu0 0.0
    %2485 = vmatpush1.msra.mxu0 %v2212
    %2486 = vmatprep.subr.mxu0 0.0
    %2487 = vmatpush1.msra.mxu0 %v2213
    %2488 = vmatprep.subr.mxu0 0.0
    %2489 = vmatpush1.msra.mxu0 %v2214
    %2490 = vmatprep.subr.mxu0 0.0
    %2491 = vmatpush1.msra.mxu0 %v2215
    %2492 = vmatprep.subr.mxu0 0.0
    %2493 = vmatpush1.msra.mxu0 %v2216
    %2494 = vmatprep.subr.mxu0 0.0
    %2495 = vmatpush1.msra.mxu0 %v2217
    %2496 = vmatprep.subr.mxu0 0.0
    %2497 = vmatpush1.msra.mxu0 %v2218
    %2498 = vmatprep.subr.mxu0 0.0
    %2499 = vmatpush1.msra.mxu0 %v2219
    %2500 = vmatprep.mubr.f32.mxu0 %v2286
    %2501 = vmatmul.mubr.f32.gmra.mrb[0].mxu0 %v2278
    %v2502 = vpop.f32.mrb[0].mxu0
    %v2503 = vadd.f32 %v2433, %v2502
    %v2504 = vpop.f32.mrb[0].mxu0
    %2505 = vdwg.mxu0
    %2506 = vmatprep.subr.mxu0 0.0
    %2507 = vmatpush1.msra.mxu0 %v2220
    %2508 = vmatprep.subr.mxu0 0.0
    %2509 = vmatpush1.msra.mxu0 %v2221
    %2510 = vmatprep.subr.mxu0 0.0
    %2511 = vmatpush1.msra.mxu0 %v2222
    %2512 = vmatprep.subr.mxu0 0.0
    %2513 = vmatpush1.msra.mxu0 %v2223
    %2514 = vmatprep.subr.mxu0 0.0
    %2515 = vmatpush1.msra.mxu0 %v2224
    %2516 = vmatprep.subr.mxu0 0.0
    %2517 = vmatpush1.msra.mxu0 %v2225
    %2518 = vmatprep.subr.mxu0 0.0
    %2519 = vmatpush1.msra.mxu0 %v2226
    %2520 = vmatprep.subr.mxu0 0.0
    %2521 = vmatpush1.msra.mxu0 %v2227
    %2522 = vmatprep.subr.mxu0 0.0
    %2523 = vmatpush1.msra.mxu0 %v2228
    %2524 = vmatprep.subr.mxu0 0.0
    %2525 = vmatpush1.msra.mxu0 %v2229
    %2526 = vmatprep.subr.mxu0 0.0
    %2527 = vmatpush1.msra.mxu0 %v2230
    %2528 = vmatprep.subr.mxu0 0.0
    %2529 = vmatpush1.msra.mxu0 %v2231
    %2530 = vmatprep.subr.mxu0 0.0
    %2531 = vmatpush1.msra.mxu0 %v2232
    %2532 = vmatprep.subr.mxu0 0.0
    %2533 = vmatpush1.msra.mxu0 %v2233
    %2534 = vmatprep.subr.mxu0 0.0
    %2535 = vmatpush1.msra.mxu0 %v2234
    %2536 = vmatprep.subr.mxu0 0.0
    %2537 = vmatpush1.msra.mxu0 %v2235
    %2538 = vmatprep.subr.mxu0 0.0
    %2539 = vmatpush1.msra.mxu0 %v2236
    %2540 = vmatprep.subr.mxu0 0.0
    %2541 = vmatpush1.msra.mxu0 %v2237
    %2542 = vmatprep.subr.mxu0 0.0
    %2543 = vmatpush1.msra.mxu0 %v2238
    %2544 = vmatprep.subr.mxu0 0.0
    %2545 = vmatpush1.msra.mxu0 %v2239
    %2546 = vmatprep.subr.mxu0 0.0
    %2547 = vmatpush1.msra.mxu0 %v2240
    %2548 = vmatprep.subr.mxu0 0.0
    %2549 = vmatpush1.msra.mxu0 %v2241
    %2550 = vmatprep.subr.mxu0 0.0
    %2551 = vmatpush1.msra.mxu0 %v2242
    %2552 = vmatprep.subr.mxu0 0.0
    %2553 = vmatpush1.msra.mxu0 %v2243
    %2554 = vmatprep.subr.mxu0 0.0
    %2555 = vmatpush1.msra.mxu0 %v2244
    %2556 = vmatprep.subr.mxu0 0.0
    %2557 = vmatpush1.msra.mxu0 %v2245
    %2558 = vmatprep.subr.mxu0 0.0
    %2559 = vmatpush1.msra.mxu0 %v2246
    %2560 = vmatprep.subr.mxu0 0.0
    %2561 = vmatpush1.msra.mxu0 %v2247
    %2562 = vmatprep.subr.mxu0 0.0
    %2563 = vmatpush1.msra.mxu0 %v2248
    %2564 = vmatprep.subr.mxu0 0.0
    %2565 = vmatpush1.msra.mxu0 %v2249
    %2566 = vmatprep.subr.mxu0 0.0
    %2567 = vmatpush1.msra.mxu0 %v2250
    %2568 = vmatprep.subr.mxu0 0.0
    %2569 = vmatpush1.msra.mxu0 %v2251
    %2570 = vmatprep.mubr.f32.mxu0 %v2287
    %2571 = vmatmul.mubr.f32.gmra.mrb[0].mxu0 %v2285
    %v2572 = vpop.f32.mrb[0].mxu0
    %v2573 = vadd.f32 %v2503, %v2572
    %v2574 = vpop.f32.mrb[0].mxu0
    %2575 = vdwg.mxu0
    %v2576 = vadd.f32 %v2119, %v2573
    %v2577 = vld [vmem:[#allocation8] sm:$0x1]
    %v2579 = vlaneseq
    %v2580 = vshrl.u32 %v2579, 7
    %v2581 = vsub.s32 0, %v2580
    %v2582 = vrot.slane %v2577, %v2581
    %v2584 = vadd.f32 %v2576, %v2582
    %v2585 = vmax.f32 %v2584, 0.0
    %v2586 = vld [vmem:[%s7] sm:$0xff]
    %v2587 = vld [vmem:[%s7 + $0x8] sm:$0xff]
    %v2588 = vld [vmem:[%s7 + $0x10] sm:$0xff]
    %v2589 = vld [vmem:[%s7 + $0x18] sm:$0xff]
    %v2590 = vld [vmem:[%s7 + $0x20] sm:$0xff]
    %v2591 = vld [vmem:[%s7 + $0x28] sm:$0xff]
    %v2592 = vld [vmem:[%s7 + $0x30] sm:$0xff]
    %v2593 = vld [vmem:[%s7 + $0x38] sm:$0xff]
    %v2594 = vld [vmem:[%s7 + $0x40] sm:$0xff]
    %v2595 = vld [vmem:[%s7 + $0x48] sm:$0xff]
    %v2596 = vld [vmem:[%s7 + $0x50] sm:$0xff]
    %v2597 = vld [vmem:[%s7 + $0x58] sm:$0xff]
    %v2598 = vld [vmem:[%s7 + $0x60] sm:$0xff]
    %v2599 = vld [vmem:[%s7 + $0x68] sm:$0xff]
    %v2600 = vld [vmem:[%s7 + $0x70] sm:$0xff]
    %v2601 = vld [vmem:[%s7 + $0x78] sm:$0xff]
    %v2602 = vld [vmem:[#allocation10] sm:$0x1]
    %v2604 = vlaneseq
    %v2605 = vshrl.u32 %v2604, 7
    %v2606 = vsub.s32 0, %v2605
    %v2607 = vrot.slane %v2602, %v2606
    %2609 = vmatprep.subr.mxu0 0.0
    %2610 = vmatpush1.msra.mxu0 %v2586
    %2611 = vmatprep.subr.mxu0 0.0
    %2612 = vmatpush1.msra.mxu0 %v2587
    %2613 = vmatprep.subr.mxu0 0.0
    %2614 = vmatpush1.msra.mxu0 %v2588
    %2615 = vmatprep.subr.mxu0 0.0
    %2616 = vmatpush1.msra.mxu0 %v2589
    %2617 = vmatprep.subr.mxu0 0.0
    %2618 = vmatpush1.msra.mxu0 %v2590
    %2619 = vmatprep.subr.mxu0 0.0
    %2620 = vmatpush1.msra.mxu0 %v2591
    %2621 = vmatprep.subr.mxu0 0.0
    %2622 = vmatpush1.msra.mxu0 %v2592
    %2623 = vmatprep.subr.mxu0 0.0
    %2624 = vmatpush1.msra.mxu0 %v2593
    %2625 = vmatprep.subr.mxu0 0.0
    %2626 = vmatpush1.msra.mxu0 %v2594
    %2627 = vmatprep.subr.mxu0 0.0
    %2628 = vmatpush1.msra.mxu0 %v2595
    %2629 = vmatprep.subr.mxu0 0.0
    %2630 = vmatpush1.msra.mxu0 %v2596
    %2631 = vmatprep.subr.mxu0 0.0
    %2632 = vmatpush1.msra.mxu0 %v2597
    %2633 = vmatprep.subr.mxu0 0.0
    %2634 = vmatpush1.msra.mxu0 %v2598
    %2635 = vmatprep.subr.mxu0 0.0
    %2636 = vmatpush1.msra.mxu0 %v2599
    %2637 = vmatprep.subr.mxu0 0.0
    %2638 = vmatpush1.msra.mxu0 %v2600
    %2639 = vmatprep.subr.mxu0 0.0
    %2640 = vmatpush1.msra.mxu0 %v2601
    %2641 = vmatprep.subr.mxu0 0.0
    %2642 = vmatpush1.msra.mxu0 0.0
    %2643 = vmatprep.subr.mxu0 0.0
    %2644 = vmatpush1.msra.mxu0 0.0
    %2645 = vmatprep.subr.mxu0 0.0
    %2646 = vmatpush1.msra.mxu0 0.0
    %2647 = vmatprep.subr.mxu0 0.0
    %2648 = vmatpush1.msra.mxu0 0.0
    %2649 = vmatprep.subr.mxu0 0.0
    %2650 = vmatpush1.msra.mxu0 0.0
    %2651 = vmatprep.subr.mxu0 0.0
    %2652 = vmatpush1.msra.mxu0 0.0
    %2653 = vmatprep.subr.mxu0 0.0
    %2654 = vmatpush1.msra.mxu0 0.0
    %2655 = vmatprep.subr.mxu0 0.0
    %2656 = vmatpush1.msra.mxu0 0.0
    %2657 = vmatprep.subr.mxu0 0.0
    %2658 = vmatpush1.msra.mxu0 0.0
    %2659 = vmatprep.subr.mxu0 0.0
    %2660 = vmatpush1.msra.mxu0 0.0
    %2661 = vmatprep.subr.mxu0 0.0
    %2662 = vmatpush1.msra.mxu0 0.0
    %2663 = vmatprep.subr.mxu0 0.0
    %2664 = vmatpush1.msra.mxu0 0.0
    %2665 = vmatprep.subr.mxu0 0.0
    %2666 = vmatpush1.msra.mxu0 0.0
    %2667 = vmatprep.subr.mxu0 0.0
    %2668 = vmatpush1.msra.mxu0 0.0
    %2669 = vmatprep.subr.mxu0 0.0
    %2670 = vmatpush1.msra.mxu0 0.0
    %2671 = vmatprep.subr.mxu0 0.0
    %2672 = vmatpush1.msra.mxu0 0.0
    %2673 = vmatprep.mubr.f32.mxu0 0.0
    %2674 = vmatmul.mubr.f32.gmra.mrb[0].mxu0 %v2585
    %v2675 = vpop.f32.mrb[0].mxu0
    %v2676 = vadd.f32 %v2607, %v2675
    %v2677 = vpop.f32.mrb[0].mxu0
    %2678 = vdwg.mxu0
    %vm2679 = vcmask 9216
    %2680 = vst.msk [vmem:[#allocation11] sm:$0x3] %vm2679, %v2676
    // Predicated region
    $region62: #{simple_cnn_forward.1} parent=1 // pred_check
      _
    $region63: #{simple_cnn_forward.1} parent=1 // pred_check_branch
      %2682 = sbr.rel (0) target = $region65
    $region64: #{simple_cnn_forward.1} parent=1 // pred_region
      %s2684 = ssub.s32 32, 32
      %2685 = vsyncadd [#allocation7], %s2684
      %s2687 = sshll.u32 [#allocation11], 4
      %s2688 = int_to_ptr.vmem [resolvable:$true] %s2687
      %2690 = dma.vmem_to_hbm [thread:$0]  %s2688, 32, %s9, [#allocation7]
    $region65: #{simple_cnn_forward.1} parent=1 // pred_fallthru
      _
    // Predicated region
    $region66: #{simple_cnn_forward.1} parent=1 // pred_check
      _
    $region67: #{simple_cnn_forward.1} parent=1 // pred_check_branch
      %2692 = sbr.rel (0) target = $region69
    $region68: #{simple_cnn_forward.1} parent=1 // pred_region
      %2693 = dma.done [#allocation7], 32
    $region69: #{simple_cnn_forward.1} parent=1 // pred_fallthru
      _
    %2694 = vsyncpa [#allocation6], 1
    %2695 = vsyncpa [#allocation9], 1
    %2696 = vsyncpa [#allocation7], 1
  %2697 = vsyncmov [#allocation4]
  %s2698 = vpop.sfrf %2697
  %p2699 = scmp.eq.s32.totalorder %s2698, 0
  %p2700 = pneg %p2699
  %2702 = shalt.err (%p2700)
  %s2703 = scalar_lea.sflag [#allocation4], 1
  %2704 = vsyncmov %s2703
  %s2705 = vpop.sfrf %2704
  %p2706 = scmp.eq.s32.totalorder %s2705, 0
  %p2707 = pneg %p2706
  %2709 = shalt.err (%p2707)
  %s2710 = scalar_lea.sflag [#allocation4], 2
  %2711 = vsyncmov %s2710
  %s2712 = vpop.sfrf %2711
  %p2713 = scmp.eq.s32.totalorder %s2712, 0
  %p2714 = pneg %p2713
  %2716 = shalt.err (%p2714)
  %s2717 = scalar_lea.sflag [#allocation4], 3
  %2718 = vsyncmov %s2717
  %s2719 = vpop.sfrf %2718
  %p2720 = scmp.eq.s32.totalorder %s2719, 0
  %p2721 = pneg %p2720
  %2723 = shalt.err (%p2721)

</llo_original>
